<compile_context>
chip_gen: v7x
topology: tpu7x:2x2x1
jax: 0.10.0
libtpu: 0.0.40
codegen_flags: <defaults>
</compile_context>

<pallas_src>
import functools

import jax
import jax.numpy as jnp
from jax.experimental import pallas as pl
from jax.experimental.pallas import tpu as pltpu


def _cdiv(a, b):
    return -(-a // b)


def _pinn_concat_kernel(nc, compute_dtype,
                        x_ref,
                        w1, b1,
                        w2c, w2h, b2,
                        w3c, w3h, b3,
                        w4c, w4h, b4,
                        w5c, w5h, b5,
                        w6c, w6h, b6,
                        w7c, w7h, b7,
                        w8c, w8h, b8,
                        o_ref):
    """Whole PinnNetConcat forward for one batch tile; all weights resident in VMEM."""
    x = x_ref[...]                      # (TM, F) f32
    c = x[:, :nc]                       # (TM, nc) skip-connected input columns

    def mm(a, w_ref):
        # bf16 operands, f32 accumulation on the MXU.
        return jnp.dot(a.astype(compute_dtype),
                       w_ref[...].astype(compute_dtype),
                       preferred_element_type=jnp.float32)

    # layer 1: plain linear on the full input
    h = jnp.tanh(mm(x, w1) + b1[...])                              # (TM, 512)

    # layers 2..7: tanh(cat([c, h]) @ W + b) == tanh(c @ Wc + h @ Wh + b)
    for wc, wh, b in ((w2c, w2h, b2), (w3c, w3h, b3), (w4c, w4h, b4),
                      (w5c, w5h, b5), (w6c, w6h, b6), (w7c, w7h, b7)):
        h = jnp.tanh(mm(c, wc) + mm(h, wh) + b[...])

    # final: tanh is applied to the *concatenated* vector, then lin8 (no act after).
    # tanh distributes elementwise over the concat, so split it the same way.
    y = mm(jnp.tanh(c), w8c) + mm(jnp.tanh(h), w8h) + b8[...]
    o_ref[...] = y.astype(o_ref.dtype)


def pinn_concat_forward(x, params, *, num_con_input=30, tile_m=256,
                        compute_dtype=jnp.bfloat16):
    """x: (B, num_features) f32. params: 8 (W(in,out), b(1,out)) pairs, i.e.
    y = x @ W + b (W is the transpose of PyTorch's weight layout)."""
    B, F = x.shape
    nc = num_con_input
    assert F >= nc, "num_features must be >= num_con_input"
    assert len(params) == 8
    num_outputs = params[-1][0].shape[1]
    out_pad = 128 * _cdiv(num_outputs, 128)   # lane-dense output store

    # Split every post-concat weight: cat([c, h]) @ W == c @ W[:nc] + h @ W[nc:]
    w1, b1 = params[0]
    flat = [w1, b1]
    for w, b in params[1:]:
        flat.extend([w[:nc, :], w[nc:, :], b])
    # Zero-pad the final layer to out_pad columns; sliced off after the call.
    pad = out_pad - num_outputs
    flat[-3] = jnp.pad(flat[-3], ((0, 0), (0, pad)))
    flat[-2] = jnp.pad(flat[-2], ((0, 0), (0, pad)))
    flat[-1] = jnp.pad(flat[-1], ((0, 0), (0, pad)))

    # Pad batch to a multiple of tile_m so arbitrary batch sizes work.
    Bp = tile_m * _cdiv(B, tile_m)
    xp = jnp.pad(x, ((0, Bp - B), (0, 0))) if Bp != B else x

    in_specs = [pl.BlockSpec((tile_m, F), lambda i: (i, 0))]
    for a in flat:
        in_specs.append(pl.BlockSpec(a.shape, lambda i: (0, 0)))
    out_spec = pl.BlockSpec((tile_m, out_pad), lambda i: (i, 0))

    # Advisory cost estimate for XLA scheduling (kernel is compute-bound).
    layer_io = [(F, 512), (512 + nc, 256), (256 + nc, 128), (128 + nc, 64),
                (64 + nc, 32), (32 + nc, 16), (16 + nc, 8), (8 + nc, out_pad)]
    flops = 2 * Bp * sum(i * o for i, o in layer_io)
    transcendentals = Bp * (512 + 256 + 128 + 64 + 32 + 16 + 8 + (8 + nc))
    bytes_accessed = 4 * (Bp * F + Bp * out_pad) + 4 * sum(int(a.size) for a in flat)

    kernel = functools.partial(_pinn_concat_kernel, nc, compute_dtype)

    out = pl.pallas_call(
        kernel,
        out_shape=jax.ShapeDtypeStruct((Bp, out_pad), jnp.float32),
        grid_spec=pltpu.PrefetchScalarGridSpec(
            num_scalar_prefetch=0,
            grid=(Bp // tile_m,),
            in_specs=in_specs,
            out_specs=out_spec,
        ),
        compiler_params=pltpu.CompilerParams(
            dimension_semantics=("parallel",),
        ),
        cost_estimate=pl.CostEstimate(
            flops=int(flops),
            transcendentals=int(transcendentals),
            bytes_accessed=int(bytes_accessed),
        ),
    )(xp, *flat)
    return out[:B, :num_outputs]


def init_params(key, num_features, num_outputs, num_con_input=30):
    """PyTorch-default-style uniform init; W stored as (in, out)."""
    nc = num_con_input
    layer_io = [(num_features, 512), (512 + nc, 256), (256 + nc, 128),
                (128 + nc, 64), (64 + nc, 32), (32 + nc, 16),
                (16 + nc, 8), (8 + nc, num_outputs)]
    params = []
    for fan_in, fan_out in layer_io:
        key, kw, kb = jax.random.split(key, 3)
        bound = 1.0 / float(fan_in) ** 0.5
        w = jax.random.uniform(kw, (fan_in, fan_out), jnp.float32, -bound, bound)
        b = jax.random.uniform(kb, (1, fan_out), jnp.float32, -bound, bound)
        params.append((w, b))
    return params


def pinn_concat_reference(x, params, num_con_input=30, compute_dtype=jnp.float32):
    """Plain-JAX reference of PinnNetConcat.forward."""
    nc = num_con_input

    def mm(a, w):
        return jnp.dot(a.astype(compute_dtype), w.astype(compute_dtype),
                       preferred_element_type=jnp.float32)

    c = x[:, :nc]
    w1, b1 = params[0]
    h = jnp.tanh(mm(x, w1) + b1)
    for w, b in params[1:7]:
        h = jnp.tanh(mm(jnp.concatenate([c, h], axis=1), w) + b)
    w8, b8 = params[7]
    h = jnp.tanh(jnp.concatenate([c, h], axis=1))   # extra tanh before lin8
    return mm(h, w8) + b8


if __name__ == "__main__":
    num_features = 40
    num_outputs = 4
    num_con_input = 30
    batch = 1000          # deliberately NOT a multiple of tile_m (exercises padding)

    key = jax.random.PRNGKey(0)
    key, kx = jax.random.split(key)
    x = jax.random.normal(kx, (batch, num_features), jnp.float32)
    params = init_params(key, num_features, num_outputs, num_con_input)

    out = pinn_concat_forward(x, params, num_con_input=num_con_input, tile_m=256)
    out = jax.block_until_ready(out)
    assert out.shape == (batch, num_outputs)

    # Tight check vs a reference that uses the same bf16-operand matmuls ...
    ref_bf16 = pinn_concat_reference(x, params, num_con_input, jnp.bfloat16)
    assert jnp.allclose(out, ref_bf16, atol=2e-3, rtol=2e-3), "mismatch vs bf16 reference"
    # ... and a looser sanity check vs the full-f32 reference.
    ref_f32 = pinn_concat_reference(x, params, num_con_input, jnp.float32)
    assert jnp.allclose(out, ref_f32, atol=5e-2, rtol=5e-2), "mismatch vs f32 reference"

    print("KERNEL_OK")
</pallas_src>

<mosaic_0001>
module attributes {stable_mosaic.version = 11 : i64} {
  func.func @_pinn_concat_kernel(%arg0: i32, %arg1: memref<256x40xf32, #tpu.memory_space<vmem>>, %arg2: memref<40x512xf32, #tpu.memory_space<vmem>>, %arg3: memref<1x512xf32, #tpu.memory_space<vmem>>, %arg4: memref<30x256xf32, #tpu.memory_space<vmem>>, %arg5: memref<512x256xf32, #tpu.memory_space<vmem>>, %arg6: memref<1x256xf32, #tpu.memory_space<vmem>>, %arg7: memref<30x128xf32, #tpu.memory_space<vmem>>, %arg8: memref<256x128xf32, #tpu.memory_space<vmem>>, %arg9: memref<1x128xf32, #tpu.memory_space<vmem>>, %arg10: memref<30x64xf32, #tpu.memory_space<vmem>>, %arg11: memref<128x64xf32, #tpu.memory_space<vmem>>, %arg12: memref<1x64xf32, #tpu.memory_space<vmem>>, %arg13: memref<30x32xf32, #tpu.memory_space<vmem>>, %arg14: memref<64x32xf32, #tpu.memory_space<vmem>>, %arg15: memref<1x32xf32, #tpu.memory_space<vmem>>, %arg16: memref<30x16xf32, #tpu.memory_space<vmem>>, %arg17: memref<32x16xf32, #tpu.memory_space<vmem>>, %arg18: memref<1x16xf32, #tpu.memory_space<vmem>>, %arg19: memref<30x8xf32, #tpu.memory_space<vmem>>, %arg20: memref<16x8xf32, #tpu.memory_space<vmem>>, %arg21: memref<1x8xf32, #tpu.memory_space<vmem>>, %arg22: memref<30x128xf32, #tpu.memory_space<vmem>>, %arg23: memref<8x128xf32, #tpu.memory_space<vmem>>, %arg24: memref<1x128xf32, #tpu.memory_space<vmem>>, %arg25: memref<256x128xf32, #tpu.memory_space<vmem>>) attributes {dimension_semantics = [#tpu.dimension_semantics<parallel>], iteration_bounds = array<i64: 4>, scalar_prefetch = 0 : i64, scratch_operands = 0 : i64, tpu.core_type = #tpu.core_type<tc>, window_params = [{transform_indices = @transform_0, window_bounds = array<i64: 256, 40>}, {pipeline_mode = #tpu.pipeline_mode<synchronous>, transform_indices = @transform_1, window_bounds = array<i64: 40, 512>}, {pipeline_mode = #tpu.pipeline_mode<synchronous>, transform_indices = @transform_2, window_bounds = array<i64: 1, 512>}, {pipeline_mode = #tpu.pipeline_mode<synchronous>, transform_indices = @transform_3, window_bounds = array<i64: 30, 256>}, {pipeline_mode = #tpu.pipeline_mode<synchronous>, transform_indices = @transform_4, window_bounds = array<i64: 512, 256>}, {pipeline_mode = #tpu.pipeline_mode<synchronous>, transform_indices = @transform_5, window_bounds = array<i64: 1, 256>}, {pipeline_mode = #tpu.pipeline_mode<synchronous>, transform_indices = @transform_6, window_bounds = array<i64: 30, 128>}, {pipeline_mode = #tpu.pipeline_mode<synchronous>, transform_indices = @transform_7, window_bounds = array<i64: 256, 128>}, {pipeline_mode = #tpu.pipeline_mode<synchronous>, transform_indices = @transform_8, window_bounds = array<i64: 1, 128>}, {pipeline_mode = #tpu.pipeline_mode<synchronous>, transform_indices = @transform_9, window_bounds = array<i64: 30, 64>}, {pipeline_mode = #tpu.pipeline_mode<synchronous>, transform_indices = @transform_10, window_bounds = array<i64: 128, 64>}, {pipeline_mode = #tpu.pipeline_mode<synchronous>, transform_indices = @transform_11, window_bounds = array<i64: 1, 64>}, {pipeline_mode = #tpu.pipeline_mode<synchronous>, transform_indices = @transform_12, window_bounds = array<i64: 30, 32>}, {pipeline_mode = #tpu.pipeline_mode<synchronous>, transform_indices = @transform_13, window_bounds = array<i64: 64, 32>}, {pipeline_mode = #tpu.pipeline_mode<synchronous>, transform_indices = @transform_14, window_bounds = array<i64: 1, 32>}, {pipeline_mode = #tpu.pipeline_mode<synchronous>, transform_indices = @transform_15, window_bounds = array<i64: 30, 16>}, {pipeline_mode = #tpu.pipeline_mode<synchronous>, transform_indices = @transform_16, window_bounds = array<i64: 32, 16>}, {pipeline_mode = #tpu.pipeline_mode<synchronous>, transform_indices = @transform_17, window_bounds = array<i64: 1, 16>}, {pipeline_mode = #tpu.pipeline_mode<synchronous>, transform_indices = @transform_18, window_bounds = array<i64: 30, 8>}, {pipeline_mode = #tpu.pipeline_mode<synchronous>, transform_indices = @transform_19, window_bounds = array<i64: 16, 8>}, {pipeline_mode = #tpu.pipeline_mode<synchronous>, transform_indices = @transform_20, window_bounds = array<i64: 1, 8>}, {pipeline_mode = #tpu.pipeline_mode<synchronous>, transform_indices = @transform_21, window_bounds = array<i64: 30, 128>}, {pipeline_mode = #tpu.pipeline_mode<synchronous>, transform_indices = @transform_22, window_bounds = array<i64: 8, 128>}, {pipeline_mode = #tpu.pipeline_mode<synchronous>, transform_indices = @transform_23, window_bounds = array<i64: 1, 128>}, {transform_indices = @transform_24, window_bounds = array<i64: 256, 128>}]} {
    %c0 = arith.constant 0 : index
    %c0_0 = arith.constant 0 : index
    %0 = vector.load %arg1[%c0, %c0_0] : memref<256x40xf32, #tpu.memory_space<vmem>>, vector<256x40xf32>
    %1 = vector.extract_strided_slice %0 {offsets = [0, 0], sizes = [256, 30], strides = [1, 1]} : vector<256x40xf32> to vector<256x30xf32>
    %2 = arith.truncf %0 : vector<256x40xf32> to vector<256x40xbf16>
    %c0_1 = arith.constant 0 : index
    %c0_2 = arith.constant 0 : index
    %3 = vector.load %arg2[%c0_1, %c0_2] : memref<40x512xf32, #tpu.memory_space<vmem>>, vector<40x512xf32>
    %4 = arith.truncf %3 : vector<40x512xf32> to vector<40x512xbf16>
    %cst = arith.constant dense<0.000000e+00> : vector<256x512xf32>
    %5 = tpu.matmul %2, %4, %cst {dimension_numbers = #tpu.dot_dimension_numbers<[1], [0], [0], [1], [0, 0, 1, 1], [], []>} : vector<256x40xbf16>, vector<40x512xbf16>, vector<256x512xf32> -> vector<256x512xf32>
    %c0_3 = arith.constant 0 : index
    %c0_4 = arith.constant 0 : index
    %6 = vector.load %arg3[%c0_3, %c0_4] : memref<1x512xf32, #tpu.memory_space<vmem>>, vector<1x512xf32>
    %7 = vector.broadcast %6 : vector<1x512xf32> to vector<256x512xf32>
    %8 = arith.addf %5, %7 : vector<256x512xf32>
    %9 = math.tanh %8 : vector<256x512xf32>
    %10 = arith.truncf %1 : vector<256x30xf32> to vector<256x30xbf16>
    %c0_5 = arith.constant 0 : index
    %c0_6 = arith.constant 0 : index
    %11 = vector.load %arg4[%c0_5, %c0_6] : memref<30x256xf32, #tpu.memory_space<vmem>>, vector<30x256xf32>
    %12 = arith.truncf %11 : vector<30x256xf32> to vector<30x256xbf16>
    %cst_7 = arith.constant dense<0.000000e+00> : vector<256x256xf32>
    %13 = tpu.matmul %10, %12, %cst_7 {dimension_numbers = #tpu.dot_dimension_numbers<[1], [0], [0], [1], [0, 0, 1, 1], [], []>} : vector<256x30xbf16>, vector<30x256xbf16>, vector<256x256xf32> -> vector<256x256xf32>
    %14 = arith.truncf %9 : vector<256x512xf32> to vector<256x512xbf16>
    %c0_8 = arith.constant 0 : index
    %c0_9 = arith.constant 0 : index
    %15 = vector.load %arg5[%c0_8, %c0_9] : memref<512x256xf32, #tpu.memory_space<vmem>>, vector<512x256xf32>
    %16 = arith.truncf %15 : vector<512x256xf32> to vector<512x256xbf16>
    %cst_10 = arith.constant dense<0.000000e+00> : vector<256x256xf32>
    %17 = tpu.matmul %14, %16, %cst_10 {dimension_numbers = #tpu.dot_dimension_numbers<[1], [0], [0], [1], [0, 0, 1, 1], [], []>} : vector<256x512xbf16>, vector<512x256xbf16>, vector<256x256xf32> -> vector<256x256xf32>
    %18 = arith.addf %13, %17 : vector<256x256xf32>
    %c0_11 = arith.constant 0 : index
    %c0_12 = arith.constant 0 : index
    %19 = vector.load %arg6[%c0_11, %c0_12] : memref<1x256xf32, #tpu.memory_space<vmem>>, vector<1x256xf32>
    %20 = vector.broadcast %19 : vector<1x256xf32> to vector<256x256xf32>
    %21 = arith.addf %18, %20 : vector<256x256xf32>
    %22 = math.tanh %21 : vector<256x256xf32>
    %23 = arith.truncf %1 : vector<256x30xf32> to vector<256x30xbf16>
    %c0_13 = arith.constant 0 : index
    %c0_14 = arith.constant 0 : index
    %24 = vector.load %arg7[%c0_13, %c0_14] : memref<30x128xf32, #tpu.memory_space<vmem>>, vector<30x128xf32>
    %25 = arith.truncf %24 : vector<30x128xf32> to vector<30x128xbf16>
    %cst_15 = arith.constant dense<0.000000e+00> : vector<256x128xf32>
    %26 = tpu.matmul %23, %25, %cst_15 {dimension_numbers = #tpu.dot_dimension_numbers<[1], [0], [0], [1], [0, 0, 1, 1], [], []>} : vector<256x30xbf16>, vector<30x128xbf16>, vector<256x128xf32> -> vector<256x128xf32>
    %27 = arith.truncf %22 : vector<256x256xf32> to vector<256x256xbf16>
    %c0_16 = arith.constant 0 : index
    %c0_17 = arith.constant 0 : index
    %28 = vector.load %arg8[%c0_16, %c0_17] : memref<256x128xf32, #tpu.memory_space<vmem>>, vector<256x128xf32>
    %29 = arith.truncf %28 : vector<256x128xf32> to vector<256x128xbf16>
    %cst_18 = arith.constant dense<0.000000e+00> : vector<256x128xf32>
    %30 = tpu.matmul %27, %29, %cst_18 {dimension_numbers = #tpu.dot_dimension_numbers<[1], [0], [0], [1], [0, 0, 1, 1], [], []>} : vector<256x256xbf16>, vector<256x128xbf16>, vector<256x128xf32> -> vector<256x128xf32>
    %31 = arith.addf %26, %30 : vector<256x128xf32>
    %c0_19 = arith.constant 0 : index
    %c0_20 = arith.constant 0 : index
    %32 = vector.load %arg9[%c0_19, %c0_20] : memref<1x128xf32, #tpu.memory_space<vmem>>, vector<1x128xf32>
    %33 = vector.broadcast %32 : vector<1x128xf32> to vector<256x128xf32>
    %34 = arith.addf %31, %33 : vector<256x128xf32>
    %35 = math.tanh %34 : vector<256x128xf32>
    %36 = arith.truncf %1 : vector<256x30xf32> to vector<256x30xbf16>
    %c0_21 = arith.constant 0 : index
    %c0_22 = arith.constant 0 : index
    %37 = vector.load %arg10[%c0_21, %c0_22] : memref<30x64xf32, #tpu.memory_space<vmem>>, vector<30x64xf32>
    %38 = arith.truncf %37 : vector<30x64xf32> to vector<30x64xbf16>
    %cst_23 = arith.constant dense<0.000000e+00> : vector<256x64xf32>
    %39 = tpu.matmul %36, %38, %cst_23 {dimension_numbers = #tpu.dot_dimension_numbers<[1], [0], [0], [1], [0, 0, 1, 1], [], []>} : vector<256x30xbf16>, vector<30x64xbf16>, vector<256x64xf32> -> vector<256x64xf32>
    %40 = arith.truncf %35 : vector<256x128xf32> to vector<256x128xbf16>
    %c0_24 = arith.constant 0 : index
    %c0_25 = arith.constant 0 : index
    %41 = vector.load %arg11[%c0_24, %c0_25] : memref<128x64xf32, #tpu.memory_space<vmem>>, vector<128x64xf32>
    %42 = arith.truncf %41 : vector<128x64xf32> to vector<128x64xbf16>
    %cst_26 = arith.constant dense<0.000000e+00> : vector<256x64xf32>
    %43 = tpu.matmul %40, %42, %cst_26 {dimension_numbers = #tpu.dot_dimension_numbers<[1], [0], [0], [1], [0, 0, 1, 1], [], []>} : vector<256x128xbf16>, vector<128x64xbf16>, vector<256x64xf32> -> vector<256x64xf32>
    %44 = arith.addf %39, %43 : vector<256x64xf32>
    %c0_27 = arith.constant 0 : index
    %c0_28 = arith.constant 0 : index
    %45 = vector.load %arg12[%c0_27, %c0_28] : memref<1x64xf32, #tpu.memory_space<vmem>>, vector<1x64xf32>
    %46 = vector.broadcast %45 : vector<1x64xf32> to vector<256x64xf32>
    %47 = arith.addf %44, %46 : vector<256x64xf32>
    %48 = math.tanh %47 : vector<256x64xf32>
    %49 = arith.truncf %1 : vector<256x30xf32> to vector<256x30xbf16>
    %c0_29 = arith.constant 0 : index
    %c0_30 = arith.constant 0 : index
    %50 = vector.load %arg13[%c0_29, %c0_30] : memref<30x32xf32, #tpu.memory_space<vmem>>, vector<30x32xf32>
    %51 = arith.truncf %50 : vector<30x32xf32> to vector<30x32xbf16>
    %cst_31 = arith.constant dense<0.000000e+00> : vector<256x32xf32>
    %52 = tpu.matmul %49, %51, %cst_31 {dimension_numbers = #tpu.dot_dimension_numbers<[1], [0], [0], [1], [0, 0, 1, 1], [], []>} : vector<256x30xbf16>, vector<30x32xbf16>, vector<256x32xf32> -> vector<256x32xf32>
    %53 = arith.truncf %48 : vector<256x64xf32> to vector<256x64xbf16>
    %c0_32 = arith.constant 0 : index
    %c0_33 = arith.constant 0 : index
    %54 = vector.load %arg14[%c0_32, %c0_33] : memref<64x32xf32, #tpu.memory_space<vmem>>, vector<64x32xf32>
    %55 = arith.truncf %54 : vector<64x32xf32> to vector<64x32xbf16>
    %cst_34 = arith.constant dense<0.000000e+00> : vector<256x32xf32>
    %56 = tpu.matmul %53, %55, %cst_34 {dimension_numbers = #tpu.dot_dimension_numbers<[1], [0], [0], [1], [0, 0, 1, 1], [], []>} : vector<256x64xbf16>, vector<64x32xbf16>, vector<256x32xf32> -> vector<256x32xf32>
    %57 = arith.addf %52, %56 : vector<256x32xf32>
    %c0_35 = arith.constant 0 : index
    %c0_36 = arith.constant 0 : index
    %58 = vector.load %arg15[%c0_35, %c0_36] : memref<1x32xf32, #tpu.memory_space<vmem>>, vector<1x32xf32>
    %59 = vector.broadcast %58 : vector<1x32xf32> to vector<256x32xf32>
    %60 = arith.addf %57, %59 : vector<256x32xf32>
    %61 = math.tanh %60 : vector<256x32xf32>
    %62 = arith.truncf %1 : vector<256x30xf32> to vector<256x30xbf16>
    %c0_37 = arith.constant 0 : index
    %c0_38 = arith.constant 0 : index
    %63 = vector.load %arg16[%c0_37, %c0_38] : memref<30x16xf32, #tpu.memory_space<vmem>>, vector<30x16xf32>
    %64 = arith.truncf %63 : vector<30x16xf32> to vector<30x16xbf16>
    %cst_39 = arith.constant dense<0.000000e+00> : vector<256x16xf32>
    %65 = tpu.matmul %62, %64, %cst_39 {dimension_numbers = #tpu.dot_dimension_numbers<[1], [0], [0], [1], [0, 0, 1, 1], [], []>} : vector<256x30xbf16>, vector<30x16xbf16>, vector<256x16xf32> -> vector<256x16xf32>
    %66 = arith.truncf %61 : vector<256x32xf32> to vector<256x32xbf16>
    %c0_40 = arith.constant 0 : index
    %c0_41 = arith.constant 0 : index
    %67 = vector.load %arg17[%c0_40, %c0_41] : memref<32x16xf32, #tpu.memory_space<vmem>>, vector<32x16xf32>
    %68 = arith.truncf %67 : vector<32x16xf32> to vector<32x16xbf16>
    %cst_42 = arith.constant dense<0.000000e+00> : vector<256x16xf32>
    %69 = tpu.matmul %66, %68, %cst_42 {dimension_numbers = #tpu.dot_dimension_numbers<[1], [0], [0], [1], [0, 0, 1, 1], [], []>} : vector<256x32xbf16>, vector<32x16xbf16>, vector<256x16xf32> -> vector<256x16xf32>
    %70 = arith.addf %65, %69 : vector<256x16xf32>
    %c0_43 = arith.constant 0 : index
    %c0_44 = arith.constant 0 : index
    %71 = vector.load %arg18[%c0_43, %c0_44] : memref<1x16xf32, #tpu.memory_space<vmem>>, vector<1x16xf32>
    %72 = vector.broadcast %71 : vector<1x16xf32> to vector<256x16xf32>
    %73 = arith.addf %70, %72 : vector<256x16xf32>
    %74 = math.tanh %73 : vector<256x16xf32>
    %75 = arith.truncf %1 : vector<256x30xf32> to vector<256x30xbf16>
    %c0_45 = arith.constant 0 : index
    %c0_46 = arith.constant 0 : index
    %76 = vector.load %arg19[%c0_45, %c0_46] : memref<30x8xf32, #tpu.memory_space<vmem>>, vector<30x8xf32>
    %77 = arith.truncf %76 : vector<30x8xf32> to vector<30x8xbf16>
    %cst_47 = arith.constant dense<0.000000e+00> : vector<256x8xf32>
    %78 = tpu.matmul %75, %77, %cst_47 {dimension_numbers = #tpu.dot_dimension_numbers<[1], [0], [0], [1], [0, 0, 1, 1], [], []>} : vector<256x30xbf16>, vector<30x8xbf16>, vector<256x8xf32> -> vector<256x8xf32>
    %79 = arith.truncf %74 : vector<256x16xf32> to vector<256x16xbf16>
    %c0_48 = arith.constant 0 : index
    %c0_49 = arith.constant 0 : index
    %80 = vector.load %arg20[%c0_48, %c0_49] : memref<16x8xf32, #tpu.memory_space<vmem>>, vector<16x8xf32>
    %81 = arith.truncf %80 : vector<16x8xf32> to vector<16x8xbf16>
    %cst_50 = arith.constant dense<0.000000e+00> : vector<256x8xf32>
    %82 = tpu.matmul %79, %81, %cst_50 {dimension_numbers = #tpu.dot_dimension_numbers<[1], [0], [0], [1], [0, 0, 1, 1], [], []>} : vector<256x16xbf16>, vector<16x8xbf16>, vector<256x8xf32> -> vector<256x8xf32>
    %83 = arith.addf %78, %82 : vector<256x8xf32>
    %c0_51 = arith.constant 0 : index
    %c0_52 = arith.constant 0 : index
    %84 = vector.load %arg21[%c0_51, %c0_52] : memref<1x8xf32, #tpu.memory_space<vmem>>, vector<1x8xf32>
    %85 = vector.broadcast %84 : vector<1x8xf32> to vector<256x8xf32>
    %86 = arith.addf %83, %85 : vector<256x8xf32>
    %87 = math.tanh %86 : vector<256x8xf32>
    %88 = math.tanh %1 : vector<256x30xf32>
    %89 = arith.truncf %88 : vector<256x30xf32> to vector<256x30xbf16>
    %c0_53 = arith.constant 0 : index
    %c0_54 = arith.constant 0 : index
    %90 = vector.load %arg22[%c0_53, %c0_54] : memref<30x128xf32, #tpu.memory_space<vmem>>, vector<30x128xf32>
    %91 = arith.truncf %90 : vector<30x128xf32> to vector<30x128xbf16>
    %cst_55 = arith.constant dense<0.000000e+00> : vector<256x128xf32>
    %92 = tpu.matmul %89, %91, %cst_55 {dimension_numbers = #tpu.dot_dimension_numbers<[1], [0], [0], [1], [0, 0, 1, 1], [], []>} : vector<256x30xbf16>, vector<30x128xbf16>, vector<256x128xf32> -> vector<256x128xf32>
    %93 = math.tanh %87 : vector<256x8xf32>
    %94 = arith.truncf %93 : vector<256x8xf32> to vector<256x8xbf16>
    %c0_56 = arith.constant 0 : index
    %c0_57 = arith.constant 0 : index
    %95 = vector.load %arg23[%c0_56, %c0_57] : memref<8x128xf32, #tpu.memory_space<vmem>>, vector<8x128xf32>
    %96 = arith.truncf %95 : vector<8x128xf32> to vector<8x128xbf16>
    %cst_58 = arith.constant dense<0.000000e+00> : vector<256x128xf32>
    %97 = tpu.matmul %94, %96, %cst_58 {dimension_numbers = #tpu.dot_dimension_numbers<[1], [0], [0], [1], [0, 0, 1, 1], [], []>} : vector<256x8xbf16>, vector<8x128xbf16>, vector<256x128xf32> -> vector<256x128xf32>
    %98 = arith.addf %92, %97 : vector<256x128xf32>
    %c0_59 = arith.constant 0 : index
    %c0_60 = arith.constant 0 : index
    %99 = vector.load %arg24[%c0_59, %c0_60] : memref<1x128xf32, #tpu.memory_space<vmem>>, vector<1x128xf32>
    %100 = vector.broadcast %99 : vector<1x128xf32> to vector<256x128xf32>
    %101 = arith.addf %98, %100 : vector<256x128xf32>
    %c0_61 = arith.constant 0 : index
    %c0_62 = arith.constant 0 : index
    %102 = vector.load %arg25[%c0_61, %c0_62] : memref<256x128xf32, #tpu.memory_space<vmem>>, vector<256x128xf32>
    tpu.vector_store %arg25[%c0_61, %c0_62], %101 {strides = array<i32>} : memref<256x128xf32, #tpu.memory_space<vmem>>, vector<256x128xf32>,
    return
  }
  func.func @transform_0(%arg0: i32) -> (i32, i32) {
    %c0_i32 = arith.constant 0 : i32
    %c0_i32_0 = arith.constant 0 : i32
    return %arg0, %c0_i32 : i32, i32
  }
  func.func @transform_1(%arg0: i32) -> (i32, i32) {
    %c0_i32 = arith.constant 0 : i32
    %c0_i32_0 = arith.constant 0 : i32
    %c0_i32_1 = arith.constant 0 : i32
    return %c0_i32, %c0_i32_0 : i32, i32
  }
  func.func @transform_2(%arg0: i32) -> (i32, i32) {
    %c0_i32 = arith.constant 0 : i32
    %c0_i32_0 = arith.constant 0 : i32
    %c0_i32_1 = arith.constant 0 : i32
    return %c0_i32, %c0_i32_0 : i32, i32
  }
  func.func @transform_3(%arg0: i32) -> (i32, i32) {
    %c0_i32 = arith.constant 0 : i32
    %c0_i32_0 = arith.constant 0 : i32
    %c0_i32_1 = arith.constant 0 : i32
    return %c0_i32, %c0_i32_0 : i32, i32
  }
  func.func @transform_4(%arg0: i32) -> (i32, i32) {
    %c0_i32 = arith.constant 0 : i32
    %c0_i32_0 = arith.constant 0 : i32
    %c0_i32_1 = arith.constant 0 : i32
    return %c0_i32, %c0_i32_0 : i32, i32
  }
  func.func @transform_5(%arg0: i32) -> (i32, i32) {
    %c0_i32 = arith.constant 0 : i32
    %c0_i32_0 = arith.constant 0 : i32
    %c0_i32_1 = arith.constant 0 : i32
    return %c0_i32, %c0_i32_0 : i32, i32
  }
  func.func @transform_6(%arg0: i32) -> (i32, i32) {
    %c0_i32 = arith.constant 0 : i32
    %c0_i32_0 = arith.constant 0 : i32
    %c0_i32_1 = arith.constant 0 : i32
    return %c0_i32, %c0_i32_0 : i32, i32
  }
  func.func @transform_7(%arg0: i32) -> (i32, i32) {
    %c0_i32 = arith.constant 0 : i32
    %c0_i32_0 = arith.constant 0 : i32
    %c0_i32_1 = arith.constant 0 : i32
    return %c0_i32, %c0_i32_0 : i32, i32
  }
  func.func @transform_8(%arg0: i32) -> (i32, i32) {
    %c0_i32 = arith.constant 0 : i32
    %c0_i32_0 = arith.constant 0 : i32
    %c0_i32_1 = arith.constant 0 : i32
    return %c0_i32, %c0_i32_0 : i32, i32
  }
  func.func @transform_9(%arg0: i32) -> (i32, i32) {
    %c0_i32 = arith.constant 0 : i32
    %c0_i32_0 = arith.constant 0 : i32
    %c0_i32_1 = arith.constant 0 : i32
    return %c0_i32, %c0_i32_0 : i32, i32
  }
  func.func @transform_10(%arg0: i32) -> (i32, i32) {
    %c0_i32 = arith.constant 0 : i32
    %c0_i32_0 = arith.constant 0 : i32
    %c0_i32_1 = arith.constant 0 : i32
    return %c0_i32, %c0_i32_0 : i32, i32
  }
  func.func @transform_11(%arg0: i32) -> (i32, i32) {
    %c0_i32 = arith.constant 0 : i32
    %c0_i32_0 = arith.constant 0 : i32
    %c0_i32_1 = arith.constant 0 : i32
    return %c0_i32, %c0_i32_0 : i32, i32
  }
  func.func @transform_12(%arg0: i32) -> (i32, i32) {
    %c0_i32 = arith.constant 0 : i32
    %c0_i32_0 = arith.constant 0 : i32
    %c0_i32_1 = arith.constant 0 : i32
    return %c0_i32, %c0_i32_0 : i32, i32
  }
  func.func @transform_13(%arg0: i32) -> (i32, i32) {
    %c0_i32 = arith.constant 0 : i32
    %c0_i32_0 = arith.constant 0 : i32
    %c0_i32_1 = arith.constant 0 : i32
    return %c0_i32, %c0_i32_0 : i32, i32
  }
  func.func @transform_14(%arg0: i32) -> (i32, i32) {
    %c0_i32 = arith.constant 0 : i32
    %c0_i32_0 = arith.constant 0 : i32
    %c0_i32_1 = arith.constant 0 : i32
    return %c0_i32, %c0_i32_0 : i32, i32
  }
  func.func @transform_15(%arg0: i32) -> (i32, i32) {
    %c0_i32 = arith.constant 0 : i32
    %c0_i32_0 = arith.constant 0 : i32
    %c0_i32_1 = arith.constant 0 : i32
    return %c0_i32, %c0_i32_0 : i32, i32
  }
  func.func @transform_16(%arg0: i32) -> (i32, i32) {
    %c0_i32 = arith.constant 0 : i32
    %c0_i32_0 = arith.constant 0 : i32
    %c0_i32_1 = arith.constant 0 : i32
    return %c0_i32, %c0_i32_0 : i32, i32
  }
  func.func @transform_17(%arg0: i32) -> (i32, i32) {
    %c0_i32 = arith.constant 0 : i32
    %c0_i32_0 = arith.constant 0 : i32
    %c0_i32_1 = arith.constant 0 : i32
    return %c0_i32, %c0_i32_0 : i32, i32
  }
  func.func @transform_18(%arg0: i32) -> (i32, i32) {
    %c0_i32 = arith.constant 0 : i32
    %c0_i32_0 = arith.constant 0 : i32
    %c0_i32_1 = arith.constant 0 : i32
    return %c0_i32, %c0_i32_0 : i32, i32
  }
  func.func @transform_19(%arg0: i32) -> (i32, i32) {
    %c0_i32 = arith.constant 0 : i32
    %c0_i32_0 = arith.constant 0 : i32
    %c0_i32_1 = arith.constant 0 : i32
    return %c0_i32, %c0_i32_0 : i32, i32
  }
  func.func @transform_20(%arg0: i32) -> (i32, i32) {
    %c0_i32 = arith.constant 0 : i32
    %c0_i32_0 = arith.constant 0 : i32
    %c0_i32_1 = arith.constant 0 : i32
    return %c0_i32, %c0_i32_0 : i32, i32
  }
  func.func @transform_21(%arg0: i32) -> (i32, i32) {
    %c0_i32 = arith.constant 0 : i32
    %c0_i32_0 = arith.constant 0 : i32
    %c0_i32_1 = arith.constant 0 : i32
    return %c0_i32, %c0_i32_0 : i32, i32
  }
  func.func @transform_22(%arg0: i32) -> (i32, i32) {
    %c0_i32 = arith.constant 0 : i32
    %c0_i32_0 = arith.constant 0 : i32
    %c0_i32_1 = arith.constant 0 : i32
    return %c0_i32, %c0_i32_0 : i32, i32
  }
  func.func @transform_23(%arg0: i32) -> (i32, i32) {
    %c0_i32 = arith.constant 0 : i32
    %c0_i32_0 = arith.constant 0 : i32
    %c0_i32_1 = arith.constant 0 : i32
    return %c0_i32, %c0_i32_0 : i32, i32
  }
  func.func @transform_24(%arg0: i32) -> (i32, i32) {
    %c0_i32 = arith.constant 0 : i32
    %c0_i32_0 = arith.constant 0 : i32
    return %arg0, %c0_i32 : i32, i32
  }
}

</mosaic_0001>

<llo_original>
// kernel: tpu_custom_call.1
$region0: #{tpu_custom_call.1}
  #allocation0 [shape = 'u32[]', space=smem, size = 0x4, offset = 0x4, fixed_abs, tag = 'smem constant byte address 0x4 - core index']
  #allocation1 [shape = 'u32[144,128]{1,0:T(1,128)}', space=vmem, size = 0x12000, scoped, tag = 'internal scratch']
  %s0 = inlined_call_operand.vmem [shape: f32[1024,40], index: 0, kind: input, shape index: {}]
  %s1 = inlined_call_operand.vmem [shape: f32[40,512], index: 1, kind: input, shape index: {}]
  %s2 = inlined_call_operand.vmem [shape: f32[1,512], index: 2, kind: input, shape index: {}]
  %s3 = inlined_call_operand.vmem [shape: f32[30,256], index: 3, kind: input, shape index: {}]
  %s4 = inlined_call_operand.vmem [shape: f32[512,256], index: 4, kind: input, shape index: {}]
  %s5 = inlined_call_operand.vmem [shape: f32[1,256], index: 5, kind: input, shape index: {}]
  %s6 = inlined_call_operand.vmem [shape: f32[30,128], index: 6, kind: input, shape index: {}]
  %s7 = inlined_call_operand.vmem [shape: f32[256,128], index: 7, kind: input, shape index: {}]
  %s8 = inlined_call_operand.vmem [shape: f32[1,128], index: 8, kind: input, shape index: {}]
  %s9 = inlined_call_operand.vmem [shape: f32[30,64], index: 9, kind: input, shape index: {}]
  %s10 = inlined_call_operand.vmem [shape: f32[128,64], index: 10, kind: input, shape index: {}]
  %s11 = inlined_call_operand.vmem [shape: f32[1,64], index: 11, kind: input, shape index: {}]
  %s12 = inlined_call_operand.vmem [shape: f32[30,32], index: 12, kind: input, shape index: {}]
  %s13 = inlined_call_operand.vmem [shape: f32[64,32], index: 13, kind: input, shape index: {}]
  %s14 = inlined_call_operand.vmem [shape: f32[1,32], index: 14, kind: input, shape index: {}]
  %s15 = inlined_call_operand.vmem [shape: f32[30,16], index: 15, kind: input, shape index: {}]
  %s16 = inlined_call_operand.vmem [shape: f32[32,16], index: 16, kind: input, shape index: {}]
  %s17 = inlined_call_operand.vmem [shape: f32[1,16], index: 17, kind: input, shape index: {}]
  %s18 = inlined_call_operand.vmem [shape: f32[30,8], index: 18, kind: input, shape index: {}]
  %s19 = inlined_call_operand.vmem [shape: f32[16,8], index: 19, kind: input, shape index: {}]
  %s20 = inlined_call_operand.vmem [shape: f32[1,8], index: 20, kind: input, shape index: {}]
  %s21 = inlined_call_operand.vmem [shape: f32[30,128], index: 21, kind: input, shape index: {}]
  %s22 = inlined_call_operand.vmem [shape: f32[8,128], index: 22, kind: input, shape index: {}]
  %s23 = inlined_call_operand.vmem [shape: f32[1,128], index: 23, kind: input, shape index: {}]
  %s24 = inlined_call_operand.hbm [shape: f32[1024,128], index: 24, kind: output, shape index: {}]
  %s25 = sld [smem:[#allocation0]]
  $region129: #{tpu_custom_call.1} parent=0
    _
  %s27 = ssub.s32 1, %s25
  %s28 = scalar_select 0, %s27, %s25
  $region1: #{tpu_custom_call.1} parent=0
    #allocation2 [shape = 'u8[262144]{0}', space=vmem, size = 0x40000, scoped, tag = 'output window, operand 0']
    #allocation3 [shape = 's32[2]{0}', space=sflag, size = 0x8, scoped, tag = 'scoped memory for tpu_custom_call.1']
    %29 = vsyncpa [#allocation3], 0
    %s30 = scalar_lea.sflag [#allocation3], 1
    %31 = vsyncpa %s30, 0
    loop: start=0, step=1, limit=6
    $region2: #{tpu_custom_call.1} parent=1 // loop_pre_header
      _
    $region3: #{tpu_custom_call.1} parent=1 // loop_header
      %s33 = sphi 0, %s37
      %p34 = scmp.ge.s32.totalorder %s33, 6
      %s43 = sphi 0, %s45
      %s46 = sphi 0, %s43
      %s47 = sphi 0, %s46
      %s63 = sphi 0, %s47
      %s67 = sphi 0, %s67
      %s69 = sphi 0, %s67
      %s70 = sphi 0, %s69
      %s84 = sphi 0, %s70
      %s88 = sphi 0, %s88
      %s90 = sphi 0, %s88
      %s91 = sphi 0, %s90
      %s105 = sphi 0, %s91
      %s109 = sphi 0, %s109
      %s111 = sphi 0, %s109
      %s112 = sphi 0, %s111
      %s126 = sphi 0, %s112
      %s130 = sphi 0, %s130
      %s132 = sphi 0, %s130
      %s133 = sphi 0, %s132
      %s147 = sphi 0, %s133
      %s151 = sphi 0, %s151
      %s153 = sphi 0, %s151
      %s154 = sphi 0, %s153
      %s168 = sphi 0, %s154
      %s172 = sphi 0, %s172
      %s174 = sphi 0, %s172
      %s175 = sphi 0, %s174
      %s189 = sphi 0, %s175
      %s193 = sphi 0, %s193
      %s195 = sphi 0, %s193
      %s196 = sphi 0, %s195
      %s210 = sphi 0, %s196
      %s214 = sphi 0, %s214
      %s216 = sphi 0, %s214
      %s217 = sphi 0, %s216
      %s231 = sphi 0, %s217
      %s235 = sphi 0, %s235
      %s237 = sphi 0, %s235
      %s238 = sphi 0, %s237
      %s252 = sphi 0, %s238
      %s256 = sphi 0, %s256
      %s258 = sphi 0, %s256
      %s259 = sphi 0, %s258
      %s273 = sphi 0, %s259
      %s277 = sphi 0, %s277
      %s279 = sphi 0, %s277
      %s280 = sphi 0, %s279
      %s294 = sphi 0, %s280
      %s298 = sphi 0, %s298
      %s300 = sphi 0, %s298
      %s301 = sphi 0, %s300
      %s315 = sphi 0, %s301
      %s319 = sphi 0, %s319
      %s321 = sphi 0, %s319
      %s322 = sphi 0, %s321
      %s336 = sphi 0, %s322
      %s340 = sphi 0, %s340
      %s342 = sphi 0, %s340
      %s343 = sphi 0, %s342
      %s357 = sphi 0, %s343
      %s361 = sphi 0, %s361
      %s363 = sphi 0, %s361
      %s364 = sphi 0, %s363
      %s378 = sphi 0, %s364
      %s382 = sphi 0, %s382
      %s384 = sphi 0, %s382
      %s385 = sphi 0, %s384
      %s399 = sphi 0, %s385
      %s403 = sphi 0, %s403
      %s405 = sphi 0, %s403
      %s406 = sphi 0, %s405
      %s420 = sphi 0, %s406
      %s424 = sphi 0, %s424
      %s426 = sphi 0, %s424
      %s427 = sphi 0, %s426
      %s441 = sphi 0, %s427
      %s445 = sphi 0, %s445
      %s447 = sphi 0, %s445
      %s448 = sphi 0, %s447
      %s462 = sphi 0, %s448
      %s466 = sphi 0, %s466
      %s468 = sphi 0, %s466
      %s469 = sphi 0, %s468
      %s483 = sphi 0, %s469
      %s487 = sphi 0, %s487
      %s489 = sphi 0, %s487
      %s490 = sphi 0, %s489
      %s504 = sphi 0, %s490
      %s508 = sphi 0, %s508
      %s510 = sphi 0, %s508
      %s511 = sphi 0, %s510
      %s525 = sphi 0, %s511
      %s529 = sphi 0, %s529
      %s531 = sphi 0, %s529
      %s532 = sphi 0, %s531
      %s546 = sphi 0, %s532
      %s552 = sphi 0, %s554
      %s555 = sphi 0, %s552
      %s556 = sphi 0, %s555
      %s572 = sphi 0, %s556
    $region4: #{tpu_custom_call.1} parent=1 // loop_header_branch
      %36 = sbr.rel (%p34) target = $region8
    $region5: #{tpu_custom_call.1} parent=1 // loop_body
      %s38 = ssub.s32 %s33, 1
      %s39 = ssub.s32 %s33, 2
      %s40 = sadd.s32 %s33, 1
      %s41 = ssub.s32 %s33, %s40
      %p42 = scmp.eq.s32.totalorder %s41, 0
      %s44 = sadd.s32 %s43, 1
      %s45 = scalar_select %p42, %s43, %s44
      %p48 = pneg %p42
      %p49 = scmp.eq.s32.totalorder %s33, 3
      %p50 = por %p48, %p49
      %p51 = scmp.ne.s32.totalorder %s43, %s46
      %p52 = scmp.eq.s32.totalorder %s33, 0
      %p53 = por %p51, %p52
      %p54 = scmp.ne.s32.totalorder %s43, %s46
      %p55 = scmp.eq.s32.totalorder %s38, 3
      %p56 = por %p54, %p55
      %p57 = scmp.ne.s32.totalorder %s46, %s47
      %p58 = scmp.eq.s32.totalorder %s38, 0
      %p59 = por %p57, %p58
      %p60 = scmp.ne.s32.totalorder %s46, %s47
      %p61 = scmp.eq.s32.totalorder %s39, 3
      %p62 = por %p60, %p61
      %p64 = scmp.ne.s32.totalorder %s47, %s63
      %p65 = scmp.eq.s32.totalorder %s39, 0
      %p66 = por %p64, %p65
      %s68 = sadd.s32 %s67, 1
      %p71 = scmp.eq.s32.totalorder %s33, 3
      %p72 = scmp.ne.s32.totalorder %s67, %s69
      %p73 = scmp.eq.s32.totalorder %s33, 0
      %p74 = por %p72, %p73
      %p75 = scmp.ne.s32.totalorder %s67, %s69
      %p76 = scmp.eq.s32.totalorder %s38, 3
      %p77 = por %p75, %p76
      %p78 = scmp.ne.s32.totalorder %s69, %s70
      %p79 = scmp.eq.s32.totalorder %s38, 0
      %p80 = por %p78, %p79
      %p81 = scmp.ne.s32.totalorder %s69, %s70
      %p82 = scmp.eq.s32.totalorder %s39, 3
      %p83 = por %p81, %p82
      %p85 = scmp.ne.s32.totalorder %s70, %s84
      %p86 = scmp.eq.s32.totalorder %s39, 0
      %p87 = por %p85, %p86
      %s89 = sadd.s32 %s88, 1
      %p92 = scmp.eq.s32.totalorder %s33, 3
      %p93 = scmp.ne.s32.totalorder %s88, %s90
      %p94 = scmp.eq.s32.totalorder %s33, 0
      %p95 = por %p93, %p94
      %p96 = scmp.ne.s32.totalorder %s88, %s90
      %p97 = scmp.eq.s32.totalorder %s38, 3
      %p98 = por %p96, %p97
      %p99 = scmp.ne.s32.totalorder %s90, %s91
      %p100 = scmp.eq.s32.totalorder %s38, 0
      %p101 = por %p99, %p100
      %p102 = scmp.ne.s32.totalorder %s90, %s91
      %p103 = scmp.eq.s32.totalorder %s39, 3
      %p104 = por %p102, %p103
      %p106 = scmp.ne.s32.totalorder %s91, %s105
      %p107 = scmp.eq.s32.totalorder %s39, 0
      %p108 = por %p106, %p107
      %s110 = sadd.s32 %s109, 1
      %p113 = scmp.eq.s32.totalorder %s33, 3
      %p114 = scmp.ne.s32.totalorder %s109, %s111
      %p115 = scmp.eq.s32.totalorder %s33, 0
      %p116 = por %p114, %p115
      %p117 = scmp.ne.s32.totalorder %s109, %s111
      %p118 = scmp.eq.s32.totalorder %s38, 3
      %p119 = por %p117, %p118
      %p120 = scmp.ne.s32.totalorder %s111, %s112
      %p121 = scmp.eq.s32.totalorder %s38, 0
      %p122 = por %p120, %p121
      %p123 = scmp.ne.s32.totalorder %s111, %s112
      %p124 = scmp.eq.s32.totalorder %s39, 3
      %p125 = por %p123, %p124
      %p127 = scmp.ne.s32.totalorder %s112, %s126
      %p128 = scmp.eq.s32.totalorder %s39, 0
      %p129 = por %p127, %p128
      %s131 = sadd.s32 %s130, 1
      %p134 = scmp.eq.s32.totalorder %s33, 3
      %p135 = scmp.ne.s32.totalorder %s130, %s132
      %p136 = scmp.eq.s32.totalorder %s33, 0
      %p137 = por %p135, %p136
      %p138 = scmp.ne.s32.totalorder %s130, %s132
      %p139 = scmp.eq.s32.totalorder %s38, 3
      %p140 = por %p138, %p139
      %p141 = scmp.ne.s32.totalorder %s132, %s133
      %p142 = scmp.eq.s32.totalorder %s38, 0
      %p143 = por %p141, %p142
      %p144 = scmp.ne.s32.totalorder %s132, %s133
      %p145 = scmp.eq.s32.totalorder %s39, 3
      %p146 = por %p144, %p145
      %p148 = scmp.ne.s32.totalorder %s133, %s147
      %p149 = scmp.eq.s32.totalorder %s39, 0
      %p150 = por %p148, %p149
      %s152 = sadd.s32 %s151, 1
      %p155 = scmp.eq.s32.totalorder %s33, 3
      %p156 = scmp.ne.s32.totalorder %s151, %s153
      %p157 = scmp.eq.s32.totalorder %s33, 0
      %p158 = por %p156, %p157
      %p159 = scmp.ne.s32.totalorder %s151, %s153
      %p160 = scmp.eq.s32.totalorder %s38, 3
      %p161 = por %p159, %p160
      %p162 = scmp.ne.s32.totalorder %s153, %s154
      %p163 = scmp.eq.s32.totalorder %s38, 0
      %p164 = por %p162, %p163
      %p165 = scmp.ne.s32.totalorder %s153, %s154
      %p166 = scmp.eq.s32.totalorder %s39, 3
      %p167 = por %p165, %p166
      %p169 = scmp.ne.s32.totalorder %s154, %s168
      %p170 = scmp.eq.s32.totalorder %s39, 0
      %p171 = por %p169, %p170
      %s173 = sadd.s32 %s172, 1
      %p176 = scmp.eq.s32.totalorder %s33, 3
      %p177 = scmp.ne.s32.totalorder %s172, %s174
      %p178 = scmp.eq.s32.totalorder %s33, 0
      %p179 = por %p177, %p178
      %p180 = scmp.ne.s32.totalorder %s172, %s174
      %p181 = scmp.eq.s32.totalorder %s38, 3
      %p182 = por %p180, %p181
      %p183 = scmp.ne.s32.totalorder %s174, %s175
      %p184 = scmp.eq.s32.totalorder %s38, 0
      %p185 = por %p183, %p184
      %p186 = scmp.ne.s32.totalorder %s174, %s175
      %p187 = scmp.eq.s32.totalorder %s39, 3
      %p188 = por %p186, %p187
      %p190 = scmp.ne.s32.totalorder %s175, %s189
      %p191 = scmp.eq.s32.totalorder %s39, 0
      %p192 = por %p190, %p191
      %s194 = sadd.s32 %s193, 1
      %p197 = scmp.eq.s32.totalorder %s33, 3
      %p198 = scmp.ne.s32.totalorder %s193, %s195
      %p199 = scmp.eq.s32.totalorder %s33, 0
      %p200 = por %p198, %p199
      %p201 = scmp.ne.s32.totalorder %s193, %s195
      %p202 = scmp.eq.s32.totalorder %s38, 3
      %p203 = por %p201, %p202
      %p204 = scmp.ne.s32.totalorder %s195, %s196
      %p205 = scmp.eq.s32.totalorder %s38, 0
      %p206 = por %p204, %p205
      %p207 = scmp.ne.s32.totalorder %s195, %s196
      %p208 = scmp.eq.s32.totalorder %s39, 3
      %p209 = por %p207, %p208
      %p211 = scmp.ne.s32.totalorder %s196, %s210
      %p212 = scmp.eq.s32.totalorder %s39, 0
      %p213 = por %p211, %p212
      %s215 = sadd.s32 %s214, 1
      %p218 = scmp.eq.s32.totalorder %s33, 3
      %p219 = scmp.ne.s32.totalorder %s214, %s216
      %p220 = scmp.eq.s32.totalorder %s33, 0
      %p221 = por %p219, %p220
      %p222 = scmp.ne.s32.totalorder %s214, %s216
      %p223 = scmp.eq.s32.totalorder %s38, 3
      %p224 = por %p222, %p223
      %p225 = scmp.ne.s32.totalorder %s216, %s217
      %p226 = scmp.eq.s32.totalorder %s38, 0
      %p227 = por %p225, %p226
      %p228 = scmp.ne.s32.totalorder %s216, %s217
      %p229 = scmp.eq.s32.totalorder %s39, 3
      %p230 = por %p228, %p229
      %p232 = scmp.ne.s32.totalorder %s217, %s231
      %p233 = scmp.eq.s32.totalorder %s39, 0
      %p234 = por %p232, %p233
      %s236 = sadd.s32 %s235, 1
      %p239 = scmp.eq.s32.totalorder %s33, 3
      %p240 = scmp.ne.s32.totalorder %s235, %s237
      %p241 = scmp.eq.s32.totalorder %s33, 0
      %p242 = por %p240, %p241
      %p243 = scmp.ne.s32.totalorder %s235, %s237
      %p244 = scmp.eq.s32.totalorder %s38, 3
      %p245 = por %p243, %p244
      %p246 = scmp.ne.s32.totalorder %s237, %s238
      %p247 = scmp.eq.s32.totalorder %s38, 0
      %p248 = por %p246, %p247
      %p249 = scmp.ne.s32.totalorder %s237, %s238
      %p250 = scmp.eq.s32.totalorder %s39, 3
      %p251 = por %p249, %p250
      %p253 = scmp.ne.s32.totalorder %s238, %s252
      %p254 = scmp.eq.s32.totalorder %s39, 0
      %p255 = por %p253, %p254
      %s257 = sadd.s32 %s256, 1
      %p260 = scmp.eq.s32.totalorder %s33, 3
      %p261 = scmp.ne.s32.totalorder %s256, %s258
      %p262 = scmp.eq.s32.totalorder %s33, 0
      %p263 = por %p261, %p262
      %p264 = scmp.ne.s32.totalorder %s256, %s258
      %p265 = scmp.eq.s32.totalorder %s38, 3
      %p266 = por %p264, %p265
      %p267 = scmp.ne.s32.totalorder %s258, %s259
      %p268 = scmp.eq.s32.totalorder %s38, 0
      %p269 = por %p267, %p268
      %p270 = scmp.ne.s32.totalorder %s258, %s259
      %p271 = scmp.eq.s32.totalorder %s39, 3
      %p272 = por %p270, %p271
      %p274 = scmp.ne.s32.totalorder %s259, %s273
      %p275 = scmp.eq.s32.totalorder %s39, 0
      %p276 = por %p274, %p275
      %s278 = sadd.s32 %s277, 1
      %p281 = scmp.eq.s32.totalorder %s33, 3
      %p282 = scmp.ne.s32.totalorder %s277, %s279
      %p283 = scmp.eq.s32.totalorder %s33, 0
      %p284 = por %p282, %p283
      %p285 = scmp.ne.s32.totalorder %s277, %s279
      %p286 = scmp.eq.s32.totalorder %s38, 3
      %p287 = por %p285, %p286
      %p288 = scmp.ne.s32.totalorder %s279, %s280
      %p289 = scmp.eq.s32.totalorder %s38, 0
      %p290 = por %p288, %p289
      %p291 = scmp.ne.s32.totalorder %s279, %s280
      %p292 = scmp.eq.s32.totalorder %s39, 3
      %p293 = por %p291, %p292
      %p295 = scmp.ne.s32.totalorder %s280, %s294
      %p296 = scmp.eq.s32.totalorder %s39, 0
      %p297 = por %p295, %p296
      %s299 = sadd.s32 %s298, 1
      %p302 = scmp.eq.s32.totalorder %s33, 3
      %p303 = scmp.ne.s32.totalorder %s298, %s300
      %p304 = scmp.eq.s32.totalorder %s33, 0
      %p305 = por %p303, %p304
      %p306 = scmp.ne.s32.totalorder %s298, %s300
      %p307 = scmp.eq.s32.totalorder %s38, 3
      %p308 = por %p306, %p307
      %p309 = scmp.ne.s32.totalorder %s300, %s301
      %p310 = scmp.eq.s32.totalorder %s38, 0
      %p311 = por %p309, %p310
      %p312 = scmp.ne.s32.totalorder %s300, %s301
      %p313 = scmp.eq.s32.totalorder %s39, 3
      %p314 = por %p312, %p313
      %p316 = scmp.ne.s32.totalorder %s301, %s315
      %p317 = scmp.eq.s32.totalorder %s39, 0
      %p318 = por %p316, %p317
      %s320 = sadd.s32 %s319, 1
      %p323 = scmp.eq.s32.totalorder %s33, 3
      %p324 = scmp.ne.s32.totalorder %s319, %s321
      %p325 = scmp.eq.s32.totalorder %s33, 0
      %p326 = por %p324, %p325
      %p327 = scmp.ne.s32.totalorder %s319, %s321
      %p328 = scmp.eq.s32.totalorder %s38, 3
      %p329 = por %p327, %p328
      %p330 = scmp.ne.s32.totalorder %s321, %s322
      %p331 = scmp.eq.s32.totalorder %s38, 0
      %p332 = por %p330, %p331
      %p333 = scmp.ne.s32.totalorder %s321, %s322
      %p334 = scmp.eq.s32.totalorder %s39, 3
      %p335 = por %p333, %p334
      %p337 = scmp.ne.s32.totalorder %s322, %s336
      %p338 = scmp.eq.s32.totalorder %s39, 0
      %p339 = por %p337, %p338
      %s341 = sadd.s32 %s340, 1
      %p344 = scmp.eq.s32.totalorder %s33, 3
      %p345 = scmp.ne.s32.totalorder %s340, %s342
      %p346 = scmp.eq.s32.totalorder %s33, 0
      %p347 = por %p345, %p346
      %p348 = scmp.ne.s32.totalorder %s340, %s342
      %p349 = scmp.eq.s32.totalorder %s38, 3
      %p350 = por %p348, %p349
      %p351 = scmp.ne.s32.totalorder %s342, %s343
      %p352 = scmp.eq.s32.totalorder %s38, 0
      %p353 = por %p351, %p352
      %p354 = scmp.ne.s32.totalorder %s342, %s343
      %p355 = scmp.eq.s32.totalorder %s39, 3
      %p356 = por %p354, %p355
      %p358 = scmp.ne.s32.totalorder %s343, %s357
      %p359 = scmp.eq.s32.totalorder %s39, 0
      %p360 = por %p358, %p359
      %s362 = sadd.s32 %s361, 1
      %p365 = scmp.eq.s32.totalorder %s33, 3
      %p366 = scmp.ne.s32.totalorder %s361, %s363
      %p367 = scmp.eq.s32.totalorder %s33, 0
      %p368 = por %p366, %p367
      %p369 = scmp.ne.s32.totalorder %s361, %s363
      %p370 = scmp.eq.s32.totalorder %s38, 3
      %p371 = por %p369, %p370
      %p372 = scmp.ne.s32.totalorder %s363, %s364
      %p373 = scmp.eq.s32.totalorder %s38, 0
      %p374 = por %p372, %p373
      %p375 = scmp.ne.s32.totalorder %s363, %s364
      %p376 = scmp.eq.s32.totalorder %s39, 3
      %p377 = por %p375, %p376
      %p379 = scmp.ne.s32.totalorder %s364, %s378
      %p380 = scmp.eq.s32.totalorder %s39, 0
      %p381 = por %p379, %p380
      %s383 = sadd.s32 %s382, 1
      %p386 = scmp.eq.s32.totalorder %s33, 3
      %p387 = scmp.ne.s32.totalorder %s382, %s384
      %p388 = scmp.eq.s32.totalorder %s33, 0
      %p389 = por %p387, %p388
      %p390 = scmp.ne.s32.totalorder %s382, %s384
      %p391 = scmp.eq.s32.totalorder %s38, 3
      %p392 = por %p390, %p391
      %p393 = scmp.ne.s32.totalorder %s384, %s385
      %p394 = scmp.eq.s32.totalorder %s38, 0
      %p395 = por %p393, %p394
      %p396 = scmp.ne.s32.totalorder %s384, %s385
      %p397 = scmp.eq.s32.totalorder %s39, 3
      %p398 = por %p396, %p397
      %p400 = scmp.ne.s32.totalorder %s385, %s399
      %p401 = scmp.eq.s32.totalorder %s39, 0
      %p402 = por %p400, %p401
      %s404 = sadd.s32 %s403, 1
      %p407 = scmp.eq.s32.totalorder %s33, 3
      %p408 = scmp.ne.s32.totalorder %s403, %s405
      %p409 = scmp.eq.s32.totalorder %s33, 0
      %p410 = por %p408, %p409
      %p411 = scmp.ne.s32.totalorder %s403, %s405
      %p412 = scmp.eq.s32.totalorder %s38, 3
      %p413 = por %p411, %p412
      %p414 = scmp.ne.s32.totalorder %s405, %s406
      %p415 = scmp.eq.s32.totalorder %s38, 0
      %p416 = por %p414, %p415
      %p417 = scmp.ne.s32.totalorder %s405, %s406
      %p418 = scmp.eq.s32.totalorder %s39, 3
      %p419 = por %p417, %p418
      %p421 = scmp.ne.s32.totalorder %s406, %s420
      %p422 = scmp.eq.s32.totalorder %s39, 0
      %p423 = por %p421, %p422
      %s425 = sadd.s32 %s424, 1
      %p428 = scmp.eq.s32.totalorder %s33, 3
      %p429 = scmp.ne.s32.totalorder %s424, %s426
      %p430 = scmp.eq.s32.totalorder %s33, 0
      %p431 = por %p429, %p430
      %p432 = scmp.ne.s32.totalorder %s424, %s426
      %p433 = scmp.eq.s32.totalorder %s38, 3
      %p434 = por %p432, %p433
      %p435 = scmp.ne.s32.totalorder %s426, %s427
      %p436 = scmp.eq.s32.totalorder %s38, 0
      %p437 = por %p435, %p436
      %p438 = scmp.ne.s32.totalorder %s426, %s427
      %p439 = scmp.eq.s32.totalorder %s39, 3
      %p440 = por %p438, %p439
      %p442 = scmp.ne.s32.totalorder %s427, %s441
      %p443 = scmp.eq.s32.totalorder %s39, 0
      %p444 = por %p442, %p443
      %s446 = sadd.s32 %s445, 1
      %p449 = scmp.eq.s32.totalorder %s33, 3
      %p450 = scmp.ne.s32.totalorder %s445, %s447
      %p451 = scmp.eq.s32.totalorder %s33, 0
      %p452 = por %p450, %p451
      %p453 = scmp.ne.s32.totalorder %s445, %s447
      %p454 = scmp.eq.s32.totalorder %s38, 3
      %p455 = por %p453, %p454
      %p456 = scmp.ne.s32.totalorder %s447, %s448
      %p457 = scmp.eq.s32.totalorder %s38, 0
      %p458 = por %p456, %p457
      %p459 = scmp.ne.s32.totalorder %s447, %s448
      %p460 = scmp.eq.s32.totalorder %s39, 3
      %p461 = por %p459, %p460
      %p463 = scmp.ne.s32.totalorder %s448, %s462
      %p464 = scmp.eq.s32.totalorder %s39, 0
      %p465 = por %p463, %p464
      %s467 = sadd.s32 %s466, 1
      %p470 = scmp.eq.s32.totalorder %s33, 3
      %p471 = scmp.ne.s32.totalorder %s466, %s468
      %p472 = scmp.eq.s32.totalorder %s33, 0
      %p473 = por %p471, %p472
      %p474 = scmp.ne.s32.totalorder %s466, %s468
      %p475 = scmp.eq.s32.totalorder %s38, 3
      %p476 = por %p474, %p475
      %p477 = scmp.ne.s32.totalorder %s468, %s469
      %p478 = scmp.eq.s32.totalorder %s38, 0
      %p479 = por %p477, %p478
      %p480 = scmp.ne.s32.totalorder %s468, %s469
      %p481 = scmp.eq.s32.totalorder %s39, 3
      %p482 = por %p480, %p481
      %p484 = scmp.ne.s32.totalorder %s469, %s483
      %p485 = scmp.eq.s32.totalorder %s39, 0
      %p486 = por %p484, %p485
      %s488 = sadd.s32 %s487, 1
      %p491 = scmp.eq.s32.totalorder %s33, 3
      %p492 = scmp.ne.s32.totalorder %s487, %s489
      %p493 = scmp.eq.s32.totalorder %s33, 0
      %p494 = por %p492, %p493
      %p495 = scmp.ne.s32.totalorder %s487, %s489
      %p496 = scmp.eq.s32.totalorder %s38, 3
      %p497 = por %p495, %p496
      %p498 = scmp.ne.s32.totalorder %s489, %s490
      %p499 = scmp.eq.s32.totalorder %s38, 0
      %p500 = por %p498, %p499
      %p501 = scmp.ne.s32.totalorder %s489, %s490
      %p502 = scmp.eq.s32.totalorder %s39, 3
      %p503 = por %p501, %p502
      %p505 = scmp.ne.s32.totalorder %s490, %s504
      %p506 = scmp.eq.s32.totalorder %s39, 0
      %p507 = por %p505, %p506
      %s509 = sadd.s32 %s508, 1
      %p512 = scmp.eq.s32.totalorder %s33, 3
      %p513 = scmp.ne.s32.totalorder %s508, %s510
      %p514 = scmp.eq.s32.totalorder %s33, 0
      %p515 = por %p513, %p514
      %p516 = scmp.ne.s32.totalorder %s508, %s510
      %p517 = scmp.eq.s32.totalorder %s38, 3
      %p518 = por %p516, %p517
      %p519 = scmp.ne.s32.totalorder %s510, %s511
      %p520 = scmp.eq.s32.totalorder %s38, 0
      %p521 = por %p519, %p520
      %p522 = scmp.ne.s32.totalorder %s510, %s511
      %p523 = scmp.eq.s32.totalorder %s39, 3
      %p524 = por %p522, %p523
      %p526 = scmp.ne.s32.totalorder %s511, %s525
      %p527 = scmp.eq.s32.totalorder %s39, 0
      %p528 = por %p526, %p527
      %s530 = sadd.s32 %s529, 1
      %p533 = scmp.eq.s32.totalorder %s33, 3
      %p534 = scmp.ne.s32.totalorder %s529, %s531
      %p535 = scmp.eq.s32.totalorder %s33, 0
      %p536 = por %p534, %p535
      %p537 = scmp.ne.s32.totalorder %s529, %s531
      %p538 = scmp.eq.s32.totalorder %s38, 3
      %p539 = por %p537, %p538
      %p540 = scmp.ne.s32.totalorder %s531, %s532
      %p541 = scmp.eq.s32.totalorder %s38, 0
      %p542 = por %p540, %p541
      %p543 = scmp.ne.s32.totalorder %s531, %s532
      %p544 = scmp.eq.s32.totalorder %s39, 3
      %p545 = por %p543, %p544
      %p547 = scmp.ne.s32.totalorder %s532, %s546
      %p548 = scmp.eq.s32.totalorder %s39, 0
      %p549 = por %p547, %p548
      %s550 = ssub.s32 %s33, %s40
      %p551 = scmp.eq.s32.totalorder %s550, 0
      %s553 = sadd.s32 %s552, 1
      %s554 = scalar_select %p551, %s552, %s553
      %p557 = pneg %p551
      %p558 = scmp.eq.s32.totalorder %s33, 3
      %p559 = por %p557, %p558
      %p560 = scmp.ne.s32.totalorder %s552, %s555
      %p561 = scmp.eq.s32.totalorder %s33, 0
      %p562 = por %p560, %p561
      %p563 = scmp.ne.s32.totalorder %s552, %s555
      %p564 = scmp.eq.s32.totalorder %s38, 3
      %p565 = por %p563, %p564
      %p566 = scmp.ne.s32.totalorder %s555, %s556
      %p567 = scmp.eq.s32.totalorder %s38, 0
      %p568 = por %p566, %p567
      %p569 = scmp.ne.s32.totalorder %s555, %s556
      %p570 = scmp.eq.s32.totalorder %s39, 3
      %p571 = por %p569, %p570
      %p573 = scmp.ne.s32.totalorder %s556, %s572
      %p574 = scmp.eq.s32.totalorder %s39, 0
      %p575 = por %p573, %p574
      %p576 = scmp.le.s32.totalorder 1, %s33
      %p577 = scmp.lt.s32.totalorder %s33, 5
      %p578 = pnand %p576, %p577
      %p579 = pneg %p578
      // Predicated region
      $region9: #{tpu_custom_call.1} parent=5 // pred_check
        _
      $region10: #{tpu_custom_call.1} parent=5 // pred_check_branch
        %581 = sbr.rel (%p578) target = $region12
      $region11: #{tpu_custom_call.1} parent=5 // pred_region
        %s582 = ssub.s32 %s33, 1
        // Predicated region
        $region13: #{tpu_custom_call.1} parent=11 // pred_check
          %p583 = pneg %p80
        $region14: #{tpu_custom_call.1} parent=11 // pred_check_branch
          %585 = sbr.rel (%p583) target = $region16
        $region15: #{tpu_custom_call.1} parent=11 // pred_region
          _
        $region16: #{tpu_custom_call.1} parent=11 // pred_fallthru
          _
        // Predicated region
        $region17: #{tpu_custom_call.1} parent=11 // pred_check
          %p586 = pneg %p101
        $region18: #{tpu_custom_call.1} parent=11 // pred_check_branch
          %588 = sbr.rel (%p586) target = $region20
        $region19: #{tpu_custom_call.1} parent=11 // pred_region
          _
        $region20: #{tpu_custom_call.1} parent=11 // pred_fallthru
          _
        // Predicated region
        $region21: #{tpu_custom_call.1} parent=11 // pred_check
          %p589 = pneg %p122
        $region22: #{tpu_custom_call.1} parent=11 // pred_check_branch
          %591 = sbr.rel (%p589) target = $region24
        $region23: #{tpu_custom_call.1} parent=11 // pred_region
          _
        $region24: #{tpu_custom_call.1} parent=11 // pred_fallthru
          _
        // Predicated region
        $region25: #{tpu_custom_call.1} parent=11 // pred_check
          %p592 = pneg %p143
        $region26: #{tpu_custom_call.1} parent=11 // pred_check_branch
          %594 = sbr.rel (%p592) target = $region28
        $region27: #{tpu_custom_call.1} parent=11 // pred_region
          _
        $region28: #{tpu_custom_call.1} parent=11 // pred_fallthru
          _
        // Predicated region
        $region29: #{tpu_custom_call.1} parent=11 // pred_check
          %p595 = pneg %p164
        $region30: #{tpu_custom_call.1} parent=11 // pred_check_branch
          %597 = sbr.rel (%p595) target = $region32
        $region31: #{tpu_custom_call.1} parent=11 // pred_region
          _
        $region32: #{tpu_custom_call.1} parent=11 // pred_fallthru
          _
        // Predicated region
        $region33: #{tpu_custom_call.1} parent=11 // pred_check
          %p598 = pneg %p185
        $region34: #{tpu_custom_call.1} parent=11 // pred_check_branch
          %600 = sbr.rel (%p598) target = $region36
        $region35: #{tpu_custom_call.1} parent=11 // pred_region
          _
        $region36: #{tpu_custom_call.1} parent=11 // pred_fallthru
          _
        // Predicated region
        $region37: #{tpu_custom_call.1} parent=11 // pred_check
          %p601 = pneg %p206
        $region38: #{tpu_custom_call.1} parent=11 // pred_check_branch
          %603 = sbr.rel (%p601) target = $region40
        $region39: #{tpu_custom_call.1} parent=11 // pred_region
          _
        $region40: #{tpu_custom_call.1} parent=11 // pred_fallthru
          _
        // Predicated region
        $region41: #{tpu_custom_call.1} parent=11 // pred_check
          %p604 = pneg %p227
        $region42: #{tpu_custom_call.1} parent=11 // pred_check_branch
          %606 = sbr.rel (%p604) target = $region44
        $region43: #{tpu_custom_call.1} parent=11 // pred_region
          _
        $region44: #{tpu_custom_call.1} parent=11 // pred_fallthru
          _
        // Predicated region
        $region45: #{tpu_custom_call.1} parent=11 // pred_check
          %p607 = pneg %p248
        $region46: #{tpu_custom_call.1} parent=11 // pred_check_branch
          %609 = sbr.rel (%p607) target = $region48
        $region47: #{tpu_custom_call.1} parent=11 // pred_region
          _
        $region48: #{tpu_custom_call.1} parent=11 // pred_fallthru
          _
        // Predicated region
        $region49: #{tpu_custom_call.1} parent=11 // pred_check
          %p610 = pneg %p269
        $region50: #{tpu_custom_call.1} parent=11 // pred_check_branch
          %612 = sbr.rel (%p610) target = $region52
        $region51: #{tpu_custom_call.1} parent=11 // pred_region
          _
        $region52: #{tpu_custom_call.1} parent=11 // pred_fallthru
          _
        // Predicated region
        $region53: #{tpu_custom_call.1} parent=11 // pred_check
          %p613 = pneg %p290
        $region54: #{tpu_custom_call.1} parent=11 // pred_check_branch
          %615 = sbr.rel (%p613) target = $region56
        $region55: #{tpu_custom_call.1} parent=11 // pred_region
          _
        $region56: #{tpu_custom_call.1} parent=11 // pred_fallthru
          _
        // Predicated region
        $region57: #{tpu_custom_call.1} parent=11 // pred_check
          %p616 = pneg %p311
        $region58: #{tpu_custom_call.1} parent=11 // pred_check_branch
          %618 = sbr.rel (%p616) target = $region60
        $region59: #{tpu_custom_call.1} parent=11 // pred_region
          _
        $region60: #{tpu_custom_call.1} parent=11 // pred_fallthru
          _
        // Predicated region
        $region61: #{tpu_custom_call.1} parent=11 // pred_check
          %p619 = pneg %p332
        $region62: #{tpu_custom_call.1} parent=11 // pred_check_branch
          %621 = sbr.rel (%p619) target = $region64
        $region63: #{tpu_custom_call.1} parent=11 // pred_region
          _
        $region64: #{tpu_custom_call.1} parent=11 // pred_fallthru
          _
        // Predicated region
        $region65: #{tpu_custom_call.1} parent=11 // pred_check
          %p622 = pneg %p353
        $region66: #{tpu_custom_call.1} parent=11 // pred_check_branch
          %624 = sbr.rel (%p622) target = $region68
        $region67: #{tpu_custom_call.1} parent=11 // pred_region
          _
        $region68: #{tpu_custom_call.1} parent=11 // pred_fallthru
          _
        // Predicated region
        $region69: #{tpu_custom_call.1} parent=11 // pred_check
          %p625 = pneg %p374
        $region70: #{tpu_custom_call.1} parent=11 // pred_check_branch
          %627 = sbr.rel (%p625) target = $region72
        $region71: #{tpu_custom_call.1} parent=11 // pred_region
          _
        $region72: #{tpu_custom_call.1} parent=11 // pred_fallthru
          _
        // Predicated region
        $region73: #{tpu_custom_call.1} parent=11 // pred_check
          %p628 = pneg %p395
        $region74: #{tpu_custom_call.1} parent=11 // pred_check_branch
          %630 = sbr.rel (%p628) target = $region76
        $region75: #{tpu_custom_call.1} parent=11 // pred_region
          _
        $region76: #{tpu_custom_call.1} parent=11 // pred_fallthru
          _
        // Predicated region
        $region77: #{tpu_custom_call.1} parent=11 // pred_check
          %p631 = pneg %p416
        $region78: #{tpu_custom_call.1} parent=11 // pred_check_branch
          %633 = sbr.rel (%p631) target = $region80
        $region79: #{tpu_custom_call.1} parent=11 // pred_region
          _
        $region80: #{tpu_custom_call.1} parent=11 // pred_fallthru
          _
        // Predicated region
        $region81: #{tpu_custom_call.1} parent=11 // pred_check
          %p634 = pneg %p437
        $region82: #{tpu_custom_call.1} parent=11 // pred_check_branch
          %636 = sbr.rel (%p634) target = $region84
        $region83: #{tpu_custom_call.1} parent=11 // pred_region
          _
        $region84: #{tpu_custom_call.1} parent=11 // pred_fallthru
          _
        // Predicated region
        $region85: #{tpu_custom_call.1} parent=11 // pred_check
          %p637 = pneg %p458
        $region86: #{tpu_custom_call.1} parent=11 // pred_check_branch
          %639 = sbr.rel (%p637) target = $region88
        $region87: #{tpu_custom_call.1} parent=11 // pred_region
          _
        $region88: #{tpu_custom_call.1} parent=11 // pred_fallthru
          _
        // Predicated region
        $region89: #{tpu_custom_call.1} parent=11 // pred_check
          %p640 = pneg %p479
        $region90: #{tpu_custom_call.1} parent=11 // pred_check_branch
          %642 = sbr.rel (%p640) target = $region92
        $region91: #{tpu_custom_call.1} parent=11 // pred_region
          _
        $region92: #{tpu_custom_call.1} parent=11 // pred_fallthru
          _
        // Predicated region
        $region93: #{tpu_custom_call.1} parent=11 // pred_check
          %p643 = pneg %p500
        $region94: #{tpu_custom_call.1} parent=11 // pred_check_branch
          %645 = sbr.rel (%p643) target = $region96
        $region95: #{tpu_custom_call.1} parent=11 // pred_region
          _
        $region96: #{tpu_custom_call.1} parent=11 // pred_fallthru
          _
        // Predicated region
        $region97: #{tpu_custom_call.1} parent=11 // pred_check
          %p646 = pneg %p521
        $region98: #{tpu_custom_call.1} parent=11 // pred_check_branch
          %648 = sbr.rel (%p646) target = $region100
        $region99: #{tpu_custom_call.1} parent=11 // pred_region
          _
        $region100: #{tpu_custom_call.1} parent=11 // pred_fallthru
          _
        // Predicated region
        $region101: #{tpu_custom_call.1} parent=11 // pred_check
          %p649 = pneg %p542
        $region102: #{tpu_custom_call.1} parent=11 // pred_check_branch
          %651 = sbr.rel (%p649) target = $region104
        $region103: #{tpu_custom_call.1} parent=11 // pred_region
          _
        $region104: #{tpu_custom_call.1} parent=11 // pred_fallthru
          _
      $region12: #{tpu_custom_call.1} parent=5 // pred_fallthru
        _
      %p652 = scmp.lt.s32.totalorder %s33, 4
      // Predicated region
      $region105: #{tpu_custom_call.1} parent=5 // pred_check
        %p653 = pneg %p652
      $region106: #{tpu_custom_call.1} parent=5 // pred_check_branch
        %655 = sbr.rel (%p653) target = $region108
      $region107: #{tpu_custom_call.1} parent=5 // pred_region
        // Predicated region
        $region109: #{tpu_custom_call.1} parent=107 // pred_check
          %p656 = pneg %p53
        $region110: #{tpu_custom_call.1} parent=107 // pred_check_branch
          %658 = sbr.rel (%p656) target = $region112
        $region111: #{tpu_custom_call.1} parent=107 // pred_region
          %s659 = smul.u32 32, %s33
          %p660 = scmp.lt.s32.totalorder %s659, 127
          %s661 = scalar_select %p660, %s659, 127
          %s662 = smul.addr %s661, 8
          %s663 = scalar_lea.vmem %s0, %s662
          %s664 = smul.u32 32, %s33
        $region112: #{tpu_custom_call.1} parent=107 // pred_fallthru
          _
      $region108: #{tpu_custom_call.1} parent=5 // pred_fallthru
        _
      %p665 = scmp.le.s32.totalorder 1, %s33
      %p666 = scmp.lt.s32.totalorder %s33, 5
      %p667 = pnand %p665, %p666
      %p668 = pneg %p667
      // Predicated region
      $region113: #{tpu_custom_call.1} parent=5 // pred_check
        _
      $region114: #{tpu_custom_call.1} parent=5 // pred_check_branch
        %670 = sbr.rel (%p667) target = $region116
      $region115: #{tpu_custom_call.1} parent=5 // pred_region
        %s671 = ssub.s32 %s33, 1
        %s672 = smul.u32 32, %s38
        %p673 = scmp.lt.s32.totalorder %s672, 127
        %s674 = scalar_select %p673, %s672, 127
        %s675 = smul.addr %s674, 8
        %s676 = scalar_lea.vmem %s0, %s675
        %p677 = pneg %p59
        %p678 = pneg %p56
        %p679 = pneg %p80
        %p680 = pneg %p77
        %p681 = pneg %p101
        %p682 = pneg %p98
        %p683 = pneg %p122
        %p684 = pneg %p119
        %p685 = pneg %p143
        %p686 = pneg %p140
        %p687 = pneg %p164
        %p688 = pneg %p161
        %p689 = pneg %p185
        %p690 = pneg %p182
        %p691 = pneg %p206
        %p692 = pneg %p203
        %p693 = pneg %p227
        %p694 = pneg %p224
        %p695 = pneg %p248
        %p696 = pneg %p245
        %p697 = pneg %p269
        %p698 = pneg %p266
        %p699 = pneg %p290
        %p700 = pneg %p287
        %p701 = pneg %p311
        %p702 = pneg %p308
        %p703 = pneg %p332
        %p704 = pneg %p329
        %p705 = pneg %p353
        %p706 = pneg %p350
        %p707 = pneg %p374
        %p708 = pneg %p371
        %p709 = pneg %p395
        %p710 = pneg %p392
        %p711 = pneg %p416
        %p712 = pneg %p413
        %p713 = pneg %p437
        %p714 = pneg %p434
        %p715 = pneg %p458
        %p716 = pneg %p455
        %p717 = pneg %p479
        %p718 = pneg %p476
        %p719 = pneg %p500
        %p720 = pneg %p497
        %p721 = pneg %p521
        %p722 = pneg %p518
        %p723 = pneg %p542
        %p724 = pneg %p539
        %p725 = pneg %p568
        %p726 = pneg %p565
        %s727 = sand.u32 %s555, 1
        %s728 = scalar_lea.sflag [#allocation3], %s727
        %s729 = sand.u32 %s555, 1
        %s730 = smul.addr %s729, 256
        %s731 = scalar_lea.vmem [#allocation2], %s730
        %s732 = smul.u32 32, %s38
        %p733 = scmp.lt.s32.totalorder %s732, 127
        %s734 = scalar_select %p733, %s732, 127
        %s735 = smul.addr %s734, 8
        %s736 = scalar_lea.vmem %s0, %s735
        %s737 = smul.u32 32, %s38
        %s738 = smul.u32 32, %s38
        %v740 = vld [vmem:[%s736] sm:$0xff]
        %v741 = vld [vmem:[%s736 + $0x8] sm:$0xff]
        %v742 = vld [vmem:[%s736 + $0x10] sm:$0xff]
        %v743 = vld [vmem:[%s736 + $0x18] sm:$0xff]
        %v744 = vld [vmem:[%s736 + $0x20] sm:$0xff]
        %v745 = vld [vmem:[%s736 + $0x28] sm:$0xff]
        %v746 = vld [vmem:[%s736 + $0x30] sm:$0xff]
        %v747 = vld [vmem:[%s736 + $0x38] sm:$0xff]
        %v748 = vld [vmem:[%s736 + $0x40] sm:$0xff]
        %v749 = vld [vmem:[%s736 + $0x48] sm:$0xff]
        %v750 = vld [vmem:[%s736 + $0x50] sm:$0xff]
        %v751 = vld [vmem:[%s736 + $0x58] sm:$0xff]
        %v752 = vld [vmem:[%s736 + $0x60] sm:$0xff]
        %v753 = vld [vmem:[%s736 + $0x68] sm:$0xff]
        %v754 = vld [vmem:[%s736 + $0x70] sm:$0xff]
        %v755 = vld [vmem:[%s736 + $0x78] sm:$0xff]
        %v756 = vld [vmem:[%s736 + $0x80] sm:$0xff]
        %v757 = vld [vmem:[%s736 + $0x88] sm:$0xff]
        %v758 = vld [vmem:[%s736 + $0x90] sm:$0xff]
        %v759 = vld [vmem:[%s736 + $0x98] sm:$0xff]
        %v760 = vld [vmem:[%s736 + $0xa0] sm:$0xff]
        %v761 = vld [vmem:[%s736 + $0xa8] sm:$0xff]
        %v762 = vld [vmem:[%s736 + $0xb0] sm:$0xff]
        %v763 = vld [vmem:[%s736 + $0xb8] sm:$0xff]
        %v764 = vld [vmem:[%s736 + $0xc0] sm:$0xff]
        %v765 = vld [vmem:[%s736 + $0xc8] sm:$0xff]
        %v766 = vld [vmem:[%s736 + $0xd0] sm:$0xff]
        %v767 = vld [vmem:[%s736 + $0xd8] sm:$0xff]
        %v768 = vld [vmem:[%s736 + $0xe0] sm:$0xff]
        %v769 = vld [vmem:[%s736 + $0xe8] sm:$0xff]
        %v770 = vld [vmem:[%s736 + $0xf0] sm:$0xff]
        %v771 = vld [vmem:[%s736 + $0xf8] sm:$0xff]
        %v772 = vpack.c.bf16 %v741, %v740
        %v773 = vpack.c.bf16 %v743, %v742
        %v774 = vpack.c.bf16 %v745, %v744
        %v775 = vpack.c.bf16 %v747, %v746
        %v776 = vpack.c.bf16 %v749, %v748
        %v777 = vpack.c.bf16 %v751, %v750
        %v778 = vpack.c.bf16 %v753, %v752
        %v779 = vpack.c.bf16 %v755, %v754
        %v780 = vpack.c.bf16 %v757, %v756
        %v781 = vpack.c.bf16 %v759, %v758
        %v782 = vpack.c.bf16 %v761, %v760
        %v783 = vpack.c.bf16 %v763, %v762
        %v784 = vpack.c.bf16 %v765, %v764
        %v785 = vpack.c.bf16 %v767, %v766
        %v786 = vpack.c.bf16 %v769, %v768
        %v787 = vpack.c.bf16 %v771, %v770
        %v788 = vld [vmem:[%s1] sm:$0xff]
        %v789 = vld [vmem:[%s1 + $0x8] sm:$0xff]
        %v790 = vld [vmem:[%s1 + $0x10] sm:$0xff]
        %v791 = vld [vmem:[%s1 + $0x18] sm:$0xff]
        %v792 = vld [vmem:[%s1 + $0x20] sm:$0xff]
        %v793 = vld [vmem:[%s1 + $0x28] sm:$0xff]
        %v794 = vld [vmem:[%s1 + $0x30] sm:$0xff]
        %v795 = vld [vmem:[%s1 + $0x38] sm:$0xff]
        %v796 = vld [vmem:[%s1 + $0x40] sm:$0xff]
        %v797 = vld [vmem:[%s1 + $0x48] sm:$0xff]
        %v798 = vld [vmem:[%s1 + $0x50] sm:$0xff]
        %v799 = vld [vmem:[%s1 + $0x58] sm:$0xff]
        %v800 = vld [vmem:[%s1 + $0x60] sm:$0xff]
        %v801 = vld [vmem:[%s1 + $0x68] sm:$0xff]
        %v802 = vld [vmem:[%s1 + $0x70] sm:$0xff]
        %v803 = vld [vmem:[%s1 + $0x78] sm:$0xff]
        %v804 = vld [vmem:[%s1 + $0x80] sm:$0xff]
        %v805 = vld [vmem:[%s1 + $0x88] sm:$0xff]
        %v806 = vld [vmem:[%s1 + $0x90] sm:$0xff]
        %v807 = vld [vmem:[%s1 + $0x98] sm:$0xff]
        %v808 = vpack.c.bf16 %v792, %v788
        %v809 = vpack.c.bf16 %v793, %v789
        %v810 = vpack.c.bf16 %v794, %v790
        %v811 = vpack.c.bf16 %v795, %v791
        %v812 = vpack.c.bf16 %v800, %v796
        %v813 = vpack.c.bf16 %v801, %v797
        %v814 = vpack.c.bf16 %v802, %v798
        %v815 = vpack.c.bf16 %v803, %v799
        %v816 = vpack.c.bf16 %v804, %v804
        %v817 = vpack.c.bf16 %v805, %v805
        %v818 = vpack.c.bf16 %v806, %v806
        %v819 = vpack.c.bf16 %v807, %v807
        %v820 = vld [vmem:[%s2] sm:$0xf]
        %v822 = vlaneseq
        %v823 = vshrl.u32 %v822, 7
        %v824 = vsub.s32 0, %v823
        %v825 = vrot.slane %v820, %v824
        %v826 = vlaneseq
        %v827 = vshrl.u32 %v826, 7
        %v828 = vsub.s32 1, %v827
        %v829 = vrot.slane %v820, %v828
        %v830 = vlaneseq
        %v831 = vshrl.u32 %v830, 7
        %v832 = vsub.s32 2, %v831
        %v833 = vrot.slane %v820, %v832
        %v834 = vlaneseq
        %v835 = vshrl.u32 %v834, 7
        %v836 = vsub.s32 3, %v835
        %v837 = vrot.slane %v820, %v836
        %vm842 = vcmask 326656
        %v844 = vsel %vm842, %v772, 0
        %v847 = vsel %vm842, %v773, 0
        %v850 = vsel %vm842, %v774, 0
        %v853 = vsel %vm842, %v775, 0
        %v856 = vsel %vm842, %v776, 0
        %v859 = vsel %vm842, %v777, 0
        %v862 = vsel %vm842, %v778, 0
        %v865 = vsel %vm842, %v779, 0
        %v868 = vsel %vm842, %v780, 0
        %v871 = vsel %vm842, %v781, 0
        %v874 = vsel %vm842, %v782, 0
        %v877 = vsel %vm842, %v783, 0
        %v880 = vsel %vm842, %v784, 0
        %v883 = vsel %vm842, %v785, 0
        %v886 = vsel %vm842, %v786, 0
        %v889 = vsel %vm842, %v787, 0
        %vm891 = vcmask 1043456
        %v893 = vsel %vm891, %v816, 0
        %v896 = vsel %vm891, %v817, 0
        %v899 = vsel %vm891, %v818, 0
        %v902 = vsel %vm891, %v819, 0
        %904 = vmatprep.subr.bf16.mxu0 %v809
        %905 = vmatpush1.bf16.msra.mxu0 %v808
        %906 = vmatprep.subr.bf16.mxu0 %v813
        %907 = vmatpush1.bf16.msra.mxu0 %v812
        %908 = vmatprep.subr.bf16.mxu0 %v896
        %909 = vmatpush1.bf16.msra.mxu0 %v893
        %910 = vmatprep.subr.bf16.mxu0 0
        %911 = vmatpush1.bf16.msra.mxu0 0
        %912 = vmatprep.subr.bf16.mxu0 0
        %913 = vmatpush1.bf16.msra.mxu0 0
        %914 = vmatprep.subr.bf16.mxu0 0
        %915 = vmatpush1.bf16.msra.mxu0 0
        %916 = vmatprep.subr.bf16.mxu0 0
        %917 = vmatpush1.bf16.msra.mxu0 0
        %918 = vmatprep.subr.bf16.mxu0 0
        %919 = vmatpush1.bf16.msra.mxu0 0
        %920 = vmatprep.subr.bf16.mxu0 0
        %921 = vmatpush1.bf16.msra.mxu0 0
        %922 = vmatprep.subr.bf16.mxu0 0
        %923 = vmatpush1.bf16.msra.mxu0 0
        %924 = vmatprep.subr.bf16.mxu0 0
        %925 = vmatpush1.bf16.msra.mxu0 0
        %926 = vmatprep.subr.bf16.mxu0 0
        %927 = vmatpush1.bf16.msra.mxu0 0
        %928 = vmatprep.subr.bf16.mxu0 0
        %929 = vmatpush1.bf16.msra.mxu0 0
        %930 = vmatprep.subr.bf16.mxu0 0
        %931 = vmatpush1.bf16.msra.mxu0 0
        %932 = vmatprep.subr.bf16.mxu0 0
        %933 = vmatpush1.bf16.msra.mxu0 0
        %934 = vmatprep.subr.bf16.mxu0 0
        %935 = vmatpush1.bf16.msra.mxu0 0
        %936 = vmatprep.mubr.bf16.mxu0 0
        %937 = vmatmul.mubr.bf16.gmra.mrb[0].mxu0 %v844
        %v938 = vpop.f32.mrb[0].mxu0
        %v939 = vadd.f32 %v825, %v938
        %v940 = vpop.f32.mrb[0].mxu0
        %v941 = vadd.f32 %v829, %v940
        %v942 = vpop.f32.mrb[0].mxu0
        %v943 = vadd.f32 %v825, %v942
        %v944 = vpop.f32.mrb[0].mxu0
        %v945 = vadd.f32 %v829, %v944
        %946 = vmatprep.mubr.bf16.mxu0 0
        %947 = vmatmul.mubr.bf16.gmra.mrb[0].mxu0 %v847
        %v948 = vpop.f32.mrb[0].mxu0
        %v949 = vadd.f32 %v825, %v948
        %v950 = vpop.f32.mrb[0].mxu0
        %v951 = vadd.f32 %v829, %v950
        %v952 = vpop.f32.mrb[0].mxu0
        %v953 = vadd.f32 %v825, %v952
        %v954 = vpop.f32.mrb[0].mxu0
        %v955 = vadd.f32 %v829, %v954
        %956 = vmatprep.mubr.bf16.mxu0 0
        %957 = vmatmul.mubr.bf16.gmra.mrb[0].mxu0 %v850
        %v958 = vpop.f32.mrb[0].mxu0
        %v959 = vadd.f32 %v825, %v958
        %v960 = vpop.f32.mrb[0].mxu0
        %v961 = vadd.f32 %v829, %v960
        %v962 = vpop.f32.mrb[0].mxu0
        %v963 = vadd.f32 %v825, %v962
        %v964 = vpop.f32.mrb[0].mxu0
        %v965 = vadd.f32 %v829, %v964
        %966 = vmatprep.mubr.bf16.mxu0 0
        %967 = vmatmul.mubr.bf16.gmra.mrb[0].mxu0 %v853
        %v968 = vpop.f32.mrb[0].mxu0
        %v969 = vadd.f32 %v825, %v968
        %v970 = vpop.f32.mrb[0].mxu0
        %v971 = vadd.f32 %v829, %v970
        %v972 = vpop.f32.mrb[0].mxu0
        %v973 = vadd.f32 %v825, %v972
        %v974 = vpop.f32.mrb[0].mxu0
        %v975 = vadd.f32 %v829, %v974
        %976 = vmatprep.mubr.bf16.mxu0 0
        %977 = vmatmul.mubr.bf16.gmra.mrb[0].mxu0 %v856
        %v978 = vpop.f32.mrb[0].mxu0
        %v979 = vadd.f32 %v825, %v978
        %v980 = vpop.f32.mrb[0].mxu0
        %v981 = vadd.f32 %v829, %v980
        %v982 = vpop.f32.mrb[0].mxu0
        %v983 = vadd.f32 %v825, %v982
        %v984 = vpop.f32.mrb[0].mxu0
        %v985 = vadd.f32 %v829, %v984
        %986 = vmatprep.mubr.bf16.mxu0 0
        %987 = vmatmul.mubr.bf16.gmra.mrb[0].mxu0 %v859
        %v988 = vpop.f32.mrb[0].mxu0
        %v989 = vadd.f32 %v825, %v988
        %v990 = vpop.f32.mrb[0].mxu0
        %v991 = vadd.f32 %v829, %v990
        %v992 = vpop.f32.mrb[0].mxu0
        %v993 = vadd.f32 %v825, %v992
        %v994 = vpop.f32.mrb[0].mxu0
        %v995 = vadd.f32 %v829, %v994
        %996 = vmatprep.mubr.bf16.mxu0 0
        %997 = vmatmul.mubr.bf16.gmra.mrb[0].mxu0 %v862
        %v998 = vpop.f32.mrb[0].mxu0
        %v999 = vadd.f32 %v825, %v998
        %v1000 = vpop.f32.mrb[0].mxu0
        %v1001 = vadd.f32 %v829, %v1000
        %v1002 = vpop.f32.mrb[0].mxu0
        %v1003 = vadd.f32 %v825, %v1002
        %v1004 = vpop.f32.mrb[0].mxu0
        %v1005 = vadd.f32 %v829, %v1004
        %1006 = vmatprep.mubr.bf16.mxu0 0
        %1007 = vmatmul.mubr.bf16.gmra.mrb[0].mxu0 %v865
        %v1008 = vpop.f32.mrb[0].mxu0
        %v1009 = vadd.f32 %v825, %v1008
        %v1010 = vpop.f32.mrb[0].mxu0
        %v1011 = vadd.f32 %v829, %v1010
        %v1012 = vpop.f32.mrb[0].mxu0
        %v1013 = vadd.f32 %v825, %v1012
        %v1014 = vpop.f32.mrb[0].mxu0
        %v1015 = vadd.f32 %v829, %v1014
        %1016 = vmatprep.mubr.bf16.mxu0 0
        %1017 = vmatmul.mubr.bf16.gmra.mrb[0].mxu0 %v868
        %v1018 = vpop.f32.mrb[0].mxu0
        %v1019 = vadd.f32 %v825, %v1018
        %v1020 = vpop.f32.mrb[0].mxu0
        %v1021 = vadd.f32 %v829, %v1020
        %v1022 = vpop.f32.mrb[0].mxu0
        %v1023 = vadd.f32 %v825, %v1022
        %v1024 = vpop.f32.mrb[0].mxu0
        %v1025 = vadd.f32 %v829, %v1024
        %1026 = vmatprep.mubr.bf16.mxu0 0
        %1027 = vmatmul.mubr.bf16.gmra.mrb[0].mxu0 %v871
        %v1028 = vpop.f32.mrb[0].mxu0
        %v1029 = vadd.f32 %v825, %v1028
        %v1030 = vpop.f32.mrb[0].mxu0
        %v1031 = vadd.f32 %v829, %v1030
        %v1032 = vpop.f32.mrb[0].mxu0
        %v1033 = vadd.f32 %v825, %v1032
        %v1034 = vpop.f32.mrb[0].mxu0
        %v1035 = vadd.f32 %v829, %v1034
        %1036 = vmatprep.mubr.bf16.mxu0 0
        %1037 = vmatmul.mubr.bf16.gmra.mrb[0].mxu0 %v874
        %v1038 = vpop.f32.mrb[0].mxu0
        %v1039 = vadd.f32 %v825, %v1038
        %v1040 = vpop.f32.mrb[0].mxu0
        %v1041 = vadd.f32 %v829, %v1040
        %v1042 = vpop.f32.mrb[0].mxu0
        %v1043 = vadd.f32 %v825, %v1042
        %v1044 = vpop.f32.mrb[0].mxu0
        %v1045 = vadd.f32 %v829, %v1044
        %1046 = vmatprep.mubr.bf16.mxu0 0
        %1047 = vmatmul.mubr.bf16.gmra.mrb[0].mxu0 %v877
        %v1048 = vpop.f32.mrb[0].mxu0
        %v1049 = vadd.f32 %v825, %v1048
        %v1050 = vpop.f32.mrb[0].mxu0
        %v1051 = vadd.f32 %v829, %v1050
        %v1052 = vpop.f32.mrb[0].mxu0
        %v1053 = vadd.f32 %v825, %v1052
        %v1054 = vpop.f32.mrb[0].mxu0
        %v1055 = vadd.f32 %v829, %v1054
        %1056 = vmatprep.mubr.bf16.mxu0 0
        %1057 = vmatmul.mubr.bf16.gmra.mrb[0].mxu0 %v880
        %v1058 = vpop.f32.mrb[0].mxu0
        %v1059 = vadd.f32 %v825, %v1058
        %v1060 = vpop.f32.mrb[0].mxu0
        %v1061 = vadd.f32 %v829, %v1060
        %v1062 = vpop.f32.mrb[0].mxu0
        %v1063 = vadd.f32 %v825, %v1062
        %v1064 = vpop.f32.mrb[0].mxu0
        %v1065 = vadd.f32 %v829, %v1064
        %1066 = vmatprep.mubr.bf16.mxu0 0
        %1067 = vmatmul.mubr.bf16.gmra.mrb[0].mxu0 %v883
        %v1068 = vpop.f32.mrb[0].mxu0
        %v1069 = vadd.f32 %v825, %v1068
        %v1070 = vpop.f32.mrb[0].mxu0
        %v1071 = vadd.f32 %v829, %v1070
        %v1072 = vpop.f32.mrb[0].mxu0
        %v1073 = vadd.f32 %v825, %v1072
        %v1074 = vpop.f32.mrb[0].mxu0
        %v1075 = vadd.f32 %v829, %v1074
        %1076 = vmatprep.mubr.bf16.mxu0 0
        %1077 = vmatmul.mubr.bf16.gmra.mrb[0].mxu0 %v886
        %v1078 = vpop.f32.mrb[0].mxu0
        %v1079 = vadd.f32 %v825, %v1078
        %v1080 = vpop.f32.mrb[0].mxu0
        %v1081 = vadd.f32 %v829, %v1080
        %v1082 = vpop.f32.mrb[0].mxu0
        %v1083 = vadd.f32 %v825, %v1082
        %v1084 = vpop.f32.mrb[0].mxu0
        %v1085 = vadd.f32 %v829, %v1084
        %1086 = vmatprep.mubr.bf16.mxu0 0
        %1087 = vmatmul.mubr.bf16.gmra.mrb[0].mxu0 %v889
        %v1088 = vpop.f32.mrb[0].mxu0
        %v1089 = vadd.f32 %v825, %v1088
        %v1090 = vpop.f32.mrb[0].mxu0
        %v1091 = vadd.f32 %v829, %v1090
        %v1092 = vpop.f32.mrb[0].mxu0
        %v1093 = vadd.f32 %v825, %v1092
        %v1094 = vpop.f32.mrb[0].mxu0
        %v1095 = vadd.f32 %v829, %v1094
        %1096 = vdwg.mxu0
        %1097 = vmatprep.subr.bf16.mxu0 %v811
        %1098 = vmatpush1.bf16.msra.mxu0 %v810
        %1099 = vmatprep.subr.bf16.mxu0 %v815
        %1100 = vmatpush1.bf16.msra.mxu0 %v814
        %1101 = vmatprep.subr.bf16.mxu0 %v902
        %1102 = vmatpush1.bf16.msra.mxu0 %v899
        %1103 = vmatprep.subr.bf16.mxu0 0
        %1104 = vmatpush1.bf16.msra.mxu0 0
        %1105 = vmatprep.subr.bf16.mxu0 0
        %1106 = vmatpush1.bf16.msra.mxu0 0
        %1107 = vmatprep.subr.bf16.mxu0 0
        %1108 = vmatpush1.bf16.msra.mxu0 0
        %1109 = vmatprep.subr.bf16.mxu0 0
        %1110 = vmatpush1.bf16.msra.mxu0 0
        %1111 = vmatprep.subr.bf16.mxu0 0
        %1112 = vmatpush1.bf16.msra.mxu0 0
        %1113 = vmatprep.subr.bf16.mxu0 0
        %1114 = vmatpush1.bf16.msra.mxu0 0
        %1115 = vmatprep.subr.bf16.mxu0 0
        %1116 = vmatpush1.bf16.msra.mxu0 0
        %1117 = vmatprep.subr.bf16.mxu0 0
        %1118 = vmatpush1.bf16.msra.mxu0 0
        %1119 = vmatprep.subr.bf16.mxu0 0
        %1120 = vmatpush1.bf16.msra.mxu0 0
        %1121 = vmatprep.subr.bf16.mxu0 0
        %1122 = vmatpush1.bf16.msra.mxu0 0
        %1123 = vmatprep.subr.bf16.mxu0 0
        %1124 = vmatpush1.bf16.msra.mxu0 0
        %1125 = vmatprep.subr.bf16.mxu0 0
        %1126 = vmatpush1.bf16.msra.mxu0 0
        %1127 = vmatprep.subr.bf16.mxu0 0
        %1128 = vmatpush1.bf16.msra.mxu0 0
        %1129 = vmatprep.mubr.bf16.mxu0 0
        %1130 = vmatmul.mubr.bf16.gmra.mrb[0].mxu0 %v844
        %v1131 = vpop.f32.mrb[0].mxu0
        %v1132 = vadd.f32 %v833, %v1131
        %v1133 = vpop.f32.mrb[0].mxu0
        %v1134 = vadd.f32 %v837, %v1133
        %v1135 = vpop.f32.mrb[0].mxu0
        %v1136 = vadd.f32 %v833, %v1135
        %v1137 = vpop.f32.mrb[0].mxu0
        %v1138 = vadd.f32 %v837, %v1137
        %1139 = vmatprep.mubr.bf16.mxu0 0
        %1140 = vmatmul.mubr.bf16.gmra.mrb[0].mxu0 %v847
        %v1141 = vpop.f32.mrb[0].mxu0
        %v1142 = vadd.f32 %v833, %v1141
        %v1143 = vpop.f32.mrb[0].mxu0
        %v1144 = vadd.f32 %v837, %v1143
        %v1145 = vpop.f32.mrb[0].mxu0
        %v1146 = vadd.f32 %v833, %v1145
        %v1147 = vpop.f32.mrb[0].mxu0
        %v1148 = vadd.f32 %v837, %v1147
        %1149 = vmatprep.mubr.bf16.mxu0 0
        %1150 = vmatmul.mubr.bf16.gmra.mrb[0].mxu0 %v850
        %v1151 = vpop.f32.mrb[0].mxu0
        %v1152 = vadd.f32 %v833, %v1151
        %v1153 = vpop.f32.mrb[0].mxu0
        %v1154 = vadd.f32 %v837, %v1153
        %v1155 = vpop.f32.mrb[0].mxu0
        %v1156 = vadd.f32 %v833, %v1155
        %v1157 = vpop.f32.mrb[0].mxu0
        %v1158 = vadd.f32 %v837, %v1157
        %1159 = vmatprep.mubr.bf16.mxu0 0
        %1160 = vmatmul.mubr.bf16.gmra.mrb[0].mxu0 %v853
        %v1161 = vpop.f32.mrb[0].mxu0
        %v1162 = vadd.f32 %v833, %v1161
        %v1163 = vpop.f32.mrb[0].mxu0
        %v1164 = vadd.f32 %v837, %v1163
        %v1165 = vpop.f32.mrb[0].mxu0
        %v1166 = vadd.f32 %v833, %v1165
        %v1167 = vpop.f32.mrb[0].mxu0
        %v1168 = vadd.f32 %v837, %v1167
        %1169 = vmatprep.mubr.bf16.mxu0 0
        %1170 = vmatmul.mubr.bf16.gmra.mrb[0].mxu0 %v856
        %v1171 = vpop.f32.mrb[0].mxu0
        %v1172 = vadd.f32 %v833, %v1171
        %v1173 = vpop.f32.mrb[0].mxu0
        %v1174 = vadd.f32 %v837, %v1173
        %v1175 = vpop.f32.mrb[0].mxu0
        %v1176 = vadd.f32 %v833, %v1175
        %v1177 = vpop.f32.mrb[0].mxu0
        %v1178 = vadd.f32 %v837, %v1177
        %1179 = vmatprep.mubr.bf16.mxu0 0
        %1180 = vmatmul.mubr.bf16.gmra.mrb[0].mxu0 %v859
        %v1181 = vpop.f32.mrb[0].mxu0
        %v1182 = vadd.f32 %v833, %v1181
        %v1183 = vpop.f32.mrb[0].mxu0
        %v1184 = vadd.f32 %v837, %v1183
        %v1185 = vpop.f32.mrb[0].mxu0
        %v1186 = vadd.f32 %v833, %v1185
        %v1187 = vpop.f32.mrb[0].mxu0
        %v1188 = vadd.f32 %v837, %v1187
        %1189 = vmatprep.mubr.bf16.mxu0 0
        %1190 = vmatmul.mubr.bf16.gmra.mrb[0].mxu0 %v862
        %v1191 = vpop.f32.mrb[0].mxu0
        %v1192 = vadd.f32 %v833, %v1191
        %v1193 = vpop.f32.mrb[0].mxu0
        %v1194 = vadd.f32 %v837, %v1193
        %v1195 = vpop.f32.mrb[0].mxu0
        %v1196 = vadd.f32 %v833, %v1195
        %v1197 = vpop.f32.mrb[0].mxu0
        %v1198 = vadd.f32 %v837, %v1197
        %1199 = vmatprep.mubr.bf16.mxu0 0
        %1200 = vmatmul.mubr.bf16.gmra.mrb[0].mxu0 %v865
        %v1201 = vpop.f32.mrb[0].mxu0
        %v1202 = vadd.f32 %v833, %v1201
        %v1203 = vpop.f32.mrb[0].mxu0
        %v1204 = vadd.f32 %v837, %v1203
        %v1205 = vpop.f32.mrb[0].mxu0
        %v1206 = vadd.f32 %v833, %v1205
        %v1207 = vpop.f32.mrb[0].mxu0
        %v1208 = vadd.f32 %v837, %v1207
        %1209 = vmatprep.mubr.bf16.mxu0 0
        %1210 = vmatmul.mubr.bf16.gmra.mrb[0].mxu0 %v868
        %v1211 = vpop.f32.mrb[0].mxu0
        %v1212 = vadd.f32 %v833, %v1211
        %v1213 = vpop.f32.mrb[0].mxu0
        %v1214 = vadd.f32 %v837, %v1213
        %v1215 = vpop.f32.mrb[0].mxu0
        %v1216 = vadd.f32 %v833, %v1215
        %v1217 = vpop.f32.mrb[0].mxu0
        %v1218 = vadd.f32 %v837, %v1217
        %1219 = vmatprep.mubr.bf16.mxu0 0
        %1220 = vmatmul.mubr.bf16.gmra.mrb[0].mxu0 %v871
        %v1221 = vpop.f32.mrb[0].mxu0
        %v1222 = vadd.f32 %v833, %v1221
        %v1223 = vpop.f32.mrb[0].mxu0
        %v1224 = vadd.f32 %v837, %v1223
        %v1225 = vpop.f32.mrb[0].mxu0
        %v1226 = vadd.f32 %v833, %v1225
        %v1227 = vpop.f32.mrb[0].mxu0
        %v1228 = vadd.f32 %v837, %v1227
        %1229 = vmatprep.mubr.bf16.mxu0 0
        %1230 = vmatmul.mubr.bf16.gmra.mrb[0].mxu0 %v874
        %v1231 = vpop.f32.mrb[0].mxu0
        %v1232 = vadd.f32 %v833, %v1231
        %v1233 = vpop.f32.mrb[0].mxu0
        %v1234 = vadd.f32 %v837, %v1233
        %v1235 = vpop.f32.mrb[0].mxu0
        %v1236 = vadd.f32 %v833, %v1235
        %v1237 = vpop.f32.mrb[0].mxu0
        %v1238 = vadd.f32 %v837, %v1237
        %1239 = vmatprep.mubr.bf16.mxu0 0
        %1240 = vmatmul.mubr.bf16.gmra.mrb[0].mxu0 %v877
        %v1241 = vpop.f32.mrb[0].mxu0
        %v1242 = vadd.f32 %v833, %v1241
        %v1243 = vpop.f32.mrb[0].mxu0
        %v1244 = vadd.f32 %v837, %v1243
        %v1245 = vpop.f32.mrb[0].mxu0
        %v1246 = vadd.f32 %v833, %v1245
        %v1247 = vpop.f32.mrb[0].mxu0
        %v1248 = vadd.f32 %v837, %v1247
        %1249 = vmatprep.mubr.bf16.mxu0 0
        %1250 = vmatmul.mubr.bf16.gmra.mrb[0].mxu0 %v880
        %v1251 = vpop.f32.mrb[0].mxu0
        %v1252 = vadd.f32 %v833, %v1251
        %v1253 = vpop.f32.mrb[0].mxu0
        %v1254 = vadd.f32 %v837, %v1253
        %v1255 = vpop.f32.mrb[0].mxu0
        %v1256 = vadd.f32 %v833, %v1255
        %v1257 = vpop.f32.mrb[0].mxu0
        %v1258 = vadd.f32 %v837, %v1257
        %1259 = vmatprep.mubr.bf16.mxu0 0
        %1260 = vmatmul.mubr.bf16.gmra.mrb[0].mxu0 %v883
        %v1261 = vpop.f32.mrb[0].mxu0
        %v1262 = vadd.f32 %v833, %v1261
        %v1263 = vpop.f32.mrb[0].mxu0
        %v1264 = vadd.f32 %v837, %v1263
        %v1265 = vpop.f32.mrb[0].mxu0
        %v1266 = vadd.f32 %v833, %v1265
        %v1267 = vpop.f32.mrb[0].mxu0
        %v1268 = vadd.f32 %v837, %v1267
        %1269 = vmatprep.mubr.bf16.mxu0 0
        %1270 = vmatmul.mubr.bf16.gmra.mrb[0].mxu0 %v886
        %v1271 = vpop.f32.mrb[0].mxu0
        %v1272 = vadd.f32 %v833, %v1271
        %v1273 = vpop.f32.mrb[0].mxu0
        %v1274 = vadd.f32 %v837, %v1273
        %v1275 = vpop.f32.mrb[0].mxu0
        %v1276 = vadd.f32 %v833, %v1275
        %v1277 = vpop.f32.mrb[0].mxu0
        %v1278 = vadd.f32 %v837, %v1277
        %1279 = vmatprep.mubr.bf16.mxu0 0
        %1280 = vmatmul.mubr.bf16.gmra.mrb[0].mxu0 %v889
        %v1281 = vpop.f32.mrb[0].mxu0
        %v1282 = vadd.f32 %v833, %v1281
        %v1283 = vpop.f32.mrb[0].mxu0
        %v1284 = vadd.f32 %v837, %v1283
        %v1285 = vpop.f32.mrb[0].mxu0
        %v1286 = vadd.f32 %v833, %v1285
        %v1287 = vpop.f32.mrb[0].mxu0
        %v1288 = vadd.f32 %v837, %v1287
        %1289 = vdwg.mxu0
        %v1290 = vtanh.pop %v939
        %v1291 = vtanh.pop %v941
        %v1292 = vtanh.pop %v1132
        %v1293 = vtanh.pop %v1134
        %v1294 = vtanh.pop %v943
        %v1295 = vtanh.pop %v945
        %v1296 = vtanh.pop %v1136
        %v1297 = vtanh.pop %v1138
        %v1298 = vtanh.pop %v949
        %v1299 = vtanh.pop %v951
        %v1300 = vtanh.pop %v1142
        %v1301 = vtanh.pop %v1144
        %v1302 = vtanh.pop %v953
        %v1303 = vtanh.pop %v955
        %v1304 = vtanh.pop %v1146
        %v1305 = vtanh.pop %v1148
        %v1306 = vtanh.pop %v959
        %v1307 = vtanh.pop %v961
        %v1308 = vtanh.pop %v1152
        %v1309 = vtanh.pop %v1154
        %v1310 = vtanh.pop %v963
        %v1311 = vtanh.pop %v965
        %v1312 = vtanh.pop %v1156
        %v1313 = vtanh.pop %v1158
        %v1314 = vtanh.pop %v969
        %v1315 = vtanh.pop %v971
        %v1316 = vtanh.pop %v1162
        %v1317 = vtanh.pop %v1164
        %v1318 = vtanh.pop %v973
        %v1319 = vtanh.pop %v975
        %v1320 = vtanh.pop %v1166
        %v1321 = vtanh.pop %v1168
        %v1322 = vtanh.pop %v979
        %v1323 = vtanh.pop %v981
        %v1324 = vtanh.pop %v1172
        %v1325 = vtanh.pop %v1174
        %v1326 = vtanh.pop %v983
        %v1327 = vtanh.pop %v985
        %v1328 = vtanh.pop %v1176
        %v1329 = vtanh.pop %v1178
        %v1330 = vtanh.pop %v989
        %v1331 = vtanh.pop %v991
        %v1332 = vtanh.pop %v1182
        %v1333 = vtanh.pop %v1184
        %v1334 = vtanh.pop %v993
        %v1335 = vtanh.pop %v995
        %v1336 = vtanh.pop %v1186
        %v1337 = vtanh.pop %v1188
        %v1338 = vtanh.pop %v999
        %v1339 = vtanh.pop %v1001
        %v1340 = vtanh.pop %v1192
        %v1341 = vtanh.pop %v1194
        %v1342 = vtanh.pop %v1003
        %v1343 = vtanh.pop %v1005
        %v1344 = vtanh.pop %v1196
        %v1345 = vtanh.pop %v1198
        %v1346 = vtanh.pop %v1009
        %v1347 = vtanh.pop %v1011
        %v1348 = vtanh.pop %v1202
        %v1349 = vtanh.pop %v1204
        %v1350 = vtanh.pop %v1013
        %v1351 = vtanh.pop %v1015
        %v1352 = vtanh.pop %v1206
        %v1353 = vtanh.pop %v1208
        %v1354 = vtanh.pop %v1019
        %v1355 = vtanh.pop %v1021
        %v1356 = vtanh.pop %v1212
        %v1357 = vtanh.pop %v1214
        %v1358 = vtanh.pop %v1023
        %v1359 = vtanh.pop %v1025
        %v1360 = vtanh.pop %v1216
        %v1361 = vtanh.pop %v1218
        %v1362 = vtanh.pop %v1029
        %v1363 = vtanh.pop %v1031
        %v1364 = vtanh.pop %v1222
        %v1365 = vtanh.pop %v1224
        %v1366 = vtanh.pop %v1033
        %v1367 = vtanh.pop %v1035
        %v1368 = vtanh.pop %v1226
        %v1369 = vtanh.pop %v1228
        %v1370 = vtanh.pop %v1039
        %v1371 = vtanh.pop %v1041
        %v1372 = vtanh.pop %v1232
        %v1373 = vtanh.pop %v1234
        %v1374 = vtanh.pop %v1043
        %v1375 = vtanh.pop %v1045
        %v1376 = vtanh.pop %v1236
        %v1377 = vtanh.pop %v1238
        %v1378 = vtanh.pop %v1049
        %v1379 = vtanh.pop %v1051
        %v1380 = vtanh.pop %v1242
        %v1381 = vtanh.pop %v1244
        %v1382 = vtanh.pop %v1053
        %v1383 = vtanh.pop %v1055
        %v1384 = vtanh.pop %v1246
        %v1385 = vtanh.pop %v1248
        %v1386 = vtanh.pop %v1059
        %v1387 = vtanh.pop %v1061
        %v1388 = vtanh.pop %v1252
        %v1389 = vtanh.pop %v1254
        %v1390 = vtanh.pop %v1063
        %v1391 = vtanh.pop %v1065
        %v1392 = vtanh.pop %v1256
        %v1393 = vtanh.pop %v1258
        %v1394 = vtanh.pop %v1069
        %v1395 = vtanh.pop %v1071
        %v1396 = vtanh.pop %v1262
        %v1397 = vtanh.pop %v1264
        %v1398 = vtanh.pop %v1073
        %v1399 = vtanh.pop %v1075
        %v1400 = vtanh.pop %v1266
        %v1401 = vtanh.pop %v1268
        %v1402 = vtanh.pop %v1079
        %v1403 = vtanh.pop %v1081
        %v1404 = vtanh.pop %v1272
        %v1405 = vtanh.pop %v1274
        %v1406 = vtanh.pop %v1083
        %v1407 = vtanh.pop %v1085
        %v1408 = vtanh.pop %v1276
        %v1409 = vtanh.pop %v1278
        %v1410 = vtanh.pop %v1089
        %v1411 = vtanh.pop %v1091
        %v1412 = vtanh.pop %v1282
        %v1413 = vtanh.pop %v1284
        %v1414 = vtanh.pop %v1093
        %v1415 = vtanh.pop %v1095
        %v1416 = vtanh.pop %v1286
        %v1417 = vtanh.pop %v1288
        %v1418 = vld [vmem:[%s3] sm:$0xff]
        %v1419 = vld [vmem:[%s3 + $0x8] sm:$0xff]
        %v1420 = vld [vmem:[%s3 + $0x10] sm:$0xff]
        %v1421 = vld [vmem:[%s3 + $0x18] sm:$0xff]
        %v1422 = vld [vmem:[%s3 + $0x20] sm:$0xff]
        %v1423 = vld [vmem:[%s3 + $0x28] sm:$0xff]
        %v1424 = vld [vmem:[%s3 + $0x30] sm:$0x3f]
        %v1425 = vld [vmem:[%s3 + $0x38] sm:$0x3f]
        %v1426 = vpack.c.bf16 %v1420, %v1418
        %v1427 = vpack.c.bf16 %v1421, %v1419
        %v1428 = vpack.c.bf16 %v1424, %v1422
        %v1429 = vpack.c.bf16 %v1425, %v1423
        %v1430 = vpack.c.bf16 %v1294, %v1290
        %v1431 = vpack.c.bf16 %v1295, %v1291
        %v1432 = vpack.c.bf16 %v1296, %v1292
        %v1433 = vpack.c.bf16 %v1297, %v1293
        %v1434 = vpack.c.bf16 %v1302, %v1298
        %v1435 = vpack.c.bf16 %v1303, %v1299
        %v1436 = vpack.c.bf16 %v1304, %v1300
        %v1437 = vpack.c.bf16 %v1305, %v1301
        %v1438 = vpack.c.bf16 %v1310, %v1306
        %v1439 = vpack.c.bf16 %v1311, %v1307
        %v1440 = vpack.c.bf16 %v1312, %v1308
        %v1441 = vpack.c.bf16 %v1313, %v1309
        %v1442 = vpack.c.bf16 %v1318, %v1314
        %v1443 = vpack.c.bf16 %v1319, %v1315
        %v1444 = vpack.c.bf16 %v1320, %v1316
        %v1445 = vpack.c.bf16 %v1321, %v1317
        %v1446 = vpack.c.bf16 %v1326, %v1322
        %v1447 = vpack.c.bf16 %v1327, %v1323
        %v1448 = vpack.c.bf16 %v1328, %v1324
        %v1449 = vpack.c.bf16 %v1329, %v1325
        %v1450 = vpack.c.bf16 %v1334, %v1330
        %v1451 = vpack.c.bf16 %v1335, %v1331
        %v1452 = vpack.c.bf16 %v1336, %v1332
        %v1453 = vpack.c.bf16 %v1337, %v1333
        %v1454 = vpack.c.bf16 %v1342, %v1338
        %v1455 = vpack.c.bf16 %v1343, %v1339
        %v1456 = vpack.c.bf16 %v1344, %v1340
        %v1457 = vpack.c.bf16 %v1345, %v1341
        %v1458 = vpack.c.bf16 %v1350, %v1346
        %v1459 = vpack.c.bf16 %v1351, %v1347
        %v1460 = vpack.c.bf16 %v1352, %v1348
        %v1461 = vpack.c.bf16 %v1353, %v1349
        %v1462 = vpack.c.bf16 %v1358, %v1354
        %v1463 = vpack.c.bf16 %v1359, %v1355
        %v1464 = vpack.c.bf16 %v1360, %v1356
        %v1465 = vpack.c.bf16 %v1361, %v1357
        %v1466 = vpack.c.bf16 %v1366, %v1362
        %v1467 = vpack.c.bf16 %v1367, %v1363
        %v1468 = vpack.c.bf16 %v1368, %v1364
        %v1469 = vpack.c.bf16 %v1369, %v1365
        %v1470 = vpack.c.bf16 %v1374, %v1370
        %v1471 = vpack.c.bf16 %v1375, %v1371
        %v1472 = vpack.c.bf16 %v1376, %v1372
        %v1473 = vpack.c.bf16 %v1377, %v1373
        %v1474 = vpack.c.bf16 %v1382, %v1378
        %v1475 = vpack.c.bf16 %v1383, %v1379
        %v1476 = vpack.c.bf16 %v1384, %v1380
        %v1477 = vpack.c.bf16 %v1385, %v1381
        %v1478 = vpack.c.bf16 %v1390, %v1386
        %v1479 = vpack.c.bf16 %v1391, %v1387
        %v1480 = vpack.c.bf16 %v1392, %v1388
        %v1481 = vpack.c.bf16 %v1393, %v1389
        %v1482 = vpack.c.bf16 %v1398, %v1394
        %v1483 = vpack.c.bf16 %v1399, %v1395
        %v1484 = vpack.c.bf16 %v1400, %v1396
        %v1485 = vpack.c.bf16 %v1401, %v1397
        %v1486 = vpack.c.bf16 %v1406, %v1402
        %v1487 = vpack.c.bf16 %v1407, %v1403
        %v1488 = vpack.c.bf16 %v1408, %v1404
        %v1489 = vpack.c.bf16 %v1409, %v1405
        %v1490 = vpack.c.bf16 %v1414, %v1410
        %v1491 = vpack.c.bf16 %v1415, %v1411
        %v1492 = vpack.c.bf16 %v1416, %v1412
        %v1493 = vpack.c.bf16 %v1417, %v1413
        %v1494 = vld [vmem:[%s4] sm:$0xff]
        %v1495 = vld [vmem:[%s4 + $0x8] sm:$0xff]
        %v1496 = vld [vmem:[%s4 + $0x10] sm:$0xff]
        %v1497 = vld [vmem:[%s4 + $0x18] sm:$0xff]
        %v1498 = vld [vmem:[%s4 + $0x20] sm:$0xff]
        %v1499 = vld [vmem:[%s4 + $0x28] sm:$0xff]
        %v1500 = vld [vmem:[%s4 + $0x30] sm:$0xff]
        %v1501 = vld [vmem:[%s4 + $0x38] sm:$0xff]
        %v1502 = vld [vmem:[%s4 + $0x40] sm:$0xff]
        %v1503 = vld [vmem:[%s4 + $0x48] sm:$0xff]
        %v1504 = vld [vmem:[%s4 + $0x50] sm:$0xff]
        %v1505 = vld [vmem:[%s4 + $0x58] sm:$0xff]
        %v1506 = vld [vmem:[%s4 + $0x60] sm:$0xff]
        %v1507 = vld [vmem:[%s4 + $0x68] sm:$0xff]
        %v1508 = vld [vmem:[%s4 + $0x70] sm:$0xff]
        %v1509 = vld [vmem:[%s4 + $0x78] sm:$0xff]
        %v1510 = vld [vmem:[%s4 + $0x80] sm:$0xff]
        %v1511 = vld [vmem:[%s4 + $0x88] sm:$0xff]
        %v1512 = vld [vmem:[%s4 + $0x90] sm:$0xff]
        %v1513 = vld [vmem:[%s4 + $0x98] sm:$0xff]
        %v1514 = vld [vmem:[%s4 + $0xa0] sm:$0xff]
        %v1515 = vld [vmem:[%s4 + $0xa8] sm:$0xff]
        %v1516 = vld [vmem:[%s4 + $0xb0] sm:$0xff]
        %v1517 = vld [vmem:[%s4 + $0xb8] sm:$0xff]
        %v1518 = vld [vmem:[%s4 + $0xc0] sm:$0xff]
        %v1519 = vld [vmem:[%s4 + $0xc8] sm:$0xff]
        %v1520 = vld [vmem:[%s4 + $0xd0] sm:$0xff]
        %v1521 = vld [vmem:[%s4 + $0xd8] sm:$0xff]
        %v1522 = vld [vmem:[%s4 + $0xe0] sm:$0xff]
        %v1523 = vld [vmem:[%s4 + $0xe8] sm:$0xff]
        %v1524 = vld [vmem:[%s4 + $0xf0] sm:$0xff]
        %v1525 = vld [vmem:[%s4 + $0xf8] sm:$0xff]
        %v1526 = vld [vmem:[%s4 + $0x100] sm:$0xff]
        %v1527 = vld [vmem:[%s4 + $0x108] sm:$0xff]
        %v1528 = vld [vmem:[%s4 + $0x110] sm:$0xff]
        %v1529 = vld [vmem:[%s4 + $0x118] sm:$0xff]
        %v1530 = vld [vmem:[%s4 + $0x120] sm:$0xff]
        %v1531 = vld [vmem:[%s4 + $0x128] sm:$0xff]
        %v1532 = vld [vmem:[%s4 + $0x130] sm:$0xff]
        %v1533 = vld [vmem:[%s4 + $0x138] sm:$0xff]
        %v1534 = vld [vmem:[%s4 + $0x140] sm:$0xff]
        %v1535 = vld [vmem:[%s4 + $0x148] sm:$0xff]
        %v1536 = vld [vmem:[%s4 + $0x150] sm:$0xff]
        %v1537 = vld [vmem:[%s4 + $0x158] sm:$0xff]
        %v1538 = vld [vmem:[%s4 + $0x160] sm:$0xff]
        %v1539 = vld [vmem:[%s4 + $0x168] sm:$0xff]
        %v1540 = vld [vmem:[%s4 + $0x170] sm:$0xff]
        %v1541 = vld [vmem:[%s4 + $0x178] sm:$0xff]
        %v1542 = vld [vmem:[%s4 + $0x180] sm:$0xff]
        %v1543 = vld [vmem:[%s4 + $0x188] sm:$0xff]
        %v1544 = vld [vmem:[%s4 + $0x190] sm:$0xff]
        %v1545 = vld [vmem:[%s4 + $0x198] sm:$0xff]
        %v1546 = vld [vmem:[%s4 + $0x1a0] sm:$0xff]
        %v1547 = vld [vmem:[%s4 + $0x1a8] sm:$0xff]
        %v1548 = vld [vmem:[%s4 + $0x1b0] sm:$0xff]
        %v1549 = vld [vmem:[%s4 + $0x1b8] sm:$0xff]
        %v1550 = vld [vmem:[%s4 + $0x1c0] sm:$0xff]
        %v1551 = vld [vmem:[%s4 + $0x1c8] sm:$0xff]
        %v1552 = vld [vmem:[%s4 + $0x1d0] sm:$0xff]
        %v1553 = vld [vmem:[%s4 + $0x1d8] sm:$0xff]
        %v1554 = vld [vmem:[%s4 + $0x1e0] sm:$0xff]
        %v1555 = vld [vmem:[%s4 + $0x1e8] sm:$0xff]
        %v1556 = vld [vmem:[%s4 + $0x1f0] sm:$0xff]
        %v1557 = vld [vmem:[%s4 + $0x1f8] sm:$0xff]
        %v1558 = vld [vmem:[%s4 + $0x200] sm:$0xff]
        %v1559 = vld [vmem:[%s4 + $0x208] sm:$0xff]
        %v1560 = vld [vmem:[%s4 + $0x210] sm:$0xff]
        %v1561 = vld [vmem:[%s4 + $0x218] sm:$0xff]
        %v1562 = vld [vmem:[%s4 + $0x220] sm:$0xff]
        %v1563 = vld [vmem:[%s4 + $0x228] sm:$0xff]
        %v1564 = vld [vmem:[%s4 + $0x230] sm:$0xff]
        %v1565 = vld [vmem:[%s4 + $0x238] sm:$0xff]
        %v1566 = vld [vmem:[%s4 + $0x240] sm:$0xff]
        %v1567 = vld [vmem:[%s4 + $0x248] sm:$0xff]
        %v1568 = vld [vmem:[%s4 + $0x250] sm:$0xff]
        %v1569 = vld [vmem:[%s4 + $0x258] sm:$0xff]
        %v1570 = vld [vmem:[%s4 + $0x260] sm:$0xff]
        %v1571 = vld [vmem:[%s4 + $0x268] sm:$0xff]
        %v1572 = vld [vmem:[%s4 + $0x270] sm:$0xff]
        %v1573 = vld [vmem:[%s4 + $0x278] sm:$0xff]
        %v1574 = vld [vmem:[%s4 + $0x280] sm:$0xff]
        %v1575 = vld [vmem:[%s4 + $0x288] sm:$0xff]
        %v1576 = vld [vmem:[%s4 + $0x290] sm:$0xff]
        %v1577 = vld [vmem:[%s4 + $0x298] sm:$0xff]
        %v1578 = vld [vmem:[%s4 + $0x2a0] sm:$0xff]
        %v1579 = vld [vmem:[%s4 + $0x2a8] sm:$0xff]
        %v1580 = vld [vmem:[%s4 + $0x2b0] sm:$0xff]
        %v1581 = vld [vmem:[%s4 + $0x2b8] sm:$0xff]
        %v1582 = vld [vmem:[%s4 + $0x2c0] sm:$0xff]
        %v1583 = vld [vmem:[%s4 + $0x2c8] sm:$0xff]
        %v1584 = vld [vmem:[%s4 + $0x2d0] sm:$0xff]
        %v1585 = vld [vmem:[%s4 + $0x2d8] sm:$0xff]
        %v1586 = vld [vmem:[%s4 + $0x2e0] sm:$0xff]
        %v1587 = vld [vmem:[%s4 + $0x2e8] sm:$0xff]
        %v1588 = vld [vmem:[%s4 + $0x2f0] sm:$0xff]
        %v1589 = vld [vmem:[%s4 + $0x2f8] sm:$0xff]
        %v1590 = vld [vmem:[%s4 + $0x300] sm:$0xff]
        %v1591 = vld [vmem:[%s4 + $0x308] sm:$0xff]
        %v1592 = vld [vmem:[%s4 + $0x310] sm:$0xff]
        %v1593 = vld [vmem:[%s4 + $0x318] sm:$0xff]
        %v1594 = vld [vmem:[%s4 + $0x320] sm:$0xff]
        %v1595 = vld [vmem:[%s4 + $0x328] sm:$0xff]
        %v1596 = vld [vmem:[%s4 + $0x330] sm:$0xff]
        %v1597 = vld [vmem:[%s4 + $0x338] sm:$0xff]
        %v1598 = vld [vmem:[%s4 + $0x340] sm:$0xff]
        %v1599 = vld [vmem:[%s4 + $0x348] sm:$0xff]
        %v1600 = vld [vmem:[%s4 + $0x350] sm:$0xff]
        %v1601 = vld [vmem:[%s4 + $0x358] sm:$0xff]
        %v1602 = vld [vmem:[%s4 + $0x360] sm:$0xff]
        %v1603 = vld [vmem:[%s4 + $0x368] sm:$0xff]
        %v1604 = vld [vmem:[%s4 + $0x370] sm:$0xff]
        %v1605 = vld [vmem:[%s4 + $0x378] sm:$0xff]
        %v1606 = vld [vmem:[%s4 + $0x380] sm:$0xff]
        %v1607 = vld [vmem:[%s4 + $0x388] sm:$0xff]
        %v1608 = vld [vmem:[%s4 + $0x390] sm:$0xff]
        %v1609 = vld [vmem:[%s4 + $0x398] sm:$0xff]
        %v1610 = vld [vmem:[%s4 + $0x3a0] sm:$0xff]
        %v1611 = vld [vmem:[%s4 + $0x3a8] sm:$0xff]
        %v1612 = vld [vmem:[%s4 + $0x3b0] sm:$0xff]
        %v1613 = vld [vmem:[%s4 + $0x3b8] sm:$0xff]
        %v1614 = vld [vmem:[%s4 + $0x3c0] sm:$0xff]
        %v1615 = vld [vmem:[%s4 + $0x3c8] sm:$0xff]
        %v1616 = vld [vmem:[%s4 + $0x3d0] sm:$0xff]
        %v1617 = vld [vmem:[%s4 + $0x3d8] sm:$0xff]
        %v1618 = vld [vmem:[%s4 + $0x3e0] sm:$0xff]
        %v1619 = vld [vmem:[%s4 + $0x3e8] sm:$0xff]
        %v1620 = vld [vmem:[%s4 + $0x3f0] sm:$0xff]
        %v1621 = vld [vmem:[%s4 + $0x3f8] sm:$0xff]
        %v1622 = vpack.c.bf16 %v1496, %v1494
        %v1623 = vpack.c.bf16 %v1497, %v1495
        %v1624 = vpack.c.bf16 %v1500, %v1498
        %v1625 = vpack.c.bf16 %v1501, %v1499
        %v1626 = vpack.c.bf16 %v1504, %v1502
        %v1627 = vpack.c.bf16 %v1505, %v1503
        %v1628 = vpack.c.bf16 %v1508, %v1506
        %v1629 = vpack.c.bf16 %v1509, %v1507
        %v1630 = vpack.c.bf16 %v1512, %v1510
        %v1631 = vpack.c.bf16 %v1513, %v1511
        %v1632 = vpack.c.bf16 %v1516, %v1514
        %v1633 = vpack.c.bf16 %v1517, %v1515
        %v1634 = vpack.c.bf16 %v1520, %v1518
        %v1635 = vpack.c.bf16 %v1521, %v1519
        %v1636 = vpack.c.bf16 %v1524, %v1522
        %v1637 = vpack.c.bf16 %v1525, %v1523
        %v1638 = vpack.c.bf16 %v1528, %v1526
        %v1639 = vpack.c.bf16 %v1529, %v1527
        %v1640 = vpack.c.bf16 %v1532, %v1530
        %v1641 = vpack.c.bf16 %v1533, %v1531
        %v1642 = vpack.c.bf16 %v1536, %v1534
        %v1643 = vpack.c.bf16 %v1537, %v1535
        %v1644 = vpack.c.bf16 %v1540, %v1538
        %v1645 = vpack.c.bf16 %v1541, %v1539
        %v1646 = vpack.c.bf16 %v1544, %v1542
        %v1647 = vpack.c.bf16 %v1545, %v1543
        %v1648 = vpack.c.bf16 %v1548, %v1546
        %v1649 = vpack.c.bf16 %v1549, %v1547
        %v1650 = vpack.c.bf16 %v1552, %v1550
        %v1651 = vpack.c.bf16 %v1553, %v1551
        %v1652 = vpack.c.bf16 %v1556, %v1554
        %v1653 = vpack.c.bf16 %v1557, %v1555
        %v1654 = vpack.c.bf16 %v1560, %v1558
        %v1655 = vpack.c.bf16 %v1561, %v1559
        %v1656 = vpack.c.bf16 %v1564, %v1562
        %v1657 = vpack.c.bf16 %v1565, %v1563
        %v1658 = vpack.c.bf16 %v1568, %v1566
        %v1659 = vpack.c.bf16 %v1569, %v1567
        %v1660 = vpack.c.bf16 %v1572, %v1570
        %v1661 = vpack.c.bf16 %v1573, %v1571
        %v1662 = vpack.c.bf16 %v1576, %v1574
        %v1663 = vpack.c.bf16 %v1577, %v1575
        %v1664 = vpack.c.bf16 %v1580, %v1578
        %v1665 = vpack.c.bf16 %v1581, %v1579
        %v1666 = vpack.c.bf16 %v1584, %v1582
        %v1667 = vpack.c.bf16 %v1585, %v1583
        %v1668 = vpack.c.bf16 %v1588, %v1586
        %v1669 = vpack.c.bf16 %v1589, %v1587
        %v1670 = vpack.c.bf16 %v1592, %v1590
        %v1671 = vpack.c.bf16 %v1593, %v1591
        %v1672 = vpack.c.bf16 %v1596, %v1594
        %v1673 = vpack.c.bf16 %v1597, %v1595
        %v1674 = vpack.c.bf16 %v1600, %v1598
        %v1675 = vpack.c.bf16 %v1601, %v1599
        %v1676 = vpack.c.bf16 %v1604, %v1602
        %v1677 = vpack.c.bf16 %v1605, %v1603
        %v1678 = vpack.c.bf16 %v1608, %v1606
        %v1679 = vpack.c.bf16 %v1609, %v1607
        %v1680 = vpack.c.bf16 %v1612, %v1610
        %v1681 = vpack.c.bf16 %v1613, %v1611
        %v1682 = vpack.c.bf16 %v1616, %v1614
        %v1683 = vpack.c.bf16 %v1617, %v1615
        %v1684 = vpack.c.bf16 %v1620, %v1618
        %v1685 = vpack.c.bf16 %v1621, %v1619
        %1686 = vmatprep.subr.bf16.mxu0 %v1623
        %1687 = vmatpush1.bf16.msra.mxu0 %v1622
        %1688 = vmatprep.subr.bf16.mxu0 %v1625
        %1689 = vmatpush1.bf16.msra.mxu0 %v1624
        %1690 = vmatprep.subr.bf16.mxu0 %v1627
        %1691 = vmatpush1.bf16.msra.mxu0 %v1626
        %1692 = vmatprep.subr.bf16.mxu0 %v1629
        %1693 = vmatpush1.bf16.msra.mxu0 %v1628
        %1694 = vmatprep.subr.bf16.mxu0 %v1631
        %1695 = vmatpush1.bf16.msra.mxu0 %v1630
        %1696 = vmatprep.subr.bf16.mxu0 %v1633
        %1697 = vmatpush1.bf16.msra.mxu0 %v1632
        %1698 = vmatprep.subr.bf16.mxu0 %v1635
        %1699 = vmatpush1.bf16.msra.mxu0 %v1634
        %1700 = vmatprep.subr.bf16.mxu0 %v1637
        %1701 = vmatpush1.bf16.msra.mxu0 %v1636
        %1702 = vmatprep.subr.bf16.mxu0 %v1639
        %1703 = vmatpush1.bf16.msra.mxu0 %v1638
        %1704 = vmatprep.subr.bf16.mxu0 %v1641
        %1705 = vmatpush1.bf16.msra.mxu0 %v1640
        %1706 = vmatprep.subr.bf16.mxu0 %v1643
        %1707 = vmatpush1.bf16.msra.mxu0 %v1642
        %1708 = vmatprep.subr.bf16.mxu0 %v1645
        %1709 = vmatpush1.bf16.msra.mxu0 %v1644
        %1710 = vmatprep.subr.bf16.mxu0 %v1647
        %1711 = vmatpush1.bf16.msra.mxu0 %v1646
        %1712 = vmatprep.subr.bf16.mxu0 %v1649
        %1713 = vmatpush1.bf16.msra.mxu0 %v1648
        %1714 = vmatprep.subr.bf16.mxu0 %v1651
        %1715 = vmatpush1.bf16.msra.mxu0 %v1650
        %1716 = vmatprep.subr.bf16.mxu0 %v1653
        %1717 = vmatpush1.bf16.msra.mxu0 %v1652
        %1718 = vmatprep.mubr.bf16.mxu0 %v1431
        %1719 = vmatmul.mubr.bf16.gmra.mrb[0].mxu0 %v1430
        %v1720 = vpop.f32.mrb[0].mxu0
        %v1721 = vadd.f32 0.0, %v1720
        %v1722 = vpop.f32.mrb[0].mxu0
        %v1723 = vadd.f32 0.0, %v1722
        %v1724 = vpop.f32.mrb[0].mxu0
        %v1725 = vadd.f32 0.0, %v1724
        %v1726 = vpop.f32.mrb[0].mxu0
        %v1727 = vadd.f32 0.0, %v1726
        %1728 = vmatprep.mubr.bf16.mxu0 %v1435
        %1729 = vmatmul.mubr.bf16.gmra.mrb[0].mxu0 %v1434
        %v1730 = vpop.f32.mrb[0].mxu0
        %v1731 = vadd.f32 0.0, %v1730
        %v1732 = vpop.f32.mrb[0].mxu0
        %v1733 = vadd.f32 0.0, %v1732
        %v1734 = vpop.f32.mrb[0].mxu0
        %v1735 = vadd.f32 0.0, %v1734
        %v1736 = vpop.f32.mrb[0].mxu0
        %v1737 = vadd.f32 0.0, %v1736
        %1738 = vmatprep.mubr.bf16.mxu0 %v1439
        %1739 = vmatmul.mubr.bf16.gmra.mrb[0].mxu0 %v1438
        %v1740 = vpop.f32.mrb[0].mxu0
        %v1741 = vadd.f32 0.0, %v1740
        %v1742 = vpop.f32.mrb[0].mxu0
        %v1743 = vadd.f32 0.0, %v1742
        %v1744 = vpop.f32.mrb[0].mxu0
        %v1745 = vadd.f32 0.0, %v1744
        %v1746 = vpop.f32.mrb[0].mxu0
        %v1747 = vadd.f32 0.0, %v1746
        %1748 = vmatprep.mubr.bf16.mxu0 %v1443
        %1749 = vmatmul.mubr.bf16.gmra.mrb[0].mxu0 %v1442
        %v1750 = vpop.f32.mrb[0].mxu0
        %v1751 = vadd.f32 0.0, %v1750
        %v1752 = vpop.f32.mrb[0].mxu0
        %v1753 = vadd.f32 0.0, %v1752
        %v1754 = vpop.f32.mrb[0].mxu0
        %v1755 = vadd.f32 0.0, %v1754
        %v1756 = vpop.f32.mrb[0].mxu0
        %v1757 = vadd.f32 0.0, %v1756
        %1758 = vmatprep.mubr.bf16.mxu0 %v1447
        %1759 = vmatmul.mubr.bf16.gmra.mrb[0].mxu0 %v1446
        %v1760 = vpop.f32.mrb[0].mxu0
        %v1761 = vadd.f32 0.0, %v1760
        %v1762 = vpop.f32.mrb[0].mxu0
        %v1763 = vadd.f32 0.0, %v1762
        %v1764 = vpop.f32.mrb[0].mxu0
        %v1765 = vadd.f32 0.0, %v1764
        %v1766 = vpop.f32.mrb[0].mxu0
        %v1767 = vadd.f32 0.0, %v1766
        %1768 = vmatprep.mubr.bf16.mxu0 %v1451
        %1769 = vmatmul.mubr.bf16.gmra.mrb[0].mxu0 %v1450
        %v1770 = vpop.f32.mrb[0].mxu0
        %v1771 = vadd.f32 0.0, %v1770
        %v1772 = vpop.f32.mrb[0].mxu0
        %v1773 = vadd.f32 0.0, %v1772
        %v1774 = vpop.f32.mrb[0].mxu0
        %v1775 = vadd.f32 0.0, %v1774
        %v1776 = vpop.f32.mrb[0].mxu0
        %v1777 = vadd.f32 0.0, %v1776
        %1778 = vmatprep.mubr.bf16.mxu0 %v1455
        %1779 = vmatmul.mubr.bf16.gmra.mrb[0].mxu0 %v1454
        %v1780 = vpop.f32.mrb[0].mxu0
        %v1781 = vadd.f32 0.0, %v1780
        %v1782 = vpop.f32.mrb[0].mxu0
        %v1783 = vadd.f32 0.0, %v1782
        %v1784 = vpop.f32.mrb[0].mxu0
        %v1785 = vadd.f32 0.0, %v1784
        %v1786 = vpop.f32.mrb[0].mxu0
        %v1787 = vadd.f32 0.0, %v1786
        %1788 = vmatprep.mubr.bf16.mxu0 %v1459
        %1789 = vmatmul.mubr.bf16.gmra.mrb[0].mxu0 %v1458
        %v1790 = vpop.f32.mrb[0].mxu0
        %v1791 = vadd.f32 0.0, %v1790
        %v1792 = vpop.f32.mrb[0].mxu0
        %v1793 = vadd.f32 0.0, %v1792
        %v1794 = vpop.f32.mrb[0].mxu0
        %v1795 = vadd.f32 0.0, %v1794
        %v1796 = vpop.f32.mrb[0].mxu0
        %v1797 = vadd.f32 0.0, %v1796
        %1798 = vmatprep.mubr.bf16.mxu0 %v1463
        %1799 = vmatmul.mubr.bf16.gmra.mrb[0].mxu0 %v1462
        %v1800 = vpop.f32.mrb[0].mxu0
        %v1801 = vadd.f32 0.0, %v1800
        %v1802 = vpop.f32.mrb[0].mxu0
        %v1803 = vadd.f32 0.0, %v1802
        %v1804 = vpop.f32.mrb[0].mxu0
        %v1805 = vadd.f32 0.0, %v1804
        %v1806 = vpop.f32.mrb[0].mxu0
        %v1807 = vadd.f32 0.0, %v1806
        %1808 = vmatprep.mubr.bf16.mxu0 %v1467
        %1809 = vmatmul.mubr.bf16.gmra.mrb[0].mxu0 %v1466
        %v1810 = vpop.f32.mrb[0].mxu0
        %v1811 = vadd.f32 0.0, %v1810
        %v1812 = vpop.f32.mrb[0].mxu0
        %v1813 = vadd.f32 0.0, %v1812
        %v1814 = vpop.f32.mrb[0].mxu0
        %v1815 = vadd.f32 0.0, %v1814
        %v1816 = vpop.f32.mrb[0].mxu0
        %v1817 = vadd.f32 0.0, %v1816
        %1818 = vmatprep.mubr.bf16.mxu0 %v1471
        %1819 = vmatmul.mubr.bf16.gmra.mrb[0].mxu0 %v1470
        %v1820 = vpop.f32.mrb[0].mxu0
        %v1821 = vadd.f32 0.0, %v1820
        %v1822 = vpop.f32.mrb[0].mxu0
        %v1823 = vadd.f32 0.0, %v1822
        %v1824 = vpop.f32.mrb[0].mxu0
        %v1825 = vadd.f32 0.0, %v1824
        %v1826 = vpop.f32.mrb[0].mxu0
        %v1827 = vadd.f32 0.0, %v1826
        %1828 = vmatprep.mubr.bf16.mxu0 %v1475
        %1829 = vmatmul.mubr.bf16.gmra.mrb[0].mxu0 %v1474
        %v1830 = vpop.f32.mrb[0].mxu0
        %v1831 = vadd.f32 0.0, %v1830
        %v1832 = vpop.f32.mrb[0].mxu0
        %v1833 = vadd.f32 0.0, %v1832
        %v1834 = vpop.f32.mrb[0].mxu0
        %v1835 = vadd.f32 0.0, %v1834
        %v1836 = vpop.f32.mrb[0].mxu0
        %v1837 = vadd.f32 0.0, %v1836
        %1838 = vmatprep.mubr.bf16.mxu0 %v1479
        %1839 = vmatmul.mubr.bf16.gmra.mrb[0].mxu0 %v1478
        %v1840 = vpop.f32.mrb[0].mxu0
        %v1841 = vadd.f32 0.0, %v1840
        %v1842 = vpop.f32.mrb[0].mxu0
        %v1843 = vadd.f32 0.0, %v1842
        %v1844 = vpop.f32.mrb[0].mxu0
        %v1845 = vadd.f32 0.0, %v1844
        %v1846 = vpop.f32.mrb[0].mxu0
        %v1847 = vadd.f32 0.0, %v1846
        %1848 = vmatprep.mubr.bf16.mxu0 %v1483
        %1849 = vmatmul.mubr.bf16.gmra.mrb[0].mxu0 %v1482
        %v1850 = vpop.f32.mrb[0].mxu0
        %v1851 = vadd.f32 0.0, %v1850
        %v1852 = vpop.f32.mrb[0].mxu0
        %v1853 = vadd.f32 0.0, %v1852
        %v1854 = vpop.f32.mrb[0].mxu0
        %v1855 = vadd.f32 0.0, %v1854
        %v1856 = vpop.f32.mrb[0].mxu0
        %v1857 = vadd.f32 0.0, %v1856
        %1858 = vmatprep.mubr.bf16.mxu0 %v1487
        %1859 = vmatmul.mubr.bf16.gmra.mrb[0].mxu0 %v1486
        %v1860 = vpop.f32.mrb[0].mxu0
        %v1861 = vadd.f32 0.0, %v1860
        %v1862 = vpop.f32.mrb[0].mxu0
        %v1863 = vadd.f32 0.0, %v1862
        %v1864 = vpop.f32.mrb[0].mxu0
        %v1865 = vadd.f32 0.0, %v1864
        %v1866 = vpop.f32.mrb[0].mxu0
        %v1867 = vadd.f32 0.0, %v1866
        %1868 = vmatprep.mubr.bf16.mxu0 %v1491
        %1869 = vmatmul.mubr.bf16.gmra.mrb[0].mxu0 %v1490
        %v1870 = vpop.f32.mrb[0].mxu0
        %v1871 = vadd.f32 0.0, %v1870
        %v1872 = vpop.f32.mrb[0].mxu0
        %v1873 = vadd.f32 0.0, %v1872
        %v1874 = vpop.f32.mrb[0].mxu0
        %v1875 = vadd.f32 0.0, %v1874
        %v1876 = vpop.f32.mrb[0].mxu0
        %v1877 = vadd.f32 0.0, %v1876
        %1878 = vdwg.mxu0
        %1879 = vmatprep.subr.bf16.mxu0 %v1655
        %1880 = vmatpush1.bf16.msra.mxu0 %v1654
        %1881 = vmatprep.subr.bf16.mxu0 %v1657
        %1882 = vmatpush1.bf16.msra.mxu0 %v1656
        %1883 = vmatprep.subr.bf16.mxu0 %v1659
        %1884 = vmatpush1.bf16.msra.mxu0 %v1658
        %1885 = vmatprep.subr.bf16.mxu0 %v1661
        %1886 = vmatpush1.bf16.msra.mxu0 %v1660
        %1887 = vmatprep.subr.bf16.mxu0 %v1663
        %1888 = vmatpush1.bf16.msra.mxu0 %v1662
        %1889 = vmatprep.subr.bf16.mxu0 %v1665
        %1890 = vmatpush1.bf16.msra.mxu0 %v1664
        %1891 = vmatprep.subr.bf16.mxu0 %v1667
        %1892 = vmatpush1.bf16.msra.mxu0 %v1666
        %1893 = vmatprep.subr.bf16.mxu0 %v1669
        %1894 = vmatpush1.bf16.msra.mxu0 %v1668
        %1895 = vmatprep.subr.bf16.mxu0 %v1671
        %1896 = vmatpush1.bf16.msra.mxu0 %v1670
        %1897 = vmatprep.subr.bf16.mxu0 %v1673
        %1898 = vmatpush1.bf16.msra.mxu0 %v1672
        %1899 = vmatprep.subr.bf16.mxu0 %v1675
        %1900 = vmatpush1.bf16.msra.mxu0 %v1674
        %1901 = vmatprep.subr.bf16.mxu0 %v1677
        %1902 = vmatpush1.bf16.msra.mxu0 %v1676
        %1903 = vmatprep.subr.bf16.mxu0 %v1679
        %1904 = vmatpush1.bf16.msra.mxu0 %v1678
        %1905 = vmatprep.subr.bf16.mxu0 %v1681
        %1906 = vmatpush1.bf16.msra.mxu0 %v1680
        %1907 = vmatprep.subr.bf16.mxu0 %v1683
        %1908 = vmatpush1.bf16.msra.mxu0 %v1682
        %1909 = vmatprep.subr.bf16.mxu0 %v1685
        %1910 = vmatpush1.bf16.msra.mxu0 %v1684
        %1911 = vmatprep.mubr.bf16.mxu0 %v1433
        %1912 = vmatmul.mubr.bf16.gmra.mrb[0].mxu0 %v1432
        %v1913 = vpop.f32.mrb[0].mxu0
        %v1914 = vadd.f32 %v1721, %v1913
        %v1915 = vpop.f32.mrb[0].mxu0
        %v1916 = vadd.f32 %v1723, %v1915
        %v1917 = vpop.f32.mrb[0].mxu0
        %v1918 = vadd.f32 %v1725, %v1917
        %v1919 = vpop.f32.mrb[0].mxu0
        %v1920 = vadd.f32 %v1727, %v1919
        %1921 = vmatprep.mubr.bf16.mxu0 %v1437
        %1922 = vmatmul.mubr.bf16.gmra.mrb[0].mxu0 %v1436
        %v1923 = vpop.f32.mrb[0].mxu0
        %v1924 = vadd.f32 %v1731, %v1923
        %v1925 = vpop.f32.mrb[0].mxu0
        %v1926 = vadd.f32 %v1733, %v1925
        %v1927 = vpop.f32.mrb[0].mxu0
        %v1928 = vadd.f32 %v1735, %v1927
        %v1929 = vpop.f32.mrb[0].mxu0
        %v1930 = vadd.f32 %v1737, %v1929
        %1931 = vmatprep.mubr.bf16.mxu0 %v1441
        %1932 = vmatmul.mubr.bf16.gmra.mrb[0].mxu0 %v1440
        %v1933 = vpop.f32.mrb[0].mxu0
        %v1934 = vadd.f32 %v1741, %v1933
        %v1935 = vpop.f32.mrb[0].mxu0
        %v1936 = vadd.f32 %v1743, %v1935
        %v1937 = vpop.f32.mrb[0].mxu0
        %v1938 = vadd.f32 %v1745, %v1937
        %v1939 = vpop.f32.mrb[0].mxu0
        %v1940 = vadd.f32 %v1747, %v1939
        %1941 = vmatprep.mubr.bf16.mxu0 %v1445
        %1942 = vmatmul.mubr.bf16.gmra.mrb[0].mxu0 %v1444
        %v1943 = vpop.f32.mrb[0].mxu0
        %v1944 = vadd.f32 %v1751, %v1943
        %v1945 = vpop.f32.mrb[0].mxu0
        %v1946 = vadd.f32 %v1753, %v1945
        %v1947 = vpop.f32.mrb[0].mxu0
        %v1948 = vadd.f32 %v1755, %v1947
        %v1949 = vpop.f32.mrb[0].mxu0
        %v1950 = vadd.f32 %v1757, %v1949
        %1951 = vmatprep.mubr.bf16.mxu0 %v1449
        %1952 = vmatmul.mubr.bf16.gmra.mrb[0].mxu0 %v1448
        %v1953 = vpop.f32.mrb[0].mxu0
        %v1954 = vadd.f32 %v1761, %v1953
        %v1955 = vpop.f32.mrb[0].mxu0
        %v1956 = vadd.f32 %v1763, %v1955
        %v1957 = vpop.f32.mrb[0].mxu0
        %v1958 = vadd.f32 %v1765, %v1957
        %v1959 = vpop.f32.mrb[0].mxu0
        %v1960 = vadd.f32 %v1767, %v1959
        %1961 = vmatprep.mubr.bf16.mxu0 %v1453
        %1962 = vmatmul.mubr.bf16.gmra.mrb[0].mxu0 %v1452
        %v1963 = vpop.f32.mrb[0].mxu0
        %v1964 = vadd.f32 %v1771, %v1963
        %v1965 = vpop.f32.mrb[0].mxu0
        %v1966 = vadd.f32 %v1773, %v1965
        %v1967 = vpop.f32.mrb[0].mxu0
        %v1968 = vadd.f32 %v1775, %v1967
        %v1969 = vpop.f32.mrb[0].mxu0
        %v1970 = vadd.f32 %v1777, %v1969
        %1971 = vmatprep.mubr.bf16.mxu0 %v1457
        %1972 = vmatmul.mubr.bf16.gmra.mrb[0].mxu0 %v1456
        %v1973 = vpop.f32.mrb[0].mxu0
        %v1974 = vadd.f32 %v1781, %v1973
        %v1975 = vpop.f32.mrb[0].mxu0
        %v1976 = vadd.f32 %v1783, %v1975
        %v1977 = vpop.f32.mrb[0].mxu0
        %v1978 = vadd.f32 %v1785, %v1977
        %v1979 = vpop.f32.mrb[0].mxu0
        %v1980 = vadd.f32 %v1787, %v1979
        %1981 = vmatprep.mubr.bf16.mxu0 %v1461
        %1982 = vmatmul.mubr.bf16.gmra.mrb[0].mxu0 %v1460
        %v1983 = vpop.f32.mrb[0].mxu0
        %v1984 = vadd.f32 %v1791, %v1983
        %v1985 = vpop.f32.mrb[0].mxu0
        %v1986 = vadd.f32 %v1793, %v1985
        %v1987 = vpop.f32.mrb[0].mxu0
        %v1988 = vadd.f32 %v1795, %v1987
        %v1989 = vpop.f32.mrb[0].mxu0
        %v1990 = vadd.f32 %v1797, %v1989
        %1991 = vmatprep.mubr.bf16.mxu0 %v1465
        %1992 = vmatmul.mubr.bf16.gmra.mrb[0].mxu0 %v1464
        %v1993 = vpop.f32.mrb[0].mxu0
        %v1994 = vadd.f32 %v1801, %v1993
        %v1995 = vpop.f32.mrb[0].mxu0
        %v1996 = vadd.f32 %v1803, %v1995
        %v1997 = vpop.f32.mrb[0].mxu0
        %v1998 = vadd.f32 %v1805, %v1997
        %v1999 = vpop.f32.mrb[0].mxu0
        %v2000 = vadd.f32 %v1807, %v1999
        %2001 = vmatprep.mubr.bf16.mxu0 %v1469
        %2002 = vmatmul.mubr.bf16.gmra.mrb[0].mxu0 %v1468
        %v2003 = vpop.f32.mrb[0].mxu0
        %v2004 = vadd.f32 %v1811, %v2003
        %v2005 = vpop.f32.mrb[0].mxu0
        %v2006 = vadd.f32 %v1813, %v2005
        %v2007 = vpop.f32.mrb[0].mxu0
        %v2008 = vadd.f32 %v1815, %v2007
        %v2009 = vpop.f32.mrb[0].mxu0
        %v2010 = vadd.f32 %v1817, %v2009
        %2011 = vmatprep.mubr.bf16.mxu0 %v1473
        %2012 = vmatmul.mubr.bf16.gmra.mrb[0].mxu0 %v1472
        %v2013 = vpop.f32.mrb[0].mxu0
        %v2014 = vadd.f32 %v1821, %v2013
        %v2015 = vpop.f32.mrb[0].mxu0
        %v2016 = vadd.f32 %v1823, %v2015
        %v2017 = vpop.f32.mrb[0].mxu0
        %v2018 = vadd.f32 %v1825, %v2017
        %v2019 = vpop.f32.mrb[0].mxu0
        %v2020 = vadd.f32 %v1827, %v2019
        %2021 = vmatprep.mubr.bf16.mxu0 %v1477
        %2022 = vmatmul.mubr.bf16.gmra.mrb[0].mxu0 %v1476
        %v2023 = vpop.f32.mrb[0].mxu0
        %v2024 = vadd.f32 %v1831, %v2023
        %v2025 = vpop.f32.mrb[0].mxu0
        %v2026 = vadd.f32 %v1833, %v2025
        %v2027 = vpop.f32.mrb[0].mxu0
        %v2028 = vadd.f32 %v1835, %v2027
        %v2029 = vpop.f32.mrb[0].mxu0
        %v2030 = vadd.f32 %v1837, %v2029
        %2031 = vmatprep.mubr.bf16.mxu0 %v1481
        %2032 = vmatmul.mubr.bf16.gmra.mrb[0].mxu0 %v1480
        %v2033 = vpop.f32.mrb[0].mxu0
        %v2034 = vadd.f32 %v1841, %v2033
        %v2035 = vpop.f32.mrb[0].mxu0
        %v2036 = vadd.f32 %v1843, %v2035
        %v2037 = vpop.f32.mrb[0].mxu0
        %v2038 = vadd.f32 %v1845, %v2037
        %v2039 = vpop.f32.mrb[0].mxu0
        %v2040 = vadd.f32 %v1847, %v2039
        %2041 = vmatprep.mubr.bf16.mxu0 %v1485
        %2042 = vmatmul.mubr.bf16.gmra.mrb[0].mxu0 %v1484
        %v2043 = vpop.f32.mrb[0].mxu0
        %v2044 = vadd.f32 %v1851, %v2043
        %v2045 = vpop.f32.mrb[0].mxu0
        %v2046 = vadd.f32 %v1853, %v2045
        %v2047 = vpop.f32.mrb[0].mxu0
        %v2048 = vadd.f32 %v1855, %v2047
        %v2049 = vpop.f32.mrb[0].mxu0
        %v2050 = vadd.f32 %v1857, %v2049
        %2051 = vmatprep.mubr.bf16.mxu0 %v1489
        %2052 = vmatmul.mubr.bf16.gmra.mrb[0].mxu0 %v1488
        %v2053 = vpop.f32.mrb[0].mxu0
        %v2054 = vadd.f32 %v1861, %v2053
        %v2055 = vpop.f32.mrb[0].mxu0
        %v2056 = vadd.f32 %v1863, %v2055
        %v2057 = vpop.f32.mrb[0].mxu0
        %v2058 = vadd.f32 %v1865, %v2057
        %v2059 = vpop.f32.mrb[0].mxu0
        %v2060 = vadd.f32 %v1867, %v2059
        %2061 = vmatprep.mubr.bf16.mxu0 %v1493
        %2062 = vmatmul.mubr.bf16.gmra.mrb[0].mxu0 %v1492
        %v2063 = vpop.f32.mrb[0].mxu0
        %v2064 = vadd.f32 %v1871, %v2063
        %v2065 = vpop.f32.mrb[0].mxu0
        %v2066 = vadd.f32 %v1873, %v2065
        %v2067 = vpop.f32.mrb[0].mxu0
        %v2068 = vadd.f32 %v1875, %v2067
        %v2069 = vpop.f32.mrb[0].mxu0
        %v2070 = vadd.f32 %v1877, %v2069
        %2071 = vdwg.mxu0
        %vm2072 = vcmask 244736
        %v2073 = vsel %vm2072, %v772, 0
        %v2075 = vsel %vm2072, %v773, 0
        %v2077 = vsel %vm2072, %v774, 0
        %v2079 = vsel %vm2072, %v775, 0
        %v2081 = vsel %vm2072, %v776, 0
        %v2083 = vsel %vm2072, %v777, 0
        %v2085 = vsel %vm2072, %v778, 0
        %v2087 = vsel %vm2072, %v779, 0
        %v2089 = vsel %vm2072, %v780, 0
        %v2091 = vsel %vm2072, %v781, 0
        %v2093 = vsel %vm2072, %v782, 0
        %v2095 = vsel %vm2072, %v783, 0
        %v2097 = vsel %vm2072, %v784, 0
        %v2099 = vsel %vm2072, %v785, 0
        %v2101 = vsel %vm2072, %v786, 0
        %v2103 = vsel %vm2072, %v787, 0
        %vm2105 = vcmask 1046528
        %v2107 = vsel %vm2105, %v1428, 0
        %v2110 = vsel %vm2105, %v1429, 0
        %2112 = vmatprep.subr.bf16.mxu0 %v1427
        %2113 = vmatpush1.bf16.msra.mxu0 %v1426
        %2114 = vmatprep.subr.bf16.mxu0 %v2110
        %2115 = vmatpush1.bf16.msra.mxu0 %v2107
        %2116 = vmatprep.subr.bf16.mxu0 0
        %2117 = vmatpush1.bf16.msra.mxu0 0
        %2118 = vmatprep.subr.bf16.mxu0 0
        %2119 = vmatpush1.bf16.msra.mxu0 0
        %2120 = vmatprep.subr.bf16.mxu0 0
        %2121 = vmatpush1.bf16.msra.mxu0 0
        %2122 = vmatprep.subr.bf16.mxu0 0
        %2123 = vmatpush1.bf16.msra.mxu0 0
        %2124 = vmatprep.subr.bf16.mxu0 0
        %2125 = vmatpush1.bf16.msra.mxu0 0
        %2126 = vmatprep.subr.bf16.mxu0 0
        %2127 = vmatpush1.bf16.msra.mxu0 0
        %2128 = vmatprep.subr.bf16.mxu0 0
        %2129 = vmatpush1.bf16.msra.mxu0 0
        %2130 = vmatprep.subr.bf16.mxu0 0
        %2131 = vmatpush1.bf16.msra.mxu0 0
        %2132 = vmatprep.subr.bf16.mxu0 0
        %2133 = vmatpush1.bf16.msra.mxu0 0
        %2134 = vmatprep.subr.bf16.mxu0 0
        %2135 = vmatpush1.bf16.msra.mxu0 0
        %2136 = vmatprep.subr.bf16.mxu0 0
        %2137 = vmatpush1.bf16.msra.mxu0 0
        %2138 = vmatprep.subr.bf16.mxu0 0
        %2139 = vmatpush1.bf16.msra.mxu0 0
        %2140 = vmatprep.subr.bf16.mxu0 0
        %2141 = vmatpush1.bf16.msra.mxu0 0
        %2142 = vmatprep.subr.bf16.mxu0 0
        %2143 = vmatpush1.bf16.msra.mxu0 0
        %2144 = vmatprep.mubr.bf16.mxu0 0
        %2145 = vmatmul.mubr.bf16.gmra.mrb[0].mxu0 %v2073
        %v2146 = vpop.f32.mrb[0].mxu0
        %v2147 = vadd.f32 %v1914, %v2146
        %v2148 = vpop.f32.mrb[0].mxu0
        %v2149 = vadd.f32 %v1916, %v2148
        %v2150 = vpop.f32.mrb[0].mxu0
        %v2151 = vadd.f32 %v1918, %v2150
        %v2152 = vpop.f32.mrb[0].mxu0
        %v2153 = vadd.f32 %v1920, %v2152
        %2154 = vmatprep.mubr.bf16.mxu0 0
        %2155 = vmatmul.mubr.bf16.gmra.mrb[0].mxu0 %v2075
        %v2156 = vpop.f32.mrb[0].mxu0
        %v2157 = vadd.f32 %v1924, %v2156
        %v2158 = vpop.f32.mrb[0].mxu0
        %v2159 = vadd.f32 %v1926, %v2158
        %v2160 = vpop.f32.mrb[0].mxu0
        %v2161 = vadd.f32 %v1928, %v2160
        %v2162 = vpop.f32.mrb[0].mxu0
        %v2163 = vadd.f32 %v1930, %v2162
        %2164 = vmatprep.mubr.bf16.mxu0 0
        %2165 = vmatmul.mubr.bf16.gmra.mrb[0].mxu0 %v2077
        %v2166 = vpop.f32.mrb[0].mxu0
        %v2167 = vadd.f32 %v1934, %v2166
        %v2168 = vpop.f32.mrb[0].mxu0
        %v2169 = vadd.f32 %v1936, %v2168
        %v2170 = vpop.f32.mrb[0].mxu0
        %v2171 = vadd.f32 %v1938, %v2170
        %v2172 = vpop.f32.mrb[0].mxu0
        %v2173 = vadd.f32 %v1940, %v2172
        %2174 = vmatprep.mubr.bf16.mxu0 0
        %2175 = vmatmul.mubr.bf16.gmra.mrb[0].mxu0 %v2079
        %v2176 = vpop.f32.mrb[0].mxu0
        %v2177 = vadd.f32 %v1944, %v2176
        %v2178 = vpop.f32.mrb[0].mxu0
        %v2179 = vadd.f32 %v1946, %v2178
        %v2180 = vpop.f32.mrb[0].mxu0
        %v2181 = vadd.f32 %v1948, %v2180
        %v2182 = vpop.f32.mrb[0].mxu0
        %v2183 = vadd.f32 %v1950, %v2182
        %2184 = vmatprep.mubr.bf16.mxu0 0
        %2185 = vmatmul.mubr.bf16.gmra.mrb[0].mxu0 %v2081
        %v2186 = vpop.f32.mrb[0].mxu0
        %v2187 = vadd.f32 %v1954, %v2186
        %v2188 = vpop.f32.mrb[0].mxu0
        %v2189 = vadd.f32 %v1956, %v2188
        %v2190 = vpop.f32.mrb[0].mxu0
        %v2191 = vadd.f32 %v1958, %v2190
        %v2192 = vpop.f32.mrb[0].mxu0
        %v2193 = vadd.f32 %v1960, %v2192
        %2194 = vmatprep.mubr.bf16.mxu0 0
        %2195 = vmatmul.mubr.bf16.gmra.mrb[0].mxu0 %v2083
        %v2196 = vpop.f32.mrb[0].mxu0
        %v2197 = vadd.f32 %v1964, %v2196
        %v2198 = vpop.f32.mrb[0].mxu0
        %v2199 = vadd.f32 %v1966, %v2198
        %v2200 = vpop.f32.mrb[0].mxu0
        %v2201 = vadd.f32 %v1968, %v2200
        %v2202 = vpop.f32.mrb[0].mxu0
        %v2203 = vadd.f32 %v1970, %v2202
        %2204 = vmatprep.mubr.bf16.mxu0 0
        %2205 = vmatmul.mubr.bf16.gmra.mrb[0].mxu0 %v2085
        %v2206 = vpop.f32.mrb[0].mxu0
        %v2207 = vadd.f32 %v1974, %v2206
        %v2208 = vpop.f32.mrb[0].mxu0
        %v2209 = vadd.f32 %v1976, %v2208
        %v2210 = vpop.f32.mrb[0].mxu0
        %v2211 = vadd.f32 %v1978, %v2210
        %v2212 = vpop.f32.mrb[0].mxu0
        %v2213 = vadd.f32 %v1980, %v2212
        %2214 = vmatprep.mubr.bf16.mxu0 0
        %2215 = vmatmul.mubr.bf16.gmra.mrb[0].mxu0 %v2087
        %v2216 = vpop.f32.mrb[0].mxu0
        %v2217 = vadd.f32 %v1984, %v2216
        %v2218 = vpop.f32.mrb[0].mxu0
        %v2219 = vadd.f32 %v1986, %v2218
        %v2220 = vpop.f32.mrb[0].mxu0
        %v2221 = vadd.f32 %v1988, %v2220
        %v2222 = vpop.f32.mrb[0].mxu0
        %v2223 = vadd.f32 %v1990, %v2222
        %2224 = vmatprep.mubr.bf16.mxu0 0
        %2225 = vmatmul.mubr.bf16.gmra.mrb[0].mxu0 %v2089
        %v2226 = vpop.f32.mrb[0].mxu0
        %v2227 = vadd.f32 %v1994, %v2226
        %v2228 = vpop.f32.mrb[0].mxu0
        %v2229 = vadd.f32 %v1996, %v2228
        %v2230 = vpop.f32.mrb[0].mxu0
        %v2231 = vadd.f32 %v1998, %v2230
        %v2232 = vpop.f32.mrb[0].mxu0
        %v2233 = vadd.f32 %v2000, %v2232
        %2234 = vmatprep.mubr.bf16.mxu0 0
        %2235 = vmatmul.mubr.bf16.gmra.mrb[0].mxu0 %v2091
        %v2236 = vpop.f32.mrb[0].mxu0
        %v2237 = vadd.f32 %v2004, %v2236
        %v2238 = vpop.f32.mrb[0].mxu0
        %v2239 = vadd.f32 %v2006, %v2238
        %v2240 = vpop.f32.mrb[0].mxu0
        %v2241 = vadd.f32 %v2008, %v2240
        %v2242 = vpop.f32.mrb[0].mxu0
        %v2243 = vadd.f32 %v2010, %v2242
        %2244 = vmatprep.mubr.bf16.mxu0 0
        %2245 = vmatmul.mubr.bf16.gmra.mrb[0].mxu0 %v2093
        %v2246 = vpop.f32.mrb[0].mxu0
        %v2247 = vadd.f32 %v2014, %v2246
        %v2248 = vpop.f32.mrb[0].mxu0
        %v2249 = vadd.f32 %v2016, %v2248
        %v2250 = vpop.f32.mrb[0].mxu0
        %v2251 = vadd.f32 %v2018, %v2250
        %v2252 = vpop.f32.mrb[0].mxu0
        %v2253 = vadd.f32 %v2020, %v2252
        %2254 = vmatprep.mubr.bf16.mxu0 0
        %2255 = vmatmul.mubr.bf16.gmra.mrb[0].mxu0 %v2095
        %v2256 = vpop.f32.mrb[0].mxu0
        %v2257 = vadd.f32 %v2024, %v2256
        %v2258 = vpop.f32.mrb[0].mxu0
        %v2259 = vadd.f32 %v2026, %v2258
        %v2260 = vpop.f32.mrb[0].mxu0
        %v2261 = vadd.f32 %v2028, %v2260
        %v2262 = vpop.f32.mrb[0].mxu0
        %v2263 = vadd.f32 %v2030, %v2262
        %2264 = vmatprep.mubr.bf16.mxu0 0
        %2265 = vmatmul.mubr.bf16.gmra.mrb[0].mxu0 %v2097
        %v2266 = vpop.f32.mrb[0].mxu0
        %v2267 = vadd.f32 %v2034, %v2266
        %v2268 = vpop.f32.mrb[0].mxu0
        %v2269 = vadd.f32 %v2036, %v2268
        %v2270 = vpop.f32.mrb[0].mxu0
        %v2271 = vadd.f32 %v2038, %v2270
        %v2272 = vpop.f32.mrb[0].mxu0
        %v2273 = vadd.f32 %v2040, %v2272
        %2274 = vmatprep.mubr.bf16.mxu0 0
        %2275 = vmatmul.mubr.bf16.gmra.mrb[0].mxu0 %v2099
        %v2276 = vpop.f32.mrb[0].mxu0
        %v2277 = vadd.f32 %v2044, %v2276
        %v2278 = vpop.f32.mrb[0].mxu0
        %v2279 = vadd.f32 %v2046, %v2278
        %v2280 = vpop.f32.mrb[0].mxu0
        %v2281 = vadd.f32 %v2048, %v2280
        %v2282 = vpop.f32.mrb[0].mxu0
        %v2283 = vadd.f32 %v2050, %v2282
        %2284 = vmatprep.mubr.bf16.mxu0 0
        %2285 = vmatmul.mubr.bf16.gmra.mrb[0].mxu0 %v2101
        %v2286 = vpop.f32.mrb[0].mxu0
        %v2287 = vadd.f32 %v2054, %v2286
        %v2288 = vpop.f32.mrb[0].mxu0
        %v2289 = vadd.f32 %v2056, %v2288
        %v2290 = vpop.f32.mrb[0].mxu0
        %v2291 = vadd.f32 %v2058, %v2290
        %v2292 = vpop.f32.mrb[0].mxu0
        %v2293 = vadd.f32 %v2060, %v2292
        %2294 = vmatprep.mubr.bf16.mxu0 0
        %2295 = vmatmul.mubr.bf16.gmra.mrb[0].mxu0 %v2103
        %v2296 = vpop.f32.mrb[0].mxu0
        %v2297 = vadd.f32 %v2064, %v2296
        %v2298 = vpop.f32.mrb[0].mxu0
        %v2299 = vadd.f32 %v2066, %v2298
        %v2300 = vpop.f32.mrb[0].mxu0
        %v2301 = vadd.f32 %v2068, %v2300
        %v2302 = vpop.f32.mrb[0].mxu0
        %v2303 = vadd.f32 %v2070, %v2302
        %2304 = vdwg.mxu0
        %v2305 = vld [vmem:[%s5] sm:$0x3]
        %v2307 = vlaneseq
        %v2308 = vshrl.u32 %v2307, 7
        %v2309 = vsub.s32 0, %v2308
        %v2310 = vrot.slane %v2305, %v2309
        %v2311 = vlaneseq
        %v2312 = vshrl.u32 %v2311, 7
        %v2313 = vsub.s32 1, %v2312
        %v2314 = vrot.slane %v2305, %v2313
        %v2317 = vadd.f32 %v2147, %v2310
        %v2318 = vadd.f32 %v2149, %v2314
        %v2319 = vadd.f32 %v2151, %v2310
        %v2320 = vadd.f32 %v2153, %v2314
        %v2321 = vadd.f32 %v2157, %v2310
        %v2322 = vadd.f32 %v2159, %v2314
        %v2323 = vadd.f32 %v2161, %v2310
        %v2324 = vadd.f32 %v2163, %v2314
        %v2325 = vadd.f32 %v2167, %v2310
        %v2326 = vadd.f32 %v2169, %v2314
        %v2327 = vadd.f32 %v2171, %v2310
        %v2328 = vadd.f32 %v2173, %v2314
        %v2329 = vadd.f32 %v2177, %v2310
        %v2330 = vadd.f32 %v2179, %v2314
        %v2331 = vadd.f32 %v2181, %v2310
        %v2332 = vadd.f32 %v2183, %v2314
        %v2333 = vadd.f32 %v2187, %v2310
        %v2334 = vadd.f32 %v2189, %v2314
        %v2335 = vadd.f32 %v2191, %v2310
        %v2336 = vadd.f32 %v2193, %v2314
        %v2337 = vadd.f32 %v2197, %v2310
        %v2338 = vadd.f32 %v2199, %v2314
        %v2339 = vadd.f32 %v2201, %v2310
        %v2340 = vadd.f32 %v2203, %v2314
        %v2341 = vadd.f32 %v2207, %v2310
        %v2342 = vadd.f32 %v2209, %v2314
        %v2343 = vadd.f32 %v2211, %v2310
        %v2344 = vadd.f32 %v2213, %v2314
        %v2345 = vadd.f32 %v2217, %v2310
        %v2346 = vadd.f32 %v2219, %v2314
        %v2347 = vadd.f32 %v2221, %v2310
        %v2348 = vadd.f32 %v2223, %v2314
        %v2349 = vadd.f32 %v2227, %v2310
        %v2350 = vadd.f32 %v2229, %v2314
        %v2351 = vadd.f32 %v2231, %v2310
        %v2352 = vadd.f32 %v2233, %v2314
        %v2353 = vadd.f32 %v2237, %v2310
        %v2354 = vadd.f32 %v2239, %v2314
        %v2355 = vadd.f32 %v2241, %v2310
        %v2356 = vadd.f32 %v2243, %v2314
        %v2357 = vadd.f32 %v2247, %v2310
        %v2358 = vadd.f32 %v2249, %v2314
        %v2359 = vadd.f32 %v2251, %v2310
        %v2360 = vadd.f32 %v2253, %v2314
        %v2361 = vadd.f32 %v2257, %v2310
        %v2362 = vadd.f32 %v2259, %v2314
        %v2363 = vadd.f32 %v2261, %v2310
        %v2364 = vadd.f32 %v2263, %v2314
        %v2365 = vadd.f32 %v2267, %v2310
        %v2366 = vadd.f32 %v2269, %v2314
        %v2367 = vadd.f32 %v2271, %v2310
        %v2368 = vadd.f32 %v2273, %v2314
        %v2369 = vadd.f32 %v2277, %v2310
        %v2370 = vadd.f32 %v2279, %v2314
        %v2371 = vadd.f32 %v2281, %v2310
        %v2372 = vadd.f32 %v2283, %v2314
        %v2373 = vadd.f32 %v2287, %v2310
        %v2374 = vadd.f32 %v2289, %v2314
        %v2375 = vadd.f32 %v2291, %v2310
        %v2376 = vadd.f32 %v2293, %v2314
        %v2377 = vadd.f32 %v2297, %v2310
        %v2378 = vadd.f32 %v2299, %v2314
        %v2379 = vadd.f32 %v2301, %v2310
        %v2380 = vadd.f32 %v2303, %v2314
        %v2381 = vtanh.pop %v2317
        %v2382 = vtanh.pop %v2318
        %v2383 = vtanh.pop %v2319
        %v2384 = vtanh.pop %v2320
        %v2385 = vtanh.pop %v2321
        %v2386 = vtanh.pop %v2322
        %v2387 = vtanh.pop %v2323
        %v2388 = vtanh.pop %v2324
        %v2389 = vtanh.pop %v2325
        %v2390 = vtanh.pop %v2326
        %v2391 = vtanh.pop %v2327
        %v2392 = vtanh.pop %v2328
        %v2393 = vtanh.pop %v2329
        %v2394 = vtanh.pop %v2330
        %v2395 = vtanh.pop %v2331
        %v2396 = vtanh.pop %v2332
        %v2397 = vtanh.pop %v2333
        %v2398 = vtanh.pop %v2334
        %v2399 = vtanh.pop %v2335
        %v2400 = vtanh.pop %v2336
        %v2401 = vtanh.pop %v2337
        %v2402 = vtanh.pop %v2338
        %v2403 = vtanh.pop %v2339
        %v2404 = vtanh.pop %v2340
        %v2405 = vtanh.pop %v2341
        %v2406 = vtanh.pop %v2342
        %v2407 = vtanh.pop %v2343
        %v2408 = vtanh.pop %v2344
        %v2409 = vtanh.pop %v2345
        %v2410 = vtanh.pop %v2346
        %v2411 = vtanh.pop %v2347
        %v2412 = vtanh.pop %v2348
        %v2413 = vtanh.pop %v2349
        %v2414 = vtanh.pop %v2350
        %v2415 = vtanh.pop %v2351
        %v2416 = vtanh.pop %v2352
        %v2417 = vtanh.pop %v2353
        %v2418 = vtanh.pop %v2354
        %v2419 = vtanh.pop %v2355
        %v2420 = vtanh.pop %v2356
        %v2421 = vtanh.pop %v2357
        %v2422 = vtanh.pop %v2358
        %v2423 = vtanh.pop %v2359
        %v2424 = vtanh.pop %v2360
        %v2425 = vtanh.pop %v2361
        %v2426 = vtanh.pop %v2362
        %v2427 = vtanh.pop %v2363
        %v2428 = vtanh.pop %v2364
        %v2429 = vtanh.pop %v2365
        %v2430 = vtanh.pop %v2366
        %v2431 = vtanh.pop %v2367
        %v2432 = vtanh.pop %v2368
        %v2433 = vtanh.pop %v2369
        %v2434 = vtanh.pop %v2370
        %v2435 = vtanh.pop %v2371
        %v2436 = vtanh.pop %v2372
        %v2437 = vtanh.pop %v2373
        %v2438 = vtanh.pop %v2374
        %v2439 = vtanh.pop %v2375
        %v2440 = vtanh.pop %v2376
        %v2441 = vtanh.pop %v2377
        %v2442 = vtanh.pop %v2378
        %v2443 = vtanh.pop %v2379
        %v2444 = vtanh.pop %v2380
        %v2445 = vld [vmem:[%s6] sm:$0xff]
        %v2446 = vld [vmem:[%s6 + $0x8] sm:$0xff]
        %v2447 = vld [vmem:[%s6 + $0x10] sm:$0xff]
        %v2448 = vld [vmem:[%s6 + $0x18] sm:$0x3f]
        %v2449 = vpack.c.bf16 %v2446, %v2445
        %v2450 = vpack.c.bf16 %v2448, %v2447
        %v2451 = vpack.c.bf16 %v2383, %v2381
        %v2452 = vpack.c.bf16 %v2384, %v2382
        %v2453 = vpack.c.bf16 %v2387, %v2385
        %v2454 = vpack.c.bf16 %v2388, %v2386
        %v2455 = vpack.c.bf16 %v2391, %v2389
        %v2456 = vpack.c.bf16 %v2392, %v2390
        %v2457 = vpack.c.bf16 %v2395, %v2393
        %v2458 = vpack.c.bf16 %v2396, %v2394
        %v2459 = vpack.c.bf16 %v2399, %v2397
        %v2460 = vpack.c.bf16 %v2400, %v2398
        %v2461 = vpack.c.bf16 %v2403, %v2401
        %v2462 = vpack.c.bf16 %v2404, %v2402
        %v2463 = vpack.c.bf16 %v2407, %v2405
        %v2464 = vpack.c.bf16 %v2408, %v2406
        %v2465 = vpack.c.bf16 %v2411, %v2409
        %v2466 = vpack.c.bf16 %v2412, %v2410
        %v2467 = vpack.c.bf16 %v2415, %v2413
        %v2468 = vpack.c.bf16 %v2416, %v2414
        %v2469 = vpack.c.bf16 %v2419, %v2417
        %v2470 = vpack.c.bf16 %v2420, %v2418
        %v2471 = vpack.c.bf16 %v2423, %v2421
        %v2472 = vpack.c.bf16 %v2424, %v2422
        %v2473 = vpack.c.bf16 %v2427, %v2425
        %v2474 = vpack.c.bf16 %v2428, %v2426
        %v2475 = vpack.c.bf16 %v2431, %v2429
        %v2476 = vpack.c.bf16 %v2432, %v2430
        %v2477 = vpack.c.bf16 %v2435, %v2433
        %v2478 = vpack.c.bf16 %v2436, %v2434
        %v2479 = vpack.c.bf16 %v2439, %v2437
        %v2480 = vpack.c.bf16 %v2440, %v2438
        %v2481 = vpack.c.bf16 %v2443, %v2441
        %v2482 = vpack.c.bf16 %v2444, %v2442
        %v2483 = vld [vmem:[%s7] sm:$0xff]
        %v2484 = vld [vmem:[%s7 + $0x8] sm:$0xff]
        %v2485 = vld [vmem:[%s7 + $0x10] sm:$0xff]
        %v2486 = vld [vmem:[%s7 + $0x18] sm:$0xff]
        %v2487 = vld [vmem:[%s7 + $0x20] sm:$0xff]
        %v2488 = vld [vmem:[%s7 + $0x28] sm:$0xff]
        %v2489 = vld [vmem:[%s7 + $0x30] sm:$0xff]
        %v2490 = vld [vmem:[%s7 + $0x38] sm:$0xff]
        %v2491 = vld [vmem:[%s7 + $0x40] sm:$0xff]
        %v2492 = vld [vmem:[%s7 + $0x48] sm:$0xff]
        %v2493 = vld [vmem:[%s7 + $0x50] sm:$0xff]
        %v2494 = vld [vmem:[%s7 + $0x58] sm:$0xff]
        %v2495 = vld [vmem:[%s7 + $0x60] sm:$0xff]
        %v2496 = vld [vmem:[%s7 + $0x68] sm:$0xff]
        %v2497 = vld [vmem:[%s7 + $0x70] sm:$0xff]
        %v2498 = vld [vmem:[%s7 + $0x78] sm:$0xff]
        %v2499 = vld [vmem:[%s7 + $0x80] sm:$0xff]
        %v2500 = vld [vmem:[%s7 + $0x88] sm:$0xff]
        %v2501 = vld [vmem:[%s7 + $0x90] sm:$0xff]
        %v2502 = vld [vmem:[%s7 + $0x98] sm:$0xff]
        %v2503 = vld [vmem:[%s7 + $0xa0] sm:$0xff]
        %v2504 = vld [vmem:[%s7 + $0xa8] sm:$0xff]
        %v2505 = vld [vmem:[%s7 + $0xb0] sm:$0xff]
        %v2506 = vld [vmem:[%s7 + $0xb8] sm:$0xff]
        %v2507 = vld [vmem:[%s7 + $0xc0] sm:$0xff]
        %v2508 = vld [vmem:[%s7 + $0xc8] sm:$0xff]
        %v2509 = vld [vmem:[%s7 + $0xd0] sm:$0xff]
        %v2510 = vld [vmem:[%s7 + $0xd8] sm:$0xff]
        %v2511 = vld [vmem:[%s7 + $0xe0] sm:$0xff]
        %v2512 = vld [vmem:[%s7 + $0xe8] sm:$0xff]
        %v2513 = vld [vmem:[%s7 + $0xf0] sm:$0xff]
        %v2514 = vld [vmem:[%s7 + $0xf8] sm:$0xff]
        %v2515 = vpack.c.bf16 %v2484, %v2483
        %v2516 = vpack.c.bf16 %v2486, %v2485
        %v2517 = vpack.c.bf16 %v2488, %v2487
        %v2518 = vpack.c.bf16 %v2490, %v2489
        %v2519 = vpack.c.bf16 %v2492, %v2491
        %v2520 = vpack.c.bf16 %v2494, %v2493
        %v2521 = vpack.c.bf16 %v2496, %v2495
        %v2522 = vpack.c.bf16 %v2498, %v2497
        %v2523 = vpack.c.bf16 %v2500, %v2499
        %v2524 = vpack.c.bf16 %v2502, %v2501
        %v2525 = vpack.c.bf16 %v2504, %v2503
        %v2526 = vpack.c.bf16 %v2506, %v2505
        %v2527 = vpack.c.bf16 %v2508, %v2507
        %v2528 = vpack.c.bf16 %v2510, %v2509
        %v2529 = vpack.c.bf16 %v2512, %v2511
        %v2530 = vpack.c.bf16 %v2514, %v2513
        %2531 = vmatprep.subr.bf16.mxu0 0
        %2532 = vmatpush1.bf16.msra.mxu0 %v2515
        %2533 = vmatprep.subr.bf16.mxu0 0
        %2534 = vmatpush1.bf16.msra.mxu0 %v2516
        %2535 = vmatprep.subr.bf16.mxu0 0
        %2536 = vmatpush1.bf16.msra.mxu0 %v2517
        %2537 = vmatprep.subr.bf16.mxu0 0
        %2538 = vmatpush1.bf16.msra.mxu0 %v2518
        %2539 = vmatprep.subr.bf16.mxu0 0
        %2540 = vmatpush1.bf16.msra.mxu0 %v2519
        %2541 = vmatprep.subr.bf16.mxu0 0
        %2542 = vmatpush1.bf16.msra.mxu0 %v2520
        %2543 = vmatprep.subr.bf16.mxu0 0
        %2544 = vmatpush1.bf16.msra.mxu0 %v2521
        %2545 = vmatprep.subr.bf16.mxu0 0
        %2546 = vmatpush1.bf16.msra.mxu0 %v2522
        %2547 = vmatprep.subr.bf16.mxu0 0
        %2548 = vmatpush1.bf16.msra.mxu0 %v2523
        %2549 = vmatprep.subr.bf16.mxu0 0
        %2550 = vmatpush1.bf16.msra.mxu0 %v2524
        %2551 = vmatprep.subr.bf16.mxu0 0
        %2552 = vmatpush1.bf16.msra.mxu0 %v2525
        %2553 = vmatprep.subr.bf16.mxu0 0
        %2554 = vmatpush1.bf16.msra.mxu0 %v2526
        %2555 = vmatprep.subr.bf16.mxu0 0
        %2556 = vmatpush1.bf16.msra.mxu0 %v2527
        %2557 = vmatprep.subr.bf16.mxu0 0
        %2558 = vmatpush1.bf16.msra.mxu0 %v2528
        %2559 = vmatprep.subr.bf16.mxu0 0
        %2560 = vmatpush1.bf16.msra.mxu0 %v2529
        %2561 = vmatprep.subr.bf16.mxu0 0
        %2562 = vmatpush1.bf16.msra.mxu0 %v2530
        %2563 = vmatprep.mubr.bf16.mxu0 %v2452
        %2564 = vmatmul.mubr.bf16.gmra.mrb[0].mxu0 %v2451
        %v2565 = vpop.f32.mrb[0].mxu0
        %v2566 = vadd.f32 0.0, %v2565
        %v2567 = vpop.f32.mrb[0].mxu0
        %v2568 = vpop.f32.mrb[0].mxu0
        %v2569 = vadd.f32 0.0, %v2568
        %v2570 = vpop.f32.mrb[0].mxu0
        %2571 = vmatprep.mubr.bf16.mxu0 %v2454
        %2572 = vmatmul.mubr.bf16.gmra.mrb[0].mxu0 %v2453
        %v2573 = vpop.f32.mrb[0].mxu0
        %v2574 = vadd.f32 0.0, %v2573
        %v2575 = vpop.f32.mrb[0].mxu0
        %v2576 = vpop.f32.mrb[0].mxu0
        %v2577 = vadd.f32 0.0, %v2576
        %v2578 = vpop.f32.mrb[0].mxu0
        %2579 = vmatprep.mubr.bf16.mxu0 %v2456
        %2580 = vmatmul.mubr.bf16.gmra.mrb[0].mxu0 %v2455
        %v2581 = vpop.f32.mrb[0].mxu0
        %v2582 = vadd.f32 0.0, %v2581
        %v2583 = vpop.f32.mrb[0].mxu0
        %v2584 = vpop.f32.mrb[0].mxu0
        %v2585 = vadd.f32 0.0, %v2584
        %v2586 = vpop.f32.mrb[0].mxu0
        %2587 = vmatprep.mubr.bf16.mxu0 %v2458
        %2588 = vmatmul.mubr.bf16.gmra.mrb[0].mxu0 %v2457
        %v2589 = vpop.f32.mrb[0].mxu0
        %v2590 = vadd.f32 0.0, %v2589
        %v2591 = vpop.f32.mrb[0].mxu0
        %v2592 = vpop.f32.mrb[0].mxu0
        %v2593 = vadd.f32 0.0, %v2592
        %v2594 = vpop.f32.mrb[0].mxu0
        %2595 = vmatprep.mubr.bf16.mxu0 %v2460
        %2596 = vmatmul.mubr.bf16.gmra.mrb[0].mxu0 %v2459
        %v2597 = vpop.f32.mrb[0].mxu0
        %v2598 = vadd.f32 0.0, %v2597
        %v2599 = vpop.f32.mrb[0].mxu0
        %v2600 = vpop.f32.mrb[0].mxu0
        %v2601 = vadd.f32 0.0, %v2600
        %v2602 = vpop.f32.mrb[0].mxu0
        %2603 = vmatprep.mubr.bf16.mxu0 %v2462
        %2604 = vmatmul.mubr.bf16.gmra.mrb[0].mxu0 %v2461
        %v2605 = vpop.f32.mrb[0].mxu0
        %v2606 = vadd.f32 0.0, %v2605
        %v2607 = vpop.f32.mrb[0].mxu0
        %v2608 = vpop.f32.mrb[0].mxu0
        %v2609 = vadd.f32 0.0, %v2608
        %v2610 = vpop.f32.mrb[0].mxu0
        %2611 = vmatprep.mubr.bf16.mxu0 %v2464
        %2612 = vmatmul.mubr.bf16.gmra.mrb[0].mxu0 %v2463
        %v2613 = vpop.f32.mrb[0].mxu0
        %v2614 = vadd.f32 0.0, %v2613
        %v2615 = vpop.f32.mrb[0].mxu0
        %v2616 = vpop.f32.mrb[0].mxu0
        %v2617 = vadd.f32 0.0, %v2616
        %v2618 = vpop.f32.mrb[0].mxu0
        %2619 = vmatprep.mubr.bf16.mxu0 %v2466
        %2620 = vmatmul.mubr.bf16.gmra.mrb[0].mxu0 %v2465
        %v2621 = vpop.f32.mrb[0].mxu0
        %v2622 = vadd.f32 0.0, %v2621
        %v2623 = vpop.f32.mrb[0].mxu0
        %v2624 = vpop.f32.mrb[0].mxu0
        %v2625 = vadd.f32 0.0, %v2624
        %v2626 = vpop.f32.mrb[0].mxu0
        %2627 = vmatprep.mubr.bf16.mxu0 %v2468
        %2628 = vmatmul.mubr.bf16.gmra.mrb[0].mxu0 %v2467
        %v2629 = vpop.f32.mrb[0].mxu0
        %v2630 = vadd.f32 0.0, %v2629
        %v2631 = vpop.f32.mrb[0].mxu0
        %v2632 = vpop.f32.mrb[0].mxu0
        %v2633 = vadd.f32 0.0, %v2632
        %v2634 = vpop.f32.mrb[0].mxu0
        %2635 = vmatprep.mubr.bf16.mxu0 %v2470
        %2636 = vmatmul.mubr.bf16.gmra.mrb[0].mxu0 %v2469
        %v2637 = vpop.f32.mrb[0].mxu0
        %v2638 = vadd.f32 0.0, %v2637
        %v2639 = vpop.f32.mrb[0].mxu0
        %v2640 = vpop.f32.mrb[0].mxu0
        %v2641 = vadd.f32 0.0, %v2640
        %v2642 = vpop.f32.mrb[0].mxu0
        %2643 = vmatprep.mubr.bf16.mxu0 %v2472
        %2644 = vmatmul.mubr.bf16.gmra.mrb[0].mxu0 %v2471
        %v2645 = vpop.f32.mrb[0].mxu0
        %v2646 = vadd.f32 0.0, %v2645
        %v2647 = vpop.f32.mrb[0].mxu0
        %v2648 = vpop.f32.mrb[0].mxu0
        %v2649 = vadd.f32 0.0, %v2648
        %v2650 = vpop.f32.mrb[0].mxu0
        %2651 = vmatprep.mubr.bf16.mxu0 %v2474
        %2652 = vmatmul.mubr.bf16.gmra.mrb[0].mxu0 %v2473
        %v2653 = vpop.f32.mrb[0].mxu0
        %v2654 = vadd.f32 0.0, %v2653
        %v2655 = vpop.f32.mrb[0].mxu0
        %v2656 = vpop.f32.mrb[0].mxu0
        %v2657 = vadd.f32 0.0, %v2656
        %v2658 = vpop.f32.mrb[0].mxu0
        %2659 = vmatprep.mubr.bf16.mxu0 %v2476
        %2660 = vmatmul.mubr.bf16.gmra.mrb[0].mxu0 %v2475
        %v2661 = vpop.f32.mrb[0].mxu0
        %v2662 = vadd.f32 0.0, %v2661
        %v2663 = vpop.f32.mrb[0].mxu0
        %v2664 = vpop.f32.mrb[0].mxu0
        %v2665 = vadd.f32 0.0, %v2664
        %v2666 = vpop.f32.mrb[0].mxu0
        %2667 = vmatprep.mubr.bf16.mxu0 %v2478
        %2668 = vmatmul.mubr.bf16.gmra.mrb[0].mxu0 %v2477
        %v2669 = vpop.f32.mrb[0].mxu0
        %v2670 = vadd.f32 0.0, %v2669
        %v2671 = vpop.f32.mrb[0].mxu0
        %v2672 = vpop.f32.mrb[0].mxu0
        %v2673 = vadd.f32 0.0, %v2672
        %v2674 = vpop.f32.mrb[0].mxu0
        %2675 = vmatprep.mubr.bf16.mxu0 %v2480
        %2676 = vmatmul.mubr.bf16.gmra.mrb[0].mxu0 %v2479
        %v2677 = vpop.f32.mrb[0].mxu0
        %v2678 = vadd.f32 0.0, %v2677
        %v2679 = vpop.f32.mrb[0].mxu0
        %v2680 = vpop.f32.mrb[0].mxu0
        %v2681 = vadd.f32 0.0, %v2680
        %v2682 = vpop.f32.mrb[0].mxu0
        %2683 = vmatprep.mubr.bf16.mxu0 %v2482
        %2684 = vmatmul.mubr.bf16.gmra.mrb[0].mxu0 %v2481
        %v2685 = vpop.f32.mrb[0].mxu0
        %v2686 = vadd.f32 0.0, %v2685
        %v2687 = vpop.f32.mrb[0].mxu0
        %v2688 = vpop.f32.mrb[0].mxu0
        %v2689 = vadd.f32 0.0, %v2688
        %v2690 = vpop.f32.mrb[0].mxu0
        %2691 = vdwg.mxu0
        %v2693 = vsel %vm2105, %v2450, 0
        %2695 = vmatprep.subr.bf16.mxu0 0
        %2696 = vmatpush1.bf16.msra.mxu0 %v2449
        %2697 = vmatprep.subr.bf16.mxu0 0
        %2698 = vmatpush1.bf16.msra.mxu0 %v2693
        %2699 = vmatprep.subr.bf16.mxu0 0
        %2700 = vmatpush1.bf16.msra.mxu0 0
        %2701 = vmatprep.subr.bf16.mxu0 0
        %2702 = vmatpush1.bf16.msra.mxu0 0
        %2703 = vmatprep.subr.bf16.mxu0 0
        %2704 = vmatpush1.bf16.msra.mxu0 0
        %2705 = vmatprep.subr.bf16.mxu0 0
        %2706 = vmatpush1.bf16.msra.mxu0 0
        %2707 = vmatprep.subr.bf16.mxu0 0
        %2708 = vmatpush1.bf16.msra.mxu0 0
        %2709 = vmatprep.subr.bf16.mxu0 0
        %2710 = vmatpush1.bf16.msra.mxu0 0
        %2711 = vmatprep.subr.bf16.mxu0 0
        %2712 = vmatpush1.bf16.msra.mxu0 0
        %2713 = vmatprep.subr.bf16.mxu0 0
        %2714 = vmatpush1.bf16.msra.mxu0 0
        %2715 = vmatprep.subr.bf16.mxu0 0
        %2716 = vmatpush1.bf16.msra.mxu0 0
        %2717 = vmatprep.subr.bf16.mxu0 0
        %2718 = vmatpush1.bf16.msra.mxu0 0
        %2719 = vmatprep.subr.bf16.mxu0 0
        %2720 = vmatpush1.bf16.msra.mxu0 0
        %2721 = vmatprep.subr.bf16.mxu0 0
        %2722 = vmatpush1.bf16.msra.mxu0 0
        %2723 = vmatprep.subr.bf16.mxu0 0
        %2724 = vmatpush1.bf16.msra.mxu0 0
        %2725 = vmatprep.subr.bf16.mxu0 0
        %2726 = vmatpush1.bf16.msra.mxu0 0
        %2727 = vmatprep.mubr.bf16.mxu0 0
        %2728 = vmatmul.mubr.bf16.gmra.mrb[0].mxu0 %v2073
        %v2729 = vpop.f32.mrb[0].mxu0
        %v2730 = vadd.f32 %v2566, %v2729
        %v2731 = vpop.f32.mrb[0].mxu0
        %v2732 = vpop.f32.mrb[0].mxu0
        %v2733 = vadd.f32 %v2569, %v2732
        %v2734 = vpop.f32.mrb[0].mxu0
        %2735 = vmatprep.mubr.bf16.mxu0 0
        %2736 = vmatmul.mubr.bf16.gmra.mrb[0].mxu0 %v2075
        %v2737 = vpop.f32.mrb[0].mxu0
        %v2738 = vadd.f32 %v2574, %v2737
        %v2739 = vpop.f32.mrb[0].mxu0
        %v2740 = vpop.f32.mrb[0].mxu0
        %v2741 = vadd.f32 %v2577, %v2740
        %v2742 = vpop.f32.mrb[0].mxu0
        %2743 = vmatprep.mubr.bf16.mxu0 0
        %2744 = vmatmul.mubr.bf16.gmra.mrb[0].mxu0 %v2077
        %v2745 = vpop.f32.mrb[0].mxu0
        %v2746 = vadd.f32 %v2582, %v2745
        %v2747 = vpop.f32.mrb[0].mxu0
        %v2748 = vpop.f32.mrb[0].mxu0
        %v2749 = vadd.f32 %v2585, %v2748
        %v2750 = vpop.f32.mrb[0].mxu0
        %2751 = vmatprep.mubr.bf16.mxu0 0
        %2752 = vmatmul.mubr.bf16.gmra.mrb[0].mxu0 %v2079
        %v2753 = vpop.f32.mrb[0].mxu0
        %v2754 = vadd.f32 %v2590, %v2753
        %v2755 = vpop.f32.mrb[0].mxu0
        %v2756 = vpop.f32.mrb[0].mxu0
        %v2757 = vadd.f32 %v2593, %v2756
        %v2758 = vpop.f32.mrb[0].mxu0
        %2759 = vmatprep.mubr.bf16.mxu0 0
        %2760 = vmatmul.mubr.bf16.gmra.mrb[0].mxu0 %v2081
        %v2761 = vpop.f32.mrb[0].mxu0
        %v2762 = vadd.f32 %v2598, %v2761
        %v2763 = vpop.f32.mrb[0].mxu0
        %v2764 = vpop.f32.mrb[0].mxu0
        %v2765 = vadd.f32 %v2601, %v2764
        %v2766 = vpop.f32.mrb[0].mxu0
        %2767 = vmatprep.mubr.bf16.mxu0 0
        %2768 = vmatmul.mubr.bf16.gmra.mrb[0].mxu0 %v2083
        %v2769 = vpop.f32.mrb[0].mxu0
        %v2770 = vadd.f32 %v2606, %v2769
        %v2771 = vpop.f32.mrb[0].mxu0
        %v2772 = vpop.f32.mrb[0].mxu0
        %v2773 = vadd.f32 %v2609, %v2772
        %v2774 = vpop.f32.mrb[0].mxu0
        %2775 = vmatprep.mubr.bf16.mxu0 0
        %2776 = vmatmul.mubr.bf16.gmra.mrb[0].mxu0 %v2085
        %v2777 = vpop.f32.mrb[0].mxu0
        %v2778 = vadd.f32 %v2614, %v2777
        %v2779 = vpop.f32.mrb[0].mxu0
        %v2780 = vpop.f32.mrb[0].mxu0
        %v2781 = vadd.f32 %v2617, %v2780
        %v2782 = vpop.f32.mrb[0].mxu0
        %2783 = vmatprep.mubr.bf16.mxu0 0
        %2784 = vmatmul.mubr.bf16.gmra.mrb[0].mxu0 %v2087
        %v2785 = vpop.f32.mrb[0].mxu0
        %v2786 = vadd.f32 %v2622, %v2785
        %v2787 = vpop.f32.mrb[0].mxu0
        %v2788 = vpop.f32.mrb[0].mxu0
        %v2789 = vadd.f32 %v2625, %v2788
        %v2790 = vpop.f32.mrb[0].mxu0
        %2791 = vmatprep.mubr.bf16.mxu0 0
        %2792 = vmatmul.mubr.bf16.gmra.mrb[0].mxu0 %v2089
        %v2793 = vpop.f32.mrb[0].mxu0
        %v2794 = vadd.f32 %v2630, %v2793
        %v2795 = vpop.f32.mrb[0].mxu0
        %v2796 = vpop.f32.mrb[0].mxu0
        %v2797 = vadd.f32 %v2633, %v2796
        %v2798 = vpop.f32.mrb[0].mxu0
        %2799 = vmatprep.mubr.bf16.mxu0 0
        %2800 = vmatmul.mubr.bf16.gmra.mrb[0].mxu0 %v2091
        %v2801 = vpop.f32.mrb[0].mxu0
        %v2802 = vadd.f32 %v2638, %v2801
        %v2803 = vpop.f32.mrb[0].mxu0
        %v2804 = vpop.f32.mrb[0].mxu0
        %v2805 = vadd.f32 %v2641, %v2804
        %v2806 = vpop.f32.mrb[0].mxu0
        %2807 = vmatprep.mubr.bf16.mxu0 0
        %2808 = vmatmul.mubr.bf16.gmra.mrb[0].mxu0 %v2093
        %v2809 = vpop.f32.mrb[0].mxu0
        %v2810 = vadd.f32 %v2646, %v2809
        %v2811 = vpop.f32.mrb[0].mxu0
        %v2812 = vpop.f32.mrb[0].mxu0
        %v2813 = vadd.f32 %v2649, %v2812
        %v2814 = vpop.f32.mrb[0].mxu0
        %2815 = vmatprep.mubr.bf16.mxu0 0
        %2816 = vmatmul.mubr.bf16.gmra.mrb[0].mxu0 %v2095
        %v2817 = vpop.f32.mrb[0].mxu0
        %v2818 = vadd.f32 %v2654, %v2817
        %v2819 = vpop.f32.mrb[0].mxu0
        %v2820 = vpop.f32.mrb[0].mxu0
        %v2821 = vadd.f32 %v2657, %v2820
        %v2822 = vpop.f32.mrb[0].mxu0
        %2823 = vmatprep.mubr.bf16.mxu0 0
        %2824 = vmatmul.mubr.bf16.gmra.mrb[0].mxu0 %v2097
        %v2825 = vpop.f32.mrb[0].mxu0
        %v2826 = vadd.f32 %v2662, %v2825
        %v2827 = vpop.f32.mrb[0].mxu0
        %v2828 = vpop.f32.mrb[0].mxu0
        %v2829 = vadd.f32 %v2665, %v2828
        %v2830 = vpop.f32.mrb[0].mxu0
        %2831 = vmatprep.mubr.bf16.mxu0 0
        %2832 = vmatmul.mubr.bf16.gmra.mrb[0].mxu0 %v2099
        %v2833 = vpop.f32.mrb[0].mxu0
        %v2834 = vadd.f32 %v2670, %v2833
        %v2835 = vpop.f32.mrb[0].mxu0
        %v2836 = vpop.f32.mrb[0].mxu0
        %v2837 = vadd.f32 %v2673, %v2836
        %v2838 = vpop.f32.mrb[0].mxu0
        %2839 = vmatprep.mubr.bf16.mxu0 0
        %2840 = vmatmul.mubr.bf16.gmra.mrb[0].mxu0 %v2101
        %v2841 = vpop.f32.mrb[0].mxu0
        %v2842 = vadd.f32 %v2678, %v2841
        %v2843 = vpop.f32.mrb[0].mxu0
        %v2844 = vpop.f32.mrb[0].mxu0
        %v2845 = vadd.f32 %v2681, %v2844
        %v2846 = vpop.f32.mrb[0].mxu0
        %2847 = vmatprep.mubr.bf16.mxu0 0
        %2848 = vmatmul.mubr.bf16.gmra.mrb[0].mxu0 %v2103
        %v2849 = vpop.f32.mrb[0].mxu0
        %v2850 = vadd.f32 %v2686, %v2849
        %v2851 = vpop.f32.mrb[0].mxu0
        %v2852 = vpop.f32.mrb[0].mxu0
        %v2853 = vadd.f32 %v2689, %v2852
        %v2854 = vpop.f32.mrb[0].mxu0
        %2855 = vdwg.mxu0
        %v2856 = vld [vmem:[%s8] sm:$0x1]
        %v2858 = vlaneseq
        %v2859 = vshrl.u32 %v2858, 7
        %v2860 = vsub.s32 0, %v2859
        %v2861 = vrot.slane %v2856, %v2860
        %v2863 = vadd.f32 %v2730, %v2861
        %v2864 = vadd.f32 %v2733, %v2861
        %v2865 = vadd.f32 %v2738, %v2861
        %v2866 = vadd.f32 %v2741, %v2861
        %v2867 = vadd.f32 %v2746, %v2861
        %v2868 = vadd.f32 %v2749, %v2861
        %v2869 = vadd.f32 %v2754, %v2861
        %v2870 = vadd.f32 %v2757, %v2861
        %v2871 = vadd.f32 %v2762, %v2861
        %v2872 = vadd.f32 %v2765, %v2861
        %v2873 = vadd.f32 %v2770, %v2861
        %v2874 = vadd.f32 %v2773, %v2861
        %v2875 = vadd.f32 %v2778, %v2861
        %v2876 = vadd.f32 %v2781, %v2861
        %v2877 = vadd.f32 %v2786, %v2861
        %v2878 = vadd.f32 %v2789, %v2861
        %v2879 = vadd.f32 %v2794, %v2861
        %v2880 = vadd.f32 %v2797, %v2861
        %v2881 = vadd.f32 %v2802, %v2861
        %v2882 = vadd.f32 %v2805, %v2861
        %v2883 = vadd.f32 %v2810, %v2861
        %v2884 = vadd.f32 %v2813, %v2861
        %v2885 = vadd.f32 %v2818, %v2861
        %v2886 = vadd.f32 %v2821, %v2861
        %v2887 = vadd.f32 %v2826, %v2861
        %v2888 = vadd.f32 %v2829, %v2861
        %v2889 = vadd.f32 %v2834, %v2861
        %v2890 = vadd.f32 %v2837, %v2861
        %v2891 = vadd.f32 %v2842, %v2861
        %v2892 = vadd.f32 %v2845, %v2861
        %v2893 = vadd.f32 %v2850, %v2861
        %v2894 = vadd.f32 %v2853, %v2861
        %v2895 = vtanh.pop %v2863
        %v2896 = vtanh.pop %v2864
        %v2897 = vtanh.pop %v2865
        %v2898 = vtanh.pop %v2866
        %v2899 = vtanh.pop %v2867
        %v2900 = vtanh.pop %v2868
        %v2901 = vtanh.pop %v2869
        %v2902 = vtanh.pop %v2870
        %v2903 = vtanh.pop %v2871
        %v2904 = vtanh.pop %v2872
        %v2905 = vtanh.pop %v2873
        %v2906 = vtanh.pop %v2874
        %v2907 = vtanh.pop %v2875
        %v2908 = vtanh.pop %v2876
        %v2909 = vtanh.pop %v2877
        %v2910 = vtanh.pop %v2878
        %v2911 = vtanh.pop %v2879
        %v2912 = vtanh.pop %v2880
        %v2913 = vtanh.pop %v2881
        %v2914 = vtanh.pop %v2882
        %v2915 = vtanh.pop %v2883
        %v2916 = vtanh.pop %v2884
        %v2917 = vtanh.pop %v2885
        %v2918 = vtanh.pop %v2886
        %v2919 = vtanh.pop %v2887
        %v2920 = vtanh.pop %v2888
        %v2921 = vtanh.pop %v2889
        %v2922 = vtanh.pop %v2890
        %v2923 = vtanh.pop %v2891
        %v2924 = vtanh.pop %v2892
        %v2925 = vtanh.pop %v2893
        %v2926 = vtanh.pop %v2894
        %v2927 = vld [vmem:[%s9] sm:$0xff]
        %v2928 = vld [vmem:[%s9 + $0x8] sm:$0xff]
        %v2929 = vld [vmem:[%s9 + $0x10] sm:$0xff]
        %v2930 = vld [vmem:[%s9 + $0x18] sm:$0x3f]
        %v2931 = vpack.c.bf16 %v2928, %v2927
        %v2932 = vpack.c.bf16 %v2930, %v2929
        %v2933 = vpack.c.bf16 %v2896, %v2895
        %v2934 = vpack.c.bf16 %v2898, %v2897
        %v2935 = vpack.c.bf16 %v2900, %v2899
        %v2936 = vpack.c.bf16 %v2902, %v2901
        %v2937 = vpack.c.bf16 %v2904, %v2903
        %v2938 = vpack.c.bf16 %v2906, %v2905
        %v2939 = vpack.c.bf16 %v2908, %v2907
        %v2940 = vpack.c.bf16 %v2910, %v2909
        %v2941 = vpack.c.bf16 %v2912, %v2911
        %v2942 = vpack.c.bf16 %v2914, %v2913
        %v2943 = vpack.c.bf16 %v2916, %v2915
        %v2944 = vpack.c.bf16 %v2918, %v2917
        %v2945 = vpack.c.bf16 %v2920, %v2919
        %v2946 = vpack.c.bf16 %v2922, %v2921
        %v2947 = vpack.c.bf16 %v2924, %v2923
        %v2948 = vpack.c.bf16 %v2926, %v2925
        %v2949 = vld [vmem:[%s10] sm:$0xff]
        %v2950 = vld [vmem:[%s10 + $0x8] sm:$0xff]
        %v2951 = vld [vmem:[%s10 + $0x10] sm:$0xff]
        %v2952 = vld [vmem:[%s10 + $0x18] sm:$0xff]
        %v2953 = vld [vmem:[%s10 + $0x20] sm:$0xff]
        %v2954 = vld [vmem:[%s10 + $0x28] sm:$0xff]
        %v2955 = vld [vmem:[%s10 + $0x30] sm:$0xff]
        %v2956 = vld [vmem:[%s10 + $0x38] sm:$0xff]
        %v2957 = vld [vmem:[%s10 + $0x40] sm:$0xff]
        %v2958 = vld [vmem:[%s10 + $0x48] sm:$0xff]
        %v2959 = vld [vmem:[%s10 + $0x50] sm:$0xff]
        %v2960 = vld [vmem:[%s10 + $0x58] sm:$0xff]
        %v2961 = vld [vmem:[%s10 + $0x60] sm:$0xff]
        %v2962 = vld [vmem:[%s10 + $0x68] sm:$0xff]
        %v2963 = vld [vmem:[%s10 + $0x70] sm:$0xff]
        %v2964 = vld [vmem:[%s10 + $0x78] sm:$0xff]
        %v2965 = vpack.c.bf16 %v2950, %v2949
        %v2966 = vpack.c.bf16 %v2952, %v2951
        %v2967 = vpack.c.bf16 %v2954, %v2953
        %v2968 = vpack.c.bf16 %v2956, %v2955
        %v2969 = vpack.c.bf16 %v2958, %v2957
        %v2970 = vpack.c.bf16 %v2960, %v2959
        %v2971 = vpack.c.bf16 %v2962, %v2961
        %v2972 = vpack.c.bf16 %v2964, %v2963
        %2973 = vmatprep.subr.bf16.mxu0 0
        %2974 = vmatpush1.bf16.msra.mxu0 %v2965
        %2975 = vmatprep.subr.bf16.mxu0 0
        %2976 = vmatpush1.bf16.msra.mxu0 %v2966
        %2977 = vmatprep.subr.bf16.mxu0 0
        %2978 = vmatpush1.bf16.msra.mxu0 %v2967
        %2979 = vmatprep.subr.bf16.mxu0 0
        %2980 = vmatpush1.bf16.msra.mxu0 %v2968
        %2981 = vmatprep.subr.bf16.mxu0 0
        %2982 = vmatpush1.bf16.msra.mxu0 %v2969
        %2983 = vmatprep.subr.bf16.mxu0 0
        %2984 = vmatpush1.bf16.msra.mxu0 %v2970
        %2985 = vmatprep.subr.bf16.mxu0 0
        %2986 = vmatpush1.bf16.msra.mxu0 %v2971
        %2987 = vmatprep.subr.bf16.mxu0 0
        %2988 = vmatpush1.bf16.msra.mxu0 %v2972
        %2989 = vmatprep.subr.bf16.mxu0 0
        %2990 = vmatpush1.bf16.msra.mxu0 0
        %2991 = vmatprep.subr.bf16.mxu0 0
        %2992 = vmatpush1.bf16.msra.mxu0 0
        %2993 = vmatprep.subr.bf16.mxu0 0
        %2994 = vmatpush1.bf16.msra.mxu0 0
        %2995 = vmatprep.subr.bf16.mxu0 0
        %2996 = vmatpush1.bf16.msra.mxu0 0
        %2997 = vmatprep.subr.bf16.mxu0 0
        %2998 = vmatpush1.bf16.msra.mxu0 0
        %2999 = vmatprep.subr.bf16.mxu0 0
        %3000 = vmatpush1.bf16.msra.mxu0 0
        %3001 = vmatprep.subr.bf16.mxu0 0
        %3002 = vmatpush1.bf16.msra.mxu0 0
        %3003 = vmatprep.subr.bf16.mxu0 0
        %3004 = vmatpush1.bf16.msra.mxu0 0
        %3005 = vmatprep.mubr.bf16.mxu0 0
        %3006 = vmatmul.mubr.bf16.gmra.mrb[0].mxu0 %v2933
        %v3007 = vpop.f32.mrb[0].mxu0
        %v3008 = vadd.f32 0.0, %v3007
        %v3009 = vpop.f32.mrb[0].mxu0
        %v3010 = vpop.f32.mrb[0].mxu0
        %v3011 = vadd.f32 0.0, %v3010
        %v3012 = vpop.f32.mrb[0].mxu0
        %3013 = vmatprep.mubr.bf16.mxu0 0
        %3014 = vmatmul.mubr.bf16.gmra.mrb[0].mxu0 %v2934
        %v3015 = vpop.f32.mrb[0].mxu0
        %v3016 = vadd.f32 0.0, %v3015
        %v3017 = vpop.f32.mrb[0].mxu0
        %v3018 = vpop.f32.mrb[0].mxu0
        %v3019 = vadd.f32 0.0, %v3018
        %v3020 = vpop.f32.mrb[0].mxu0
        %3021 = vmatprep.mubr.bf16.mxu0 0
        %3022 = vmatmul.mubr.bf16.gmra.mrb[0].mxu0 %v2935
        %v3023 = vpop.f32.mrb[0].mxu0
        %v3024 = vadd.f32 0.0, %v3023
        %v3025 = vpop.f32.mrb[0].mxu0
        %v3026 = vpop.f32.mrb[0].mxu0
        %v3027 = vadd.f32 0.0, %v3026
        %v3028 = vpop.f32.mrb[0].mxu0
        %3029 = vmatprep.mubr.bf16.mxu0 0
        %3030 = vmatmul.mubr.bf16.gmra.mrb[0].mxu0 %v2936
        %v3031 = vpop.f32.mrb[0].mxu0
        %v3032 = vadd.f32 0.0, %v3031
        %v3033 = vpop.f32.mrb[0].mxu0
        %v3034 = vpop.f32.mrb[0].mxu0
        %v3035 = vadd.f32 0.0, %v3034
        %v3036 = vpop.f32.mrb[0].mxu0
        %3037 = vmatprep.mubr.bf16.mxu0 0
        %3038 = vmatmul.mubr.bf16.gmra.mrb[0].mxu0 %v2937
        %v3039 = vpop.f32.mrb[0].mxu0
        %v3040 = vadd.f32 0.0, %v3039
        %v3041 = vpop.f32.mrb[0].mxu0
        %v3042 = vpop.f32.mrb[0].mxu0
        %v3043 = vadd.f32 0.0, %v3042
        %v3044 = vpop.f32.mrb[0].mxu0
        %3045 = vmatprep.mubr.bf16.mxu0 0
        %3046 = vmatmul.mubr.bf16.gmra.mrb[0].mxu0 %v2938
        %v3047 = vpop.f32.mrb[0].mxu0
        %v3048 = vadd.f32 0.0, %v3047
        %v3049 = vpop.f32.mrb[0].mxu0
        %v3050 = vpop.f32.mrb[0].mxu0
        %v3051 = vadd.f32 0.0, %v3050
        %v3052 = vpop.f32.mrb[0].mxu0
        %3053 = vmatprep.mubr.bf16.mxu0 0
        %3054 = vmatmul.mubr.bf16.gmra.mrb[0].mxu0 %v2939
        %v3055 = vpop.f32.mrb[0].mxu0
        %v3056 = vadd.f32 0.0, %v3055
        %v3057 = vpop.f32.mrb[0].mxu0
        %v3058 = vpop.f32.mrb[0].mxu0
        %v3059 = vadd.f32 0.0, %v3058
        %v3060 = vpop.f32.mrb[0].mxu0
        %3061 = vmatprep.mubr.bf16.mxu0 0
        %3062 = vmatmul.mubr.bf16.gmra.mrb[0].mxu0 %v2940
        %v3063 = vpop.f32.mrb[0].mxu0
        %v3064 = vadd.f32 0.0, %v3063
        %v3065 = vpop.f32.mrb[0].mxu0
        %v3066 = vpop.f32.mrb[0].mxu0
        %v3067 = vadd.f32 0.0, %v3066
        %v3068 = vpop.f32.mrb[0].mxu0
        %3069 = vmatprep.mubr.bf16.mxu0 0
        %3070 = vmatmul.mubr.bf16.gmra.mrb[0].mxu0 %v2941
        %v3071 = vpop.f32.mrb[0].mxu0
        %v3072 = vadd.f32 0.0, %v3071
        %v3073 = vpop.f32.mrb[0].mxu0
        %v3074 = vpop.f32.mrb[0].mxu0
        %v3075 = vadd.f32 0.0, %v3074
        %v3076 = vpop.f32.mrb[0].mxu0
        %3077 = vmatprep.mubr.bf16.mxu0 0
        %3078 = vmatmul.mubr.bf16.gmra.mrb[0].mxu0 %v2942
        %v3079 = vpop.f32.mrb[0].mxu0
        %v3080 = vadd.f32 0.0, %v3079
        %v3081 = vpop.f32.mrb[0].mxu0
        %v3082 = vpop.f32.mrb[0].mxu0
        %v3083 = vadd.f32 0.0, %v3082
        %v3084 = vpop.f32.mrb[0].mxu0
        %3085 = vmatprep.mubr.bf16.mxu0 0
        %3086 = vmatmul.mubr.bf16.gmra.mrb[0].mxu0 %v2943
        %v3087 = vpop.f32.mrb[0].mxu0
        %v3088 = vadd.f32 0.0, %v3087
        %v3089 = vpop.f32.mrb[0].mxu0
        %v3090 = vpop.f32.mrb[0].mxu0
        %v3091 = vadd.f32 0.0, %v3090
        %v3092 = vpop.f32.mrb[0].mxu0
        %3093 = vmatprep.mubr.bf16.mxu0 0
        %3094 = vmatmul.mubr.bf16.gmra.mrb[0].mxu0 %v2944
        %v3095 = vpop.f32.mrb[0].mxu0
        %v3096 = vadd.f32 0.0, %v3095
        %v3097 = vpop.f32.mrb[0].mxu0
        %v3098 = vpop.f32.mrb[0].mxu0
        %v3099 = vadd.f32 0.0, %v3098
        %v3100 = vpop.f32.mrb[0].mxu0
        %3101 = vmatprep.mubr.bf16.mxu0 0
        %3102 = vmatmul.mubr.bf16.gmra.mrb[0].mxu0 %v2945
        %v3103 = vpop.f32.mrb[0].mxu0
        %v3104 = vadd.f32 0.0, %v3103
        %v3105 = vpop.f32.mrb[0].mxu0
        %v3106 = vpop.f32.mrb[0].mxu0
        %v3107 = vadd.f32 0.0, %v3106
        %v3108 = vpop.f32.mrb[0].mxu0
        %3109 = vmatprep.mubr.bf16.mxu0 0
        %3110 = vmatmul.mubr.bf16.gmra.mrb[0].mxu0 %v2946
        %v3111 = vpop.f32.mrb[0].mxu0
        %v3112 = vadd.f32 0.0, %v3111
        %v3113 = vpop.f32.mrb[0].mxu0
        %v3114 = vpop.f32.mrb[0].mxu0
        %v3115 = vadd.f32 0.0, %v3114
        %v3116 = vpop.f32.mrb[0].mxu0
        %3117 = vmatprep.mubr.bf16.mxu0 0
        %3118 = vmatmul.mubr.bf16.gmra.mrb[0].mxu0 %v2947
        %v3119 = vpop.f32.mrb[0].mxu0
        %v3120 = vadd.f32 0.0, %v3119
        %v3121 = vpop.f32.mrb[0].mxu0
        %v3122 = vpop.f32.mrb[0].mxu0
        %v3123 = vadd.f32 0.0, %v3122
        %v3124 = vpop.f32.mrb[0].mxu0
        %3125 = vmatprep.mubr.bf16.mxu0 0
        %3126 = vmatmul.mubr.bf16.gmra.mrb[0].mxu0 %v2948
        %v3127 = vpop.f32.mrb[0].mxu0
        %v3128 = vadd.f32 0.0, %v3127
        %v3129 = vpop.f32.mrb[0].mxu0
        %v3130 = vpop.f32.mrb[0].mxu0
        %v3131 = vadd.f32 0.0, %v3130
        %v3132 = vpop.f32.mrb[0].mxu0
        %3133 = vdwg.mxu0
        %v3135 = vsel %vm2105, %v2932, 0
        %3137 = vmatprep.subr.bf16.mxu0 0
        %3138 = vmatpush1.bf16.msra.mxu0 %v2931
        %3139 = vmatprep.subr.bf16.mxu0 0
        %3140 = vmatpush1.bf16.msra.mxu0 %v3135
        %3141 = vmatprep.subr.bf16.mxu0 0
        %3142 = vmatpush1.bf16.msra.mxu0 0
        %3143 = vmatprep.subr.bf16.mxu0 0
        %3144 = vmatpush1.bf16.msra.mxu0 0
        %3145 = vmatprep.subr.bf16.mxu0 0
        %3146 = vmatpush1.bf16.msra.mxu0 0
        %3147 = vmatprep.subr.bf16.mxu0 0
        %3148 = vmatpush1.bf16.msra.mxu0 0
        %3149 = vmatprep.subr.bf16.mxu0 0
        %3150 = vmatpush1.bf16.msra.mxu0 0
        %3151 = vmatprep.subr.bf16.mxu0 0
        %3152 = vmatpush1.bf16.msra.mxu0 0
        %3153 = vmatprep.subr.bf16.mxu0 0
        %3154 = vmatpush1.bf16.msra.mxu0 0
        %3155 = vmatprep.subr.bf16.mxu0 0
        %3156 = vmatpush1.bf16.msra.mxu0 0
        %3157 = vmatprep.subr.bf16.mxu0 0
        %3158 = vmatpush1.bf16.msra.mxu0 0
        %3159 = vmatprep.subr.bf16.mxu0 0
        %3160 = vmatpush1.bf16.msra.mxu0 0
        %3161 = vmatprep.subr.bf16.mxu0 0
        %3162 = vmatpush1.bf16.msra.mxu0 0
        %3163 = vmatprep.subr.bf16.mxu0 0
        %3164 = vmatpush1.bf16.msra.mxu0 0
        %3165 = vmatprep.subr.bf16.mxu0 0
        %3166 = vmatpush1.bf16.msra.mxu0 0
        %3167 = vmatprep.subr.bf16.mxu0 0
        %3168 = vmatpush1.bf16.msra.mxu0 0
        %3169 = vmatprep.mubr.bf16.mxu0 0
        %3170 = vmatmul.mubr.bf16.gmra.mrb[0].mxu0 %v2073
        %v3171 = vpop.f32.mrb[0].mxu0
        %v3172 = vadd.f32 %v3008, %v3171
        %v3173 = vpop.f32.mrb[0].mxu0
        %v3174 = vpop.f32.mrb[0].mxu0
        %v3175 = vadd.f32 %v3011, %v3174
        %v3176 = vpop.f32.mrb[0].mxu0
        %3177 = vmatprep.mubr.bf16.mxu0 0
        %3178 = vmatmul.mubr.bf16.gmra.mrb[0].mxu0 %v2075
        %v3179 = vpop.f32.mrb[0].mxu0
        %v3180 = vadd.f32 %v3016, %v3179
        %v3181 = vpop.f32.mrb[0].mxu0
        %v3182 = vpop.f32.mrb[0].mxu0
        %v3183 = vadd.f32 %v3019, %v3182
        %v3184 = vpop.f32.mrb[0].mxu0
        %3185 = vmatprep.mubr.bf16.mxu0 0
        %3186 = vmatmul.mubr.bf16.gmra.mrb[0].mxu0 %v2077
        %v3187 = vpop.f32.mrb[0].mxu0
        %v3188 = vadd.f32 %v3024, %v3187
        %v3189 = vpop.f32.mrb[0].mxu0
        %v3190 = vpop.f32.mrb[0].mxu0
        %v3191 = vadd.f32 %v3027, %v3190
        %v3192 = vpop.f32.mrb[0].mxu0
        %3193 = vmatprep.mubr.bf16.mxu0 0
        %3194 = vmatmul.mubr.bf16.gmra.mrb[0].mxu0 %v2079
        %v3195 = vpop.f32.mrb[0].mxu0
        %v3196 = vadd.f32 %v3032, %v3195
        %v3197 = vpop.f32.mrb[0].mxu0
        %v3198 = vpop.f32.mrb[0].mxu0
        %v3199 = vadd.f32 %v3035, %v3198
        %v3200 = vpop.f32.mrb[0].mxu0
        %3201 = vmatprep.mubr.bf16.mxu0 0
        %3202 = vmatmul.mubr.bf16.gmra.mrb[0].mxu0 %v2081
        %v3203 = vpop.f32.mrb[0].mxu0
        %v3204 = vadd.f32 %v3040, %v3203
        %v3205 = vpop.f32.mrb[0].mxu0
        %v3206 = vpop.f32.mrb[0].mxu0
        %v3207 = vadd.f32 %v3043, %v3206
        %v3208 = vpop.f32.mrb[0].mxu0
        %3209 = vmatprep.mubr.bf16.mxu0 0
        %3210 = vmatmul.mubr.bf16.gmra.mrb[0].mxu0 %v2083
        %v3211 = vpop.f32.mrb[0].mxu0
        %v3212 = vadd.f32 %v3048, %v3211
        %v3213 = vpop.f32.mrb[0].mxu0
        %v3214 = vpop.f32.mrb[0].mxu0
        %v3215 = vadd.f32 %v3051, %v3214
        %v3216 = vpop.f32.mrb[0].mxu0
        %3217 = vmatprep.mubr.bf16.mxu0 0
        %3218 = vmatmul.mubr.bf16.gmra.mrb[0].mxu0 %v2085
        %v3219 = vpop.f32.mrb[0].mxu0
        %v3220 = vadd.f32 %v3056, %v3219
        %v3221 = vpop.f32.mrb[0].mxu0
        %v3222 = vpop.f32.mrb[0].mxu0
        %v3223 = vadd.f32 %v3059, %v3222
        %v3224 = vpop.f32.mrb[0].mxu0
        %3225 = vmatprep.mubr.bf16.mxu0 0
        %3226 = vmatmul.mubr.bf16.gmra.mrb[0].mxu0 %v2087
        %v3227 = vpop.f32.mrb[0].mxu0
        %v3228 = vadd.f32 %v3064, %v3227
        %v3229 = vpop.f32.mrb[0].mxu0
        %v3230 = vpop.f32.mrb[0].mxu0
        %v3231 = vadd.f32 %v3067, %v3230
        %v3232 = vpop.f32.mrb[0].mxu0
        %3233 = vmatprep.mubr.bf16.mxu0 0
        %3234 = vmatmul.mubr.bf16.gmra.mrb[0].mxu0 %v2089
        %v3235 = vpop.f32.mrb[0].mxu0
        %v3236 = vadd.f32 %v3072, %v3235
        %v3237 = vpop.f32.mrb[0].mxu0
        %v3238 = vpop.f32.mrb[0].mxu0
        %v3239 = vadd.f32 %v3075, %v3238
        %v3240 = vpop.f32.mrb[0].mxu0
        %3241 = vmatprep.mubr.bf16.mxu0 0
        %3242 = vmatmul.mubr.bf16.gmra.mrb[0].mxu0 %v2091
        %v3243 = vpop.f32.mrb[0].mxu0
        %v3244 = vadd.f32 %v3080, %v3243
        %v3245 = vpop.f32.mrb[0].mxu0
        %v3246 = vpop.f32.mrb[0].mxu0
        %v3247 = vadd.f32 %v3083, %v3246
        %v3248 = vpop.f32.mrb[0].mxu0
        %3249 = vmatprep.mubr.bf16.mxu0 0
        %3250 = vmatmul.mubr.bf16.gmra.mrb[0].mxu0 %v2093
        %v3251 = vpop.f32.mrb[0].mxu0
        %v3252 = vadd.f32 %v3088, %v3251
        %v3253 = vpop.f32.mrb[0].mxu0
        %v3254 = vpop.f32.mrb[0].mxu0
        %v3255 = vadd.f32 %v3091, %v3254
        %v3256 = vpop.f32.mrb[0].mxu0
        %3257 = vmatprep.mubr.bf16.mxu0 0
        %3258 = vmatmul.mubr.bf16.gmra.mrb[0].mxu0 %v2095
        %v3259 = vpop.f32.mrb[0].mxu0
        %v3260 = vadd.f32 %v3096, %v3259
        %v3261 = vpop.f32.mrb[0].mxu0
        %v3262 = vpop.f32.mrb[0].mxu0
        %v3263 = vadd.f32 %v3099, %v3262
        %v3264 = vpop.f32.mrb[0].mxu0
        %3265 = vmatprep.mubr.bf16.mxu0 0
        %3266 = vmatmul.mubr.bf16.gmra.mrb[0].mxu0 %v2097
        %v3267 = vpop.f32.mrb[0].mxu0
        %v3268 = vadd.f32 %v3104, %v3267
        %v3269 = vpop.f32.mrb[0].mxu0
        %v3270 = vpop.f32.mrb[0].mxu0
        %v3271 = vadd.f32 %v3107, %v3270
        %v3272 = vpop.f32.mrb[0].mxu0
        %3273 = vmatprep.mubr.bf16.mxu0 0
        %3274 = vmatmul.mubr.bf16.gmra.mrb[0].mxu0 %v2099
        %v3275 = vpop.f32.mrb[0].mxu0
        %v3276 = vadd.f32 %v3112, %v3275
        %v3277 = vpop.f32.mrb[0].mxu0
        %v3278 = vpop.f32.mrb[0].mxu0
        %v3279 = vadd.f32 %v3115, %v3278
        %v3280 = vpop.f32.mrb[0].mxu0
        %3281 = vmatprep.mubr.bf16.mxu0 0
        %3282 = vmatmul.mubr.bf16.gmra.mrb[0].mxu0 %v2101
        %v3283 = vpop.f32.mrb[0].mxu0
        %v3284 = vadd.f32 %v3120, %v3283
        %v3285 = vpop.f32.mrb[0].mxu0
        %v3286 = vpop.f32.mrb[0].mxu0
        %v3287 = vadd.f32 %v3123, %v3286
        %v3288 = vpop.f32.mrb[0].mxu0
        %3289 = vmatprep.mubr.bf16.mxu0 0
        %3290 = vmatmul.mubr.bf16.gmra.mrb[0].mxu0 %v2103
        %v3291 = vpop.f32.mrb[0].mxu0
        %v3292 = vadd.f32 %v3128, %v3291
        %v3293 = vpop.f32.mrb[0].mxu0
        %v3294 = vpop.f32.mrb[0].mxu0
        %v3295 = vadd.f32 %v3131, %v3294
        %v3296 = vpop.f32.mrb[0].mxu0
        %3297 = vdwg.mxu0
        %v3298 = vld [vmem:[%s11] sm:$0x1]
        %v3300 = vlaneseq
        %v3301 = vshrl.u32 %v3300, 7
        %v3302 = vsub.s32 0, %v3301
        %v3303 = vrot.slane %v3298, %v3302
        %v3305 = vadd.f32 %v3172, %v3303
        %v3306 = vadd.f32 %v3175, %v3303
        %v3307 = vadd.f32 %v3180, %v3303
        %v3308 = vadd.f32 %v3183, %v3303
        %v3309 = vadd.f32 %v3188, %v3303
        %v3310 = vadd.f32 %v3191, %v3303
        %v3311 = vadd.f32 %v3196, %v3303
        %v3312 = vadd.f32 %v3199, %v3303
        %v3313 = vadd.f32 %v3204, %v3303
        %v3314 = vadd.f32 %v3207, %v3303
        %v3315 = vadd.f32 %v3212, %v3303
        %v3316 = vadd.f32 %v3215, %v3303
        %v3317 = vadd.f32 %v3220, %v3303
        %v3318 = vadd.f32 %v3223, %v3303
        %v3319 = vadd.f32 %v3228, %v3303
        %v3320 = vadd.f32 %v3231, %v3303
        %v3321 = vadd.f32 %v3236, %v3303
        %v3322 = vadd.f32 %v3239, %v3303
        %v3323 = vadd.f32 %v3244, %v3303
        %v3324 = vadd.f32 %v3247, %v3303
        %v3325 = vadd.f32 %v3252, %v3303
        %v3326 = vadd.f32 %v3255, %v3303
        %v3327 = vadd.f32 %v3260, %v3303
        %v3328 = vadd.f32 %v3263, %v3303
        %v3329 = vadd.f32 %v3268, %v3303
        %v3330 = vadd.f32 %v3271, %v3303
        %v3331 = vadd.f32 %v3276, %v3303
        %v3332 = vadd.f32 %v3279, %v3303
        %v3333 = vadd.f32 %v3284, %v3303
        %v3334 = vadd.f32 %v3287, %v3303
        %v3335 = vadd.f32 %v3292, %v3303
        %v3336 = vadd.f32 %v3295, %v3303
        %v3337 = vtanh.pop %v3305
        %v3338 = vtanh.pop %v3306
        %v3339 = vtanh.pop %v3307
        %v3340 = vtanh.pop %v3308
        %v3341 = vtanh.pop %v3309
        %v3342 = vtanh.pop %v3310
        %v3343 = vtanh.pop %v3311
        %v3344 = vtanh.pop %v3312
        %v3345 = vtanh.pop %v3313
        %v3346 = vtanh.pop %v3314
        %v3347 = vtanh.pop %v3315
        %v3348 = vtanh.pop %v3316
        %v3349 = vtanh.pop %v3317
        %v3350 = vtanh.pop %v3318
        %v3351 = vtanh.pop %v3319
        %v3352 = vtanh.pop %v3320
        %v3353 = vtanh.pop %v3321
        %v3354 = vtanh.pop %v3322
        %v3355 = vtanh.pop %v3323
        %v3356 = vtanh.pop %v3324
        %v3357 = vtanh.pop %v3325
        %v3358 = vtanh.pop %v3326
        %v3359 = vtanh.pop %v3327
        %v3360 = vtanh.pop %v3328
        %v3361 = vtanh.pop %v3329
        %v3362 = vtanh.pop %v3330
        %v3363 = vtanh.pop %v3331
        %v3364 = vtanh.pop %v3332
        %v3365 = vtanh.pop %v3333
        %v3366 = vtanh.pop %v3334
        %v3367 = vtanh.pop %v3335
        %v3368 = vtanh.pop %v3336
        %v3369 = vld [vmem:[%s12] sm:$0xff]
        %v3370 = vld [vmem:[%s12 + $0x8] sm:$0xff]
        %v3371 = vld [vmem:[%s12 + $0x10] sm:$0xff]
        %v3372 = vld [vmem:[%s12 + $0x18] sm:$0x3f]
        %v3373 = vpack.c.bf16 %v3370, %v3369
        %v3374 = vpack.c.bf16 %v3372, %v3371
        %v3375 = vpack.c.bf16 %v3338, %v3337
        %v3376 = vpack.c.bf16 %v3340, %v3339
        %v3377 = vpack.c.bf16 %v3342, %v3341
        %v3378 = vpack.c.bf16 %v3344, %v3343
        %v3379 = vpack.c.bf16 %v3346, %v3345
        %v3380 = vpack.c.bf16 %v3348, %v3347
        %v3381 = vpack.c.bf16 %v3350, %v3349
        %v3382 = vpack.c.bf16 %v3352, %v3351
        %v3383 = vpack.c.bf16 %v3354, %v3353
        %v3384 = vpack.c.bf16 %v3356, %v3355
        %v3385 = vpack.c.bf16 %v3358, %v3357
        %v3386 = vpack.c.bf16 %v3360, %v3359
        %v3387 = vpack.c.bf16 %v3362, %v3361
        %v3388 = vpack.c.bf16 %v3364, %v3363
        %v3389 = vpack.c.bf16 %v3366, %v3365
        %v3390 = vpack.c.bf16 %v3368, %v3367
        %v3391 = vld [vmem:[%s13] sm:$0xff]
        %v3392 = vld [vmem:[%s13 + $0x8] sm:$0xff]
        %v3393 = vld [vmem:[%s13 + $0x10] sm:$0xff]
        %v3394 = vld [vmem:[%s13 + $0x18] sm:$0xff]
        %v3395 = vld [vmem:[%s13 + $0x20] sm:$0xff]
        %v3396 = vld [vmem:[%s13 + $0x28] sm:$0xff]
        %v3397 = vld [vmem:[%s13 + $0x30] sm:$0xff]
        %v3398 = vld [vmem:[%s13 + $0x38] sm:$0xff]
        %v3399 = vpack.c.bf16 %v3392, %v3391
        %v3400 = vpack.c.bf16 %v3394, %v3393
        %v3401 = vpack.c.bf16 %v3396, %v3395
        %v3402 = vpack.c.bf16 %v3398, %v3397
        %vm3403 = vcmask 523264
        %v3405 = vsel %vm3403, %v3375, 0
        %v3408 = vsel %vm3403, %v3376, 0
        %v3411 = vsel %vm3403, %v3377, 0
        %v3414 = vsel %vm3403, %v3378, 0
        %v3417 = vsel %vm3403, %v3379, 0
        %v3420 = vsel %vm3403, %v3380, 0
        %v3423 = vsel %vm3403, %v3381, 0
        %v3426 = vsel %vm3403, %v3382, 0
        %v3429 = vsel %vm3403, %v3383, 0
        %v3432 = vsel %vm3403, %v3384, 0
        %v3435 = vsel %vm3403, %v3385, 0
        %v3438 = vsel %vm3403, %v3386, 0
        %v3441 = vsel %vm3403, %v3387, 0
        %v3444 = vsel %vm3403, %v3388, 0
        %v3447 = vsel %vm3403, %v3389, 0
        %v3450 = vsel %vm3403, %v3390, 0
        %3452 = vmatprep.subr.bf16.mxu0 0
        %3453 = vmatpush1.bf16.msra.mxu0 %v3399
        %3454 = vmatprep.subr.bf16.mxu0 0
        %3455 = vmatpush1.bf16.msra.mxu0 %v3400
        %3456 = vmatprep.subr.bf16.mxu0 0
        %3457 = vmatpush1.bf16.msra.mxu0 %v3401
        %3458 = vmatprep.subr.bf16.mxu0 0
        %3459 = vmatpush1.bf16.msra.mxu0 %v3402
        %3460 = vmatprep.subr.bf16.mxu0 0
        %3461 = vmatpush1.bf16.msra.mxu0 0
        %3462 = vmatprep.subr.bf16.mxu0 0
        %3463 = vmatpush1.bf16.msra.mxu0 0
        %3464 = vmatprep.subr.bf16.mxu0 0
        %3465 = vmatpush1.bf16.msra.mxu0 0
        %3466 = vmatprep.subr.bf16.mxu0 0
        %3467 = vmatpush1.bf16.msra.mxu0 0
        %3468 = vmatprep.subr.bf16.mxu0 0
        %3469 = vmatpush1.bf16.msra.mxu0 0
        %3470 = vmatprep.subr.bf16.mxu0 0
        %3471 = vmatpush1.bf16.msra.mxu0 0
        %3472 = vmatprep.subr.bf16.mxu0 0
        %3473 = vmatpush1.bf16.msra.mxu0 0
        %3474 = vmatprep.subr.bf16.mxu0 0
        %3475 = vmatpush1.bf16.msra.mxu0 0
        %3476 = vmatprep.subr.bf16.mxu0 0
        %3477 = vmatpush1.bf16.msra.mxu0 0
        %3478 = vmatprep.subr.bf16.mxu0 0
        %3479 = vmatpush1.bf16.msra.mxu0 0
        %3480 = vmatprep.subr.bf16.mxu0 0
        %3481 = vmatpush1.bf16.msra.mxu0 0
        %3482 = vmatprep.subr.bf16.mxu0 0
        %3483 = vmatpush1.bf16.msra.mxu0 0
        %3484 = vmatprep.mubr.bf16.mxu0 0
        %3485 = vmatmul.mubr.bf16.gmra.mrb[0].mxu0 %v3405
        %v3486 = vpop.f32.mrb[0].mxu0
        %v3487 = vadd.f32 0.0, %v3486
        %v3488 = vpop.f32.mrb[0].mxu0
        %v3489 = vpop.f32.mrb[0].mxu0
        %v3490 = vadd.f32 0.0, %v3489
        %v3491 = vpop.f32.mrb[0].mxu0
        %3492 = vmatprep.mubr.bf16.mxu0 0
        %3493 = vmatmul.mubr.bf16.gmra.mrb[0].mxu0 %v3408
        %v3494 = vpop.f32.mrb[0].mxu0
        %v3495 = vadd.f32 0.0, %v3494
        %v3496 = vpop.f32.mrb[0].mxu0
        %v3497 = vpop.f32.mrb[0].mxu0
        %v3498 = vadd.f32 0.0, %v3497
        %v3499 = vpop.f32.mrb[0].mxu0
        %3500 = vmatprep.mubr.bf16.mxu0 0
        %3501 = vmatmul.mubr.bf16.gmra.mrb[0].mxu0 %v3411
        %v3502 = vpop.f32.mrb[0].mxu0
        %v3503 = vadd.f32 0.0, %v3502
        %v3504 = vpop.f32.mrb[0].mxu0
        %v3505 = vpop.f32.mrb[0].mxu0
        %v3506 = vadd.f32 0.0, %v3505
        %v3507 = vpop.f32.mrb[0].mxu0
        %3508 = vmatprep.mubr.bf16.mxu0 0
        %3509 = vmatmul.mubr.bf16.gmra.mrb[0].mxu0 %v3414
        %v3510 = vpop.f32.mrb[0].mxu0
        %v3511 = vadd.f32 0.0, %v3510
        %v3512 = vpop.f32.mrb[0].mxu0
        %v3513 = vpop.f32.mrb[0].mxu0
        %v3514 = vadd.f32 0.0, %v3513
        %v3515 = vpop.f32.mrb[0].mxu0
        %3516 = vmatprep.mubr.bf16.mxu0 0
        %3517 = vmatmul.mubr.bf16.gmra.mrb[0].mxu0 %v3417
        %v3518 = vpop.f32.mrb[0].mxu0
        %v3519 = vadd.f32 0.0, %v3518
        %v3520 = vpop.f32.mrb[0].mxu0
        %v3521 = vpop.f32.mrb[0].mxu0
        %v3522 = vadd.f32 0.0, %v3521
        %v3523 = vpop.f32.mrb[0].mxu0
        %3524 = vmatprep.mubr.bf16.mxu0 0
        %3525 = vmatmul.mubr.bf16.gmra.mrb[0].mxu0 %v3420
        %v3526 = vpop.f32.mrb[0].mxu0
        %v3527 = vadd.f32 0.0, %v3526
        %v3528 = vpop.f32.mrb[0].mxu0
        %v3529 = vpop.f32.mrb[0].mxu0
        %v3530 = vadd.f32 0.0, %v3529
        %v3531 = vpop.f32.mrb[0].mxu0
        %3532 = vmatprep.mubr.bf16.mxu0 0
        %3533 = vmatmul.mubr.bf16.gmra.mrb[0].mxu0 %v3423
        %v3534 = vpop.f32.mrb[0].mxu0
        %v3535 = vadd.f32 0.0, %v3534
        %v3536 = vpop.f32.mrb[0].mxu0
        %v3537 = vpop.f32.mrb[0].mxu0
        %v3538 = vadd.f32 0.0, %v3537
        %v3539 = vpop.f32.mrb[0].mxu0
        %3540 = vmatprep.mubr.bf16.mxu0 0
        %3541 = vmatmul.mubr.bf16.gmra.mrb[0].mxu0 %v3426
        %v3542 = vpop.f32.mrb[0].mxu0
        %v3543 = vadd.f32 0.0, %v3542
        %v3544 = vpop.f32.mrb[0].mxu0
        %v3545 = vpop.f32.mrb[0].mxu0
        %v3546 = vadd.f32 0.0, %v3545
        %v3547 = vpop.f32.mrb[0].mxu0
        %3548 = vmatprep.mubr.bf16.mxu0 0
        %3549 = vmatmul.mubr.bf16.gmra.mrb[0].mxu0 %v3429
        %v3550 = vpop.f32.mrb[0].mxu0
        %v3551 = vadd.f32 0.0, %v3550
        %v3552 = vpop.f32.mrb[0].mxu0
        %v3553 = vpop.f32.mrb[0].mxu0
        %v3554 = vadd.f32 0.0, %v3553
        %v3555 = vpop.f32.mrb[0].mxu0
        %3556 = vmatprep.mubr.bf16.mxu0 0
        %3557 = vmatmul.mubr.bf16.gmra.mrb[0].mxu0 %v3432
        %v3558 = vpop.f32.mrb[0].mxu0
        %v3559 = vadd.f32 0.0, %v3558
        %v3560 = vpop.f32.mrb[0].mxu0
        %v3561 = vpop.f32.mrb[0].mxu0
        %v3562 = vadd.f32 0.0, %v3561
        %v3563 = vpop.f32.mrb[0].mxu0
        %3564 = vmatprep.mubr.bf16.mxu0 0
        %3565 = vmatmul.mubr.bf16.gmra.mrb[0].mxu0 %v3435
        %v3566 = vpop.f32.mrb[0].mxu0
        %v3567 = vadd.f32 0.0, %v3566
        %v3568 = vpop.f32.mrb[0].mxu0
        %v3569 = vpop.f32.mrb[0].mxu0
        %v3570 = vadd.f32 0.0, %v3569
        %v3571 = vpop.f32.mrb[0].mxu0
        %3572 = vmatprep.mubr.bf16.mxu0 0
        %3573 = vmatmul.mubr.bf16.gmra.mrb[0].mxu0 %v3438
        %v3574 = vpop.f32.mrb[0].mxu0
        %v3575 = vadd.f32 0.0, %v3574
        %v3576 = vpop.f32.mrb[0].mxu0
        %v3577 = vpop.f32.mrb[0].mxu0
        %v3578 = vadd.f32 0.0, %v3577
        %v3579 = vpop.f32.mrb[0].mxu0
        %3580 = vmatprep.mubr.bf16.mxu0 0
        %3581 = vmatmul.mubr.bf16.gmra.mrb[0].mxu0 %v3441
        %v3582 = vpop.f32.mrb[0].mxu0
        %v3583 = vadd.f32 0.0, %v3582
        %v3584 = vpop.f32.mrb[0].mxu0
        %v3585 = vpop.f32.mrb[0].mxu0
        %v3586 = vadd.f32 0.0, %v3585
        %v3587 = vpop.f32.mrb[0].mxu0
        %3588 = vmatprep.mubr.bf16.mxu0 0
        %3589 = vmatmul.mubr.bf16.gmra.mrb[0].mxu0 %v3444
        %v3590 = vpop.f32.mrb[0].mxu0
        %v3591 = vadd.f32 0.0, %v3590
        %v3592 = vpop.f32.mrb[0].mxu0
        %v3593 = vpop.f32.mrb[0].mxu0
        %v3594 = vadd.f32 0.0, %v3593
        %v3595 = vpop.f32.mrb[0].mxu0
        %3596 = vmatprep.mubr.bf16.mxu0 0
        %3597 = vmatmul.mubr.bf16.gmra.mrb[0].mxu0 %v3447
        %v3598 = vpop.f32.mrb[0].mxu0
        %v3599 = vadd.f32 0.0, %v3598
        %v3600 = vpop.f32.mrb[0].mxu0
        %v3601 = vpop.f32.mrb[0].mxu0
        %v3602 = vadd.f32 0.0, %v3601
        %v3603 = vpop.f32.mrb[0].mxu0
        %3604 = vmatprep.mubr.bf16.mxu0 0
        %3605 = vmatmul.mubr.bf16.gmra.mrb[0].mxu0 %v3450
        %v3606 = vpop.f32.mrb[0].mxu0
        %v3607 = vadd.f32 0.0, %v3606
        %v3608 = vpop.f32.mrb[0].mxu0
        %v3609 = vpop.f32.mrb[0].mxu0
        %v3610 = vadd.f32 0.0, %v3609
        %v3611 = vpop.f32.mrb[0].mxu0
        %3612 = vdwg.mxu0
        %v3614 = vsel %vm2105, %v3374, 0
        %3616 = vmatprep.subr.bf16.mxu0 0
        %3617 = vmatpush1.bf16.msra.mxu0 %v3373
        %3618 = vmatprep.subr.bf16.mxu0 0
        %3619 = vmatpush1.bf16.msra.mxu0 %v3614
        %3620 = vmatprep.subr.bf16.mxu0 0
        %3621 = vmatpush1.bf16.msra.mxu0 0
        %3622 = vmatprep.subr.bf16.mxu0 0
        %3623 = vmatpush1.bf16.msra.mxu0 0
        %3624 = vmatprep.subr.bf16.mxu0 0
        %3625 = vmatpush1.bf16.msra.mxu0 0
        %3626 = vmatprep.subr.bf16.mxu0 0
        %3627 = vmatpush1.bf16.msra.mxu0 0
        %3628 = vmatprep.subr.bf16.mxu0 0
        %3629 = vmatpush1.bf16.msra.mxu0 0
        %3630 = vmatprep.subr.bf16.mxu0 0
        %3631 = vmatpush1.bf16.msra.mxu0 0
        %3632 = vmatprep.subr.bf16.mxu0 0
        %3633 = vmatpush1.bf16.msra.mxu0 0
        %3634 = vmatprep.subr.bf16.mxu0 0
        %3635 = vmatpush1.bf16.msra.mxu0 0
        %3636 = vmatprep.subr.bf16.mxu0 0
        %3637 = vmatpush1.bf16.msra.mxu0 0
        %3638 = vmatprep.subr.bf16.mxu0 0
        %3639 = vmatpush1.bf16.msra.mxu0 0
        %3640 = vmatprep.subr.bf16.mxu0 0
        %3641 = vmatpush1.bf16.msra.mxu0 0
        %3642 = vmatprep.subr.bf16.mxu0 0
        %3643 = vmatpush1.bf16.msra.mxu0 0
        %3644 = vmatprep.subr.bf16.mxu0 0
        %3645 = vmatpush1.bf16.msra.mxu0 0
        %3646 = vmatprep.subr.bf16.mxu0 0
        %3647 = vmatpush1.bf16.msra.mxu0 0
        %3648 = vmatprep.mubr.bf16.mxu0 0
        %3649 = vmatmul.mubr.bf16.gmra.mrb[0].mxu0 %v2073
        %v3650 = vpop.f32.mrb[0].mxu0
        %v3651 = vadd.f32 %v3487, %v3650
        %v3652 = vpop.f32.mrb[0].mxu0
        %v3653 = vpop.f32.mrb[0].mxu0
        %v3654 = vadd.f32 %v3490, %v3653
        %v3655 = vpop.f32.mrb[0].mxu0
        %3656 = vmatprep.mubr.bf16.mxu0 0
        %3657 = vmatmul.mubr.bf16.gmra.mrb[0].mxu0 %v2075
        %v3658 = vpop.f32.mrb[0].mxu0
        %v3659 = vadd.f32 %v3495, %v3658
        %v3660 = vpop.f32.mrb[0].mxu0
        %v3661 = vpop.f32.mrb[0].mxu0
        %v3662 = vadd.f32 %v3498, %v3661
        %v3663 = vpop.f32.mrb[0].mxu0
        %3664 = vmatprep.mubr.bf16.mxu0 0
        %3665 = vmatmul.mubr.bf16.gmra.mrb[0].mxu0 %v2077
        %v3666 = vpop.f32.mrb[0].mxu0
        %v3667 = vadd.f32 %v3503, %v3666
        %v3668 = vpop.f32.mrb[0].mxu0
        %v3669 = vpop.f32.mrb[0].mxu0
        %v3670 = vadd.f32 %v3506, %v3669
        %v3671 = vpop.f32.mrb[0].mxu0
        %3672 = vmatprep.mubr.bf16.mxu0 0
        %3673 = vmatmul.mubr.bf16.gmra.mrb[0].mxu0 %v2079
        %v3674 = vpop.f32.mrb[0].mxu0
        %v3675 = vadd.f32 %v3511, %v3674
        %v3676 = vpop.f32.mrb[0].mxu0
        %v3677 = vpop.f32.mrb[0].mxu0
        %v3678 = vadd.f32 %v3514, %v3677
        %v3679 = vpop.f32.mrb[0].mxu0
        %3680 = vmatprep.mubr.bf16.mxu0 0
        %3681 = vmatmul.mubr.bf16.gmra.mrb[0].mxu0 %v2081
        %v3682 = vpop.f32.mrb[0].mxu0
        %v3683 = vadd.f32 %v3519, %v3682
        %v3684 = vpop.f32.mrb[0].mxu0
        %v3685 = vpop.f32.mrb[0].mxu0
        %v3686 = vadd.f32 %v3522, %v3685
        %v3687 = vpop.f32.mrb[0].mxu0
        %3688 = vmatprep.mubr.bf16.mxu0 0
        %3689 = vmatmul.mubr.bf16.gmra.mrb[0].mxu0 %v2083
        %v3690 = vpop.f32.mrb[0].mxu0
        %v3691 = vadd.f32 %v3527, %v3690
        %v3692 = vpop.f32.mrb[0].mxu0
        %v3693 = vpop.f32.mrb[0].mxu0
        %v3694 = vadd.f32 %v3530, %v3693
        %v3695 = vpop.f32.mrb[0].mxu0
        %3696 = vmatprep.mubr.bf16.mxu0 0
        %3697 = vmatmul.mubr.bf16.gmra.mrb[0].mxu0 %v2085
        %v3698 = vpop.f32.mrb[0].mxu0
        %v3699 = vadd.f32 %v3535, %v3698
        %v3700 = vpop.f32.mrb[0].mxu0
        %v3701 = vpop.f32.mrb[0].mxu0
        %v3702 = vadd.f32 %v3538, %v3701
        %v3703 = vpop.f32.mrb[0].mxu0
        %3704 = vmatprep.mubr.bf16.mxu0 0
        %3705 = vmatmul.mubr.bf16.gmra.mrb[0].mxu0 %v2087
        %v3706 = vpop.f32.mrb[0].mxu0
        %v3707 = vadd.f32 %v3543, %v3706
        %v3708 = vpop.f32.mrb[0].mxu0
        %v3709 = vpop.f32.mrb[0].mxu0
        %v3710 = vadd.f32 %v3546, %v3709
        %v3711 = vpop.f32.mrb[0].mxu0
        %3712 = vmatprep.mubr.bf16.mxu0 0
        %3713 = vmatmul.mubr.bf16.gmra.mrb[0].mxu0 %v2089
        %v3714 = vpop.f32.mrb[0].mxu0
        %v3715 = vadd.f32 %v3551, %v3714
        %v3716 = vpop.f32.mrb[0].mxu0
        %v3717 = vpop.f32.mrb[0].mxu0
        %v3718 = vadd.f32 %v3554, %v3717
        %v3719 = vpop.f32.mrb[0].mxu0
        %3720 = vmatprep.mubr.bf16.mxu0 0
        %3721 = vmatmul.mubr.bf16.gmra.mrb[0].mxu0 %v2091
        %v3722 = vpop.f32.mrb[0].mxu0
        %v3723 = vadd.f32 %v3559, %v3722
        %v3724 = vpop.f32.mrb[0].mxu0
        %v3725 = vpop.f32.mrb[0].mxu0
        %v3726 = vadd.f32 %v3562, %v3725
        %v3727 = vpop.f32.mrb[0].mxu0
        %3728 = vmatprep.mubr.bf16.mxu0 0
        %3729 = vmatmul.mubr.bf16.gmra.mrb[0].mxu0 %v2093
        %v3730 = vpop.f32.mrb[0].mxu0
        %v3731 = vadd.f32 %v3567, %v3730
        %v3732 = vpop.f32.mrb[0].mxu0
        %v3733 = vpop.f32.mrb[0].mxu0
        %v3734 = vadd.f32 %v3570, %v3733
        %v3735 = vpop.f32.mrb[0].mxu0
        %3736 = vmatprep.mubr.bf16.mxu0 0
        %3737 = vmatmul.mubr.bf16.gmra.mrb[0].mxu0 %v2095
        %v3738 = vpop.f32.mrb[0].mxu0
        %v3739 = vadd.f32 %v3575, %v3738
        %v3740 = vpop.f32.mrb[0].mxu0
        %v3741 = vpop.f32.mrb[0].mxu0
        %v3742 = vadd.f32 %v3578, %v3741
        %v3743 = vpop.f32.mrb[0].mxu0
        %3744 = vmatprep.mubr.bf16.mxu0 0
        %3745 = vmatmul.mubr.bf16.gmra.mrb[0].mxu0 %v2097
        %v3746 = vpop.f32.mrb[0].mxu0
        %v3747 = vadd.f32 %v3583, %v3746
        %v3748 = vpop.f32.mrb[0].mxu0
        %v3749 = vpop.f32.mrb[0].mxu0
        %v3750 = vadd.f32 %v3586, %v3749
        %v3751 = vpop.f32.mrb[0].mxu0
        %3752 = vmatprep.mubr.bf16.mxu0 0
        %3753 = vmatmul.mubr.bf16.gmra.mrb[0].mxu0 %v2099
        %v3754 = vpop.f32.mrb[0].mxu0
        %v3755 = vadd.f32 %v3591, %v3754
        %v3756 = vpop.f32.mrb[0].mxu0
        %v3757 = vpop.f32.mrb[0].mxu0
        %v3758 = vadd.f32 %v3594, %v3757
        %v3759 = vpop.f32.mrb[0].mxu0
        %3760 = vmatprep.mubr.bf16.mxu0 0
        %3761 = vmatmul.mubr.bf16.gmra.mrb[0].mxu0 %v2101
        %v3762 = vpop.f32.mrb[0].mxu0
        %v3763 = vadd.f32 %v3599, %v3762
        %v3764 = vpop.f32.mrb[0].mxu0
        %v3765 = vpop.f32.mrb[0].mxu0
        %v3766 = vadd.f32 %v3602, %v3765
        %v3767 = vpop.f32.mrb[0].mxu0
        %3768 = vmatprep.mubr.bf16.mxu0 0
        %3769 = vmatmul.mubr.bf16.gmra.mrb[0].mxu0 %v2103
        %v3770 = vpop.f32.mrb[0].mxu0
        %v3771 = vadd.f32 %v3607, %v3770
        %v3772 = vpop.f32.mrb[0].mxu0
        %v3773 = vpop.f32.mrb[0].mxu0
        %v3774 = vadd.f32 %v3610, %v3773
        %v3775 = vpop.f32.mrb[0].mxu0
        %3776 = vdwg.mxu0
        %v3777 = vld [vmem:[%s14] sm:$0x1]
        %v3779 = vlaneseq
        %v3780 = vshrl.u32 %v3779, 7
        %v3781 = vsub.s32 0, %v3780
        %v3782 = vrot.slane %v3777, %v3781
        %v3784 = vadd.f32 %v3651, %v3782
        %v3785 = vadd.f32 %v3654, %v3782
        %v3786 = vadd.f32 %v3659, %v3782
        %v3787 = vadd.f32 %v3662, %v3782
        %v3788 = vadd.f32 %v3667, %v3782
        %v3789 = vadd.f32 %v3670, %v3782
        %v3790 = vadd.f32 %v3675, %v3782
        %v3791 = vadd.f32 %v3678, %v3782
        %v3792 = vadd.f32 %v3683, %v3782
        %v3793 = vadd.f32 %v3686, %v3782
        %v3794 = vadd.f32 %v3691, %v3782
        %v3795 = vadd.f32 %v3694, %v3782
        %v3796 = vadd.f32 %v3699, %v3782
        %v3797 = vadd.f32 %v3702, %v3782
        %v3798 = vadd.f32 %v3707, %v3782
        %v3799 = vadd.f32 %v3710, %v3782
        %v3800 = vadd.f32 %v3715, %v3782
        %v3801 = vadd.f32 %v3718, %v3782
        %v3802 = vadd.f32 %v3723, %v3782
        %v3803 = vadd.f32 %v3726, %v3782
        %v3804 = vadd.f32 %v3731, %v3782
        %v3805 = vadd.f32 %v3734, %v3782
        %v3806 = vadd.f32 %v3739, %v3782
        %v3807 = vadd.f32 %v3742, %v3782
        %v3808 = vadd.f32 %v3747, %v3782
        %v3809 = vadd.f32 %v3750, %v3782
        %v3810 = vadd.f32 %v3755, %v3782
        %v3811 = vadd.f32 %v3758, %v3782
        %v3812 = vadd.f32 %v3763, %v3782
        %v3813 = vadd.f32 %v3766, %v3782
        %v3814 = vadd.f32 %v3771, %v3782
        %v3815 = vadd.f32 %v3774, %v3782
        %v3816 = vtanh.pop %v3784
        %v3817 = vtanh.pop %v3785
        %v3818 = vtanh.pop %v3786
        %v3819 = vtanh.pop %v3787
        %v3820 = vtanh.pop %v3788
        %v3821 = vtanh.pop %v3789
        %v3822 = vtanh.pop %v3790
        %v3823 = vtanh.pop %v3791
        %v3824 = vtanh.pop %v3792
        %v3825 = vtanh.pop %v3793
        %v3826 = vtanh.pop %v3794
        %v3827 = vtanh.pop %v3795
        %v3828 = vtanh.pop %v3796
        %v3829 = vtanh.pop %v3797
        %v3830 = vtanh.pop %v3798
        %v3831 = vtanh.pop %v3799
        %v3832 = vtanh.pop %v3800
        %v3833 = vtanh.pop %v3801
        %v3834 = vtanh.pop %v3802
        %v3835 = vtanh.pop %v3803
        %v3836 = vtanh.pop %v3804
        %v3837 = vtanh.pop %v3805
        %v3838 = vtanh.pop %v3806
        %v3839 = vtanh.pop %v3807
        %v3840 = vtanh.pop %v3808
        %v3841 = vtanh.pop %v3809
        %v3842 = vtanh.pop %v3810
        %v3843 = vtanh.pop %v3811
        %v3844 = vtanh.pop %v3812
        %v3845 = vtanh.pop %v3813
        %v3846 = vtanh.pop %v3814
        %v3847 = vtanh.pop %v3815
        %v3848 = vld [vmem:[%s15] sm:$0xff]
        %v3849 = vld [vmem:[%s15 + $0x8] sm:$0xff]
        %v3850 = vld [vmem:[%s15 + $0x10] sm:$0xff]
        %v3851 = vld [vmem:[%s15 + $0x18] sm:$0x3f]
        %v3852 = vpack.c.bf16 %v3849, %v3848
        %v3853 = vpack.c.bf16 %v3851, %v3850
        %v3854 = vpack.c.bf16 %v3817, %v3816
        %v3855 = vpack.c.bf16 %v3819, %v3818
        %v3856 = vpack.c.bf16 %v3821, %v3820
        %v3857 = vpack.c.bf16 %v3823, %v3822
        %v3858 = vpack.c.bf16 %v3825, %v3824
        %v3859 = vpack.c.bf16 %v3827, %v3826
        %v3860 = vpack.c.bf16 %v3829, %v3828
        %v3861 = vpack.c.bf16 %v3831, %v3830
        %v3862 = vpack.c.bf16 %v3833, %v3832
        %v3863 = vpack.c.bf16 %v3835, %v3834
        %v3864 = vpack.c.bf16 %v3837, %v3836
        %v3865 = vpack.c.bf16 %v3839, %v3838
        %v3866 = vpack.c.bf16 %v3841, %v3840
        %v3867 = vpack.c.bf16 %v3843, %v3842
        %v3868 = vpack.c.bf16 %v3845, %v3844
        %v3869 = vpack.c.bf16 %v3847, %v3846
        %v3870 = vld [vmem:[%s16] sm:$0xff]
        %v3871 = vld [vmem:[%s16 + $0x8] sm:$0xff]
        %v3872 = vld [vmem:[%s16 + $0x10] sm:$0xff]
        %v3873 = vld [vmem:[%s16 + $0x18] sm:$0xff]
        %v3874 = vpack.c.bf16 %v3871, %v3870
        %v3875 = vpack.c.bf16 %v3873, %v3872
        %vm3876 = vcmask 261120
        %v3878 = vsel %vm3876, %v3854, 0
        %v3881 = vsel %vm3876, %v3855, 0
        %v3884 = vsel %vm3876, %v3856, 0
        %v3887 = vsel %vm3876, %v3857, 0
        %v3890 = vsel %vm3876, %v3858, 0
        %v3893 = vsel %vm3876, %v3859, 0
        %v3896 = vsel %vm3876, %v3860, 0
        %v3899 = vsel %vm3876, %v3861, 0
        %v3902 = vsel %vm3876, %v3862, 0
        %v3905 = vsel %vm3876, %v3863, 0
        %v3908 = vsel %vm3876, %v3864, 0
        %v3911 = vsel %vm3876, %v3865, 0
        %v3914 = vsel %vm3876, %v3866, 0
        %v3917 = vsel %vm3876, %v3867, 0
        %v3920 = vsel %vm3876, %v3868, 0
        %v3923 = vsel %vm3876, %v3869, 0
        %3925 = vmatprep.subr.bf16.mxu0 0
        %3926 = vmatpush1.bf16.msra.mxu0 %v3874
        %3927 = vmatprep.subr.bf16.mxu0 0
        %3928 = vmatpush1.bf16.msra.mxu0 %v3875
        %3929 = vmatprep.subr.bf16.mxu0 0
        %3930 = vmatpush1.bf16.msra.mxu0 0
        %3931 = vmatprep.subr.bf16.mxu0 0
        %3932 = vmatpush1.bf16.msra.mxu0 0
        %3933 = vmatprep.subr.bf16.mxu0 0
        %3934 = vmatpush1.bf16.msra.mxu0 0
        %3935 = vmatprep.subr.bf16.mxu0 0
        %3936 = vmatpush1.bf16.msra.mxu0 0
        %3937 = vmatprep.subr.bf16.mxu0 0
        %3938 = vmatpush1.bf16.msra.mxu0 0
        %3939 = vmatprep.subr.bf16.mxu0 0
        %3940 = vmatpush1.bf16.msra.mxu0 0
        %3941 = vmatprep.subr.bf16.mxu0 0
        %3942 = vmatpush1.bf16.msra.mxu0 0
        %3943 = vmatprep.subr.bf16.mxu0 0
        %3944 = vmatpush1.bf16.msra.mxu0 0
        %3945 = vmatprep.subr.bf16.mxu0 0
        %3946 = vmatpush1.bf16.msra.mxu0 0
        %3947 = vmatprep.subr.bf16.mxu0 0
        %3948 = vmatpush1.bf16.msra.mxu0 0
        %3949 = vmatprep.subr.bf16.mxu0 0
        %3950 = vmatpush1.bf16.msra.mxu0 0
        %3951 = vmatprep.subr.bf16.mxu0 0
        %3952 = vmatpush1.bf16.msra.mxu0 0
        %3953 = vmatprep.subr.bf16.mxu0 0
        %3954 = vmatpush1.bf16.msra.mxu0 0
        %3955 = vmatprep.subr.bf16.mxu0 0
        %3956 = vmatpush1.bf16.msra.mxu0 0
        %3957 = vmatprep.mubr.bf16.mxu0 0
        %3958 = vmatmul.mubr.bf16.gmra.mrb[0].mxu0 %v3878
        %v3959 = vpop.f32.mrb[0].mxu0
        %v3960 = vadd.f32 0.0, %v3959
        %v3961 = vpop.f32.mrb[0].mxu0
        %v3962 = vpop.f32.mrb[0].mxu0
        %v3963 = vadd.f32 0.0, %v3962
        %v3964 = vpop.f32.mrb[0].mxu0
        %3965 = vmatprep.mubr.bf16.mxu0 0
        %3966 = vmatmul.mubr.bf16.gmra.mrb[0].mxu0 %v3881
        %v3967 = vpop.f32.mrb[0].mxu0
        %v3968 = vadd.f32 0.0, %v3967
        %v3969 = vpop.f32.mrb[0].mxu0
        %v3970 = vpop.f32.mrb[0].mxu0
        %v3971 = vadd.f32 0.0, %v3970
        %v3972 = vpop.f32.mrb[0].mxu0
        %3973 = vmatprep.mubr.bf16.mxu0 0
        %3974 = vmatmul.mubr.bf16.gmra.mrb[0].mxu0 %v3884
        %v3975 = vpop.f32.mrb[0].mxu0
        %v3976 = vadd.f32 0.0, %v3975
        %v3977 = vpop.f32.mrb[0].mxu0
        %v3978 = vpop.f32.mrb[0].mxu0
        %v3979 = vadd.f32 0.0, %v3978
        %v3980 = vpop.f32.mrb[0].mxu0
        %3981 = vmatprep.mubr.bf16.mxu0 0
        %3982 = vmatmul.mubr.bf16.gmra.mrb[0].mxu0 %v3887
        %v3983 = vpop.f32.mrb[0].mxu0
        %v3984 = vadd.f32 0.0, %v3983
        %v3985 = vpop.f32.mrb[0].mxu0
        %v3986 = vpop.f32.mrb[0].mxu0
        %v3987 = vadd.f32 0.0, %v3986
        %v3988 = vpop.f32.mrb[0].mxu0
        %3989 = vmatprep.mubr.bf16.mxu0 0
        %3990 = vmatmul.mubr.bf16.gmra.mrb[0].mxu0 %v3890
        %v3991 = vpop.f32.mrb[0].mxu0
        %v3992 = vadd.f32 0.0, %v3991
        %v3993 = vpop.f32.mrb[0].mxu0
        %v3994 = vpop.f32.mrb[0].mxu0
        %v3995 = vadd.f32 0.0, %v3994
        %v3996 = vpop.f32.mrb[0].mxu0
        %3997 = vmatprep.mubr.bf16.mxu0 0
        %3998 = vmatmul.mubr.bf16.gmra.mrb[0].mxu0 %v3893
        %v3999 = vpop.f32.mrb[0].mxu0
        %v4000 = vadd.f32 0.0, %v3999
        %v4001 = vpop.f32.mrb[0].mxu0
        %v4002 = vpop.f32.mrb[0].mxu0
        %v4003 = vadd.f32 0.0, %v4002
        %v4004 = vpop.f32.mrb[0].mxu0
        %4005 = vmatprep.mubr.bf16.mxu0 0
        %4006 = vmatmul.mubr.bf16.gmra.mrb[0].mxu0 %v3896
        %v4007 = vpop.f32.mrb[0].mxu0
        %v4008 = vadd.f32 0.0, %v4007
        %v4009 = vpop.f32.mrb[0].mxu0
        %v4010 = vpop.f32.mrb[0].mxu0
        %v4011 = vadd.f32 0.0, %v4010
        %v4012 = vpop.f32.mrb[0].mxu0
        %4013 = vmatprep.mubr.bf16.mxu0 0
        %4014 = vmatmul.mubr.bf16.gmra.mrb[0].mxu0 %v3899
        %v4015 = vpop.f32.mrb[0].mxu0
        %v4016 = vadd.f32 0.0, %v4015
        %v4017 = vpop.f32.mrb[0].mxu0
        %v4018 = vpop.f32.mrb[0].mxu0
        %v4019 = vadd.f32 0.0, %v4018
        %v4020 = vpop.f32.mrb[0].mxu0
        %4021 = vmatprep.mubr.bf16.mxu0 0
        %4022 = vmatmul.mubr.bf16.gmra.mrb[0].mxu0 %v3902
        %v4023 = vpop.f32.mrb[0].mxu0
        %v4024 = vadd.f32 0.0, %v4023
        %v4025 = vpop.f32.mrb[0].mxu0
        %v4026 = vpop.f32.mrb[0].mxu0
        %v4027 = vadd.f32 0.0, %v4026
        %v4028 = vpop.f32.mrb[0].mxu0
        %4029 = vmatprep.mubr.bf16.mxu0 0
        %4030 = vmatmul.mubr.bf16.gmra.mrb[0].mxu0 %v3905
        %v4031 = vpop.f32.mrb[0].mxu0
        %v4032 = vadd.f32 0.0, %v4031
        %v4033 = vpop.f32.mrb[0].mxu0
        %v4034 = vpop.f32.mrb[0].mxu0
        %v4035 = vadd.f32 0.0, %v4034
        %v4036 = vpop.f32.mrb[0].mxu0
        %4037 = vmatprep.mubr.bf16.mxu0 0
        %4038 = vmatmul.mubr.bf16.gmra.mrb[0].mxu0 %v3908
        %v4039 = vpop.f32.mrb[0].mxu0
        %v4040 = vadd.f32 0.0, %v4039
        %v4041 = vpop.f32.mrb[0].mxu0
        %v4042 = vpop.f32.mrb[0].mxu0
        %v4043 = vadd.f32 0.0, %v4042
        %v4044 = vpop.f32.mrb[0].mxu0
        %4045 = vmatprep.mubr.bf16.mxu0 0
        %4046 = vmatmul.mubr.bf16.gmra.mrb[0].mxu0 %v3911
        %v4047 = vpop.f32.mrb[0].mxu0
        %v4048 = vadd.f32 0.0, %v4047
        %v4049 = vpop.f32.mrb[0].mxu0
        %v4050 = vpop.f32.mrb[0].mxu0
        %v4051 = vadd.f32 0.0, %v4050
        %v4052 = vpop.f32.mrb[0].mxu0
        %4053 = vmatprep.mubr.bf16.mxu0 0
        %4054 = vmatmul.mubr.bf16.gmra.mrb[0].mxu0 %v3914
        %v4055 = vpop.f32.mrb[0].mxu0
        %v4056 = vadd.f32 0.0, %v4055
        %v4057 = vpop.f32.mrb[0].mxu0
        %v4058 = vpop.f32.mrb[0].mxu0
        %v4059 = vadd.f32 0.0, %v4058
        %v4060 = vpop.f32.mrb[0].mxu0
        %4061 = vmatprep.mubr.bf16.mxu0 0
        %4062 = vmatmul.mubr.bf16.gmra.mrb[0].mxu0 %v3917
        %v4063 = vpop.f32.mrb[0].mxu0
        %v4064 = vadd.f32 0.0, %v4063
        %v4065 = vpop.f32.mrb[0].mxu0
        %v4066 = vpop.f32.mrb[0].mxu0
        %v4067 = vadd.f32 0.0, %v4066
        %v4068 = vpop.f32.mrb[0].mxu0
        %4069 = vmatprep.mubr.bf16.mxu0 0
        %4070 = vmatmul.mubr.bf16.gmra.mrb[0].mxu0 %v3920
        %v4071 = vpop.f32.mrb[0].mxu0
        %v4072 = vadd.f32 0.0, %v4071
        %v4073 = vpop.f32.mrb[0].mxu0
        %v4074 = vpop.f32.mrb[0].mxu0
        %v4075 = vadd.f32 0.0, %v4074
        %v4076 = vpop.f32.mrb[0].mxu0
        %4077 = vmatprep.mubr.bf16.mxu0 0
        %4078 = vmatmul.mubr.bf16.gmra.mrb[0].mxu0 %v3923
        %v4079 = vpop.f32.mrb[0].mxu0
        %v4080 = vadd.f32 0.0, %v4079
        %v4081 = vpop.f32.mrb[0].mxu0
        %v4082 = vpop.f32.mrb[0].mxu0
        %v4083 = vadd.f32 0.0, %v4082
        %v4084 = vpop.f32.mrb[0].mxu0
        %4085 = vdwg.mxu0
        %v4087 = vsel %vm2105, %v3853, 0
        %4089 = vmatprep.subr.bf16.mxu0 0
        %4090 = vmatpush1.bf16.msra.mxu0 %v3852
        %4091 = vmatprep.subr.bf16.mxu0 0
        %4092 = vmatpush1.bf16.msra.mxu0 %v4087
        %4093 = vmatprep.subr.bf16.mxu0 0
        %4094 = vmatpush1.bf16.msra.mxu0 0
        %4095 = vmatprep.subr.bf16.mxu0 0
        %4096 = vmatpush1.bf16.msra.mxu0 0
        %4097 = vmatprep.subr.bf16.mxu0 0
        %4098 = vmatpush1.bf16.msra.mxu0 0
        %4099 = vmatprep.subr.bf16.mxu0 0
        %4100 = vmatpush1.bf16.msra.mxu0 0
        %4101 = vmatprep.subr.bf16.mxu0 0
        %4102 = vmatpush1.bf16.msra.mxu0 0
        %4103 = vmatprep.subr.bf16.mxu0 0
        %4104 = vmatpush1.bf16.msra.mxu0 0
        %4105 = vmatprep.subr.bf16.mxu0 0
        %4106 = vmatpush1.bf16.msra.mxu0 0
        %4107 = vmatprep.subr.bf16.mxu0 0
        %4108 = vmatpush1.bf16.msra.mxu0 0
        %4109 = vmatprep.subr.bf16.mxu0 0
        %4110 = vmatpush1.bf16.msra.mxu0 0
        %4111 = vmatprep.subr.bf16.mxu0 0
        %4112 = vmatpush1.bf16.msra.mxu0 0
        %4113 = vmatprep.subr.bf16.mxu0 0
        %4114 = vmatpush1.bf16.msra.mxu0 0
        %4115 = vmatprep.subr.bf16.mxu0 0
        %4116 = vmatpush1.bf16.msra.mxu0 0
        %4117 = vmatprep.subr.bf16.mxu0 0
        %4118 = vmatpush1.bf16.msra.mxu0 0
        %4119 = vmatprep.subr.bf16.mxu0 0
        %4120 = vmatpush1.bf16.msra.mxu0 0
        %4121 = vmatprep.mubr.bf16.mxu0 0
        %4122 = vmatmul.mubr.bf16.gmra.mrb[0].mxu0 %v2073
        %v4123 = vpop.f32.mrb[0].mxu0
        %v4124 = vadd.f32 %v3960, %v4123
        %v4125 = vpop.f32.mrb[0].mxu0
        %v4126 = vpop.f32.mrb[0].mxu0
        %v4127 = vadd.f32 %v3963, %v4126
        %v4128 = vpop.f32.mrb[0].mxu0
        %4129 = vmatprep.mubr.bf16.mxu0 0
        %4130 = vmatmul.mubr.bf16.gmra.mrb[0].mxu0 %v2075
        %v4131 = vpop.f32.mrb[0].mxu0
        %v4132 = vadd.f32 %v3968, %v4131
        %v4133 = vpop.f32.mrb[0].mxu0
        %v4134 = vpop.f32.mrb[0].mxu0
        %v4135 = vadd.f32 %v3971, %v4134
        %v4136 = vpop.f32.mrb[0].mxu0
        %4137 = vmatprep.mubr.bf16.mxu0 0
        %4138 = vmatmul.mubr.bf16.gmra.mrb[0].mxu0 %v2077
        %v4139 = vpop.f32.mrb[0].mxu0
        %v4140 = vadd.f32 %v3976, %v4139
        %v4141 = vpop.f32.mrb[0].mxu0
        %v4142 = vpop.f32.mrb[0].mxu0
        %v4143 = vadd.f32 %v3979, %v4142
        %v4144 = vpop.f32.mrb[0].mxu0
        %4145 = vmatprep.mubr.bf16.mxu0 0
        %4146 = vmatmul.mubr.bf16.gmra.mrb[0].mxu0 %v2079
        %v4147 = vpop.f32.mrb[0].mxu0
        %v4148 = vadd.f32 %v3984, %v4147
        %v4149 = vpop.f32.mrb[0].mxu0
        %v4150 = vpop.f32.mrb[0].mxu0
        %v4151 = vadd.f32 %v3987, %v4150
        %v4152 = vpop.f32.mrb[0].mxu0
        %4153 = vmatprep.mubr.bf16.mxu0 0
        %4154 = vmatmul.mubr.bf16.gmra.mrb[0].mxu0 %v2081
        %v4155 = vpop.f32.mrb[0].mxu0
        %v4156 = vadd.f32 %v3992, %v4155
        %v4157 = vpop.f32.mrb[0].mxu0
        %v4158 = vpop.f32.mrb[0].mxu0
        %v4159 = vadd.f32 %v3995, %v4158
        %v4160 = vpop.f32.mrb[0].mxu0
        %4161 = vmatprep.mubr.bf16.mxu0 0
        %4162 = vmatmul.mubr.bf16.gmra.mrb[0].mxu0 %v2083
        %v4163 = vpop.f32.mrb[0].mxu0
        %v4164 = vadd.f32 %v4000, %v4163
        %v4165 = vpop.f32.mrb[0].mxu0
        %v4166 = vpop.f32.mrb[0].mxu0
        %v4167 = vadd.f32 %v4003, %v4166
        %v4168 = vpop.f32.mrb[0].mxu0
        %4169 = vmatprep.mubr.bf16.mxu0 0
        %4170 = vmatmul.mubr.bf16.gmra.mrb[0].mxu0 %v2085
        %v4171 = vpop.f32.mrb[0].mxu0
        %v4172 = vadd.f32 %v4008, %v4171
        %v4173 = vpop.f32.mrb[0].mxu0
        %v4174 = vpop.f32.mrb[0].mxu0
        %v4175 = vadd.f32 %v4011, %v4174
        %v4176 = vpop.f32.mrb[0].mxu0
        %4177 = vmatprep.mubr.bf16.mxu0 0
        %4178 = vmatmul.mubr.bf16.gmra.mrb[0].mxu0 %v2087
        %v4179 = vpop.f32.mrb[0].mxu0
        %v4180 = vadd.f32 %v4016, %v4179
        %v4181 = vpop.f32.mrb[0].mxu0
        %v4182 = vpop.f32.mrb[0].mxu0
        %v4183 = vadd.f32 %v4019, %v4182
        %v4184 = vpop.f32.mrb[0].mxu0
        %4185 = vmatprep.mubr.bf16.mxu0 0
        %4186 = vmatmul.mubr.bf16.gmra.mrb[0].mxu0 %v2089
        %v4187 = vpop.f32.mrb[0].mxu0
        %v4188 = vadd.f32 %v4024, %v4187
        %v4189 = vpop.f32.mrb[0].mxu0
        %v4190 = vpop.f32.mrb[0].mxu0
        %v4191 = vadd.f32 %v4027, %v4190
        %v4192 = vpop.f32.mrb[0].mxu0
        %4193 = vmatprep.mubr.bf16.mxu0 0
        %4194 = vmatmul.mubr.bf16.gmra.mrb[0].mxu0 %v2091
        %v4195 = vpop.f32.mrb[0].mxu0
        %v4196 = vadd.f32 %v4032, %v4195
        %v4197 = vpop.f32.mrb[0].mxu0
        %v4198 = vpop.f32.mrb[0].mxu0
        %v4199 = vadd.f32 %v4035, %v4198
        %v4200 = vpop.f32.mrb[0].mxu0
        %4201 = vmatprep.mubr.bf16.mxu0 0
        %4202 = vmatmul.mubr.bf16.gmra.mrb[0].mxu0 %v2093
        %v4203 = vpop.f32.mrb[0].mxu0
        %v4204 = vadd.f32 %v4040, %v4203
        %v4205 = vpop.f32.mrb[0].mxu0
        %v4206 = vpop.f32.mrb[0].mxu0
        %v4207 = vadd.f32 %v4043, %v4206
        %v4208 = vpop.f32.mrb[0].mxu0
        %4209 = vmatprep.mubr.bf16.mxu0 0
        %4210 = vmatmul.mubr.bf16.gmra.mrb[0].mxu0 %v2095
        %v4211 = vpop.f32.mrb[0].mxu0
        %v4212 = vadd.f32 %v4048, %v4211
        %v4213 = vpop.f32.mrb[0].mxu0
        %v4214 = vpop.f32.mrb[0].mxu0
        %v4215 = vadd.f32 %v4051, %v4214
        %v4216 = vpop.f32.mrb[0].mxu0
        %4217 = vmatprep.mubr.bf16.mxu0 0
        %4218 = vmatmul.mubr.bf16.gmra.mrb[0].mxu0 %v2097
        %v4219 = vpop.f32.mrb[0].mxu0
        %v4220 = vadd.f32 %v4056, %v4219
        %v4221 = vpop.f32.mrb[0].mxu0
        %v4222 = vpop.f32.mrb[0].mxu0
        %v4223 = vadd.f32 %v4059, %v4222
        %v4224 = vpop.f32.mrb[0].mxu0
        %4225 = vmatprep.mubr.bf16.mxu0 0
        %4226 = vmatmul.mubr.bf16.gmra.mrb[0].mxu0 %v2099
        %v4227 = vpop.f32.mrb[0].mxu0
        %v4228 = vadd.f32 %v4064, %v4227
        %v4229 = vpop.f32.mrb[0].mxu0
        %v4230 = vpop.f32.mrb[0].mxu0
        %v4231 = vadd.f32 %v4067, %v4230
        %v4232 = vpop.f32.mrb[0].mxu0
        %4233 = vmatprep.mubr.bf16.mxu0 0
        %4234 = vmatmul.mubr.bf16.gmra.mrb[0].mxu0 %v2101
        %v4235 = vpop.f32.mrb[0].mxu0
        %v4236 = vadd.f32 %v4072, %v4235
        %v4237 = vpop.f32.mrb[0].mxu0
        %v4238 = vpop.f32.mrb[0].mxu0
        %v4239 = vadd.f32 %v4075, %v4238
        %v4240 = vpop.f32.mrb[0].mxu0
        %4241 = vmatprep.mubr.bf16.mxu0 0
        %4242 = vmatmul.mubr.bf16.gmra.mrb[0].mxu0 %v2103
        %v4243 = vpop.f32.mrb[0].mxu0
        %v4244 = vadd.f32 %v4080, %v4243
        %v4245 = vpop.f32.mrb[0].mxu0
        %v4246 = vpop.f32.mrb[0].mxu0
        %v4247 = vadd.f32 %v4083, %v4246
        %v4248 = vpop.f32.mrb[0].mxu0
        %4249 = vdwg.mxu0
        %v4250 = vld [vmem:[%s17] sm:$0x1]
        %v4252 = vlaneseq
        %v4253 = vshrl.u32 %v4252, 7
        %v4254 = vsub.s32 0, %v4253
        %v4255 = vrot.slane %v4250, %v4254
        %v4257 = vadd.f32 %v4124, %v4255
        %v4258 = vadd.f32 %v4127, %v4255
        %v4259 = vadd.f32 %v4132, %v4255
        %v4260 = vadd.f32 %v4135, %v4255
        %v4261 = vadd.f32 %v4140, %v4255
        %v4262 = vadd.f32 %v4143, %v4255
        %v4263 = vadd.f32 %v4148, %v4255
        %v4264 = vadd.f32 %v4151, %v4255
        %v4265 = vadd.f32 %v4156, %v4255
        %v4266 = vadd.f32 %v4159, %v4255
        %v4267 = vadd.f32 %v4164, %v4255
        %v4268 = vadd.f32 %v4167, %v4255
        %v4269 = vadd.f32 %v4172, %v4255
        %v4270 = vadd.f32 %v4175, %v4255
        %v4271 = vadd.f32 %v4180, %v4255
        %v4272 = vadd.f32 %v4183, %v4255
        %v4273 = vadd.f32 %v4188, %v4255
        %v4274 = vadd.f32 %v4191, %v4255
        %v4275 = vadd.f32 %v4196, %v4255
        %v4276 = vadd.f32 %v4199, %v4255
        %v4277 = vadd.f32 %v4204, %v4255
        %v4278 = vadd.f32 %v4207, %v4255
        %v4279 = vadd.f32 %v4212, %v4255
        %v4280 = vadd.f32 %v4215, %v4255
        %v4281 = vadd.f32 %v4220, %v4255
        %v4282 = vadd.f32 %v4223, %v4255
        %v4283 = vadd.f32 %v4228, %v4255
        %v4284 = vadd.f32 %v4231, %v4255
        %v4285 = vadd.f32 %v4236, %v4255
        %v4286 = vadd.f32 %v4239, %v4255
        %v4287 = vadd.f32 %v4244, %v4255
        %v4288 = vadd.f32 %v4247, %v4255
        %v4289 = vtanh.pop %v4257
        %v4290 = vtanh.pop %v4258
        %v4291 = vtanh.pop %v4259
        %v4292 = vtanh.pop %v4260
        %v4293 = vtanh.pop %v4261
        %v4294 = vtanh.pop %v4262
        %v4295 = vtanh.pop %v4263
        %v4296 = vtanh.pop %v4264
        %v4297 = vtanh.pop %v4265
        %v4298 = vtanh.pop %v4266
        %v4299 = vtanh.pop %v4267
        %v4300 = vtanh.pop %v4268
        %v4301 = vtanh.pop %v4269
        %v4302 = vtanh.pop %v4270
        %v4303 = vtanh.pop %v4271
        %v4304 = vtanh.pop %v4272
        %v4305 = vtanh.pop %v4273
        %v4306 = vtanh.pop %v4274
        %v4307 = vtanh.pop %v4275
        %v4308 = vtanh.pop %v4276
        %v4309 = vtanh.pop %v4277
        %v4310 = vtanh.pop %v4278
        %v4311 = vtanh.pop %v4279
        %v4312 = vtanh.pop %v4280
        %v4313 = vtanh.pop %v4281
        %v4314 = vtanh.pop %v4282
        %v4315 = vtanh.pop %v4283
        %v4316 = vtanh.pop %v4284
        %v4317 = vtanh.pop %v4285
        %v4318 = vtanh.pop %v4286
        %v4319 = vtanh.pop %v4287
        %v4320 = vtanh.pop %v4288
        %v4321 = vld [vmem:[%s18] sm:$0xff]
        %v4322 = vld [vmem:[%s18 + $0x8] sm:$0xff]
        %v4323 = vld [vmem:[%s18 + $0x10] sm:$0xff]
        %v4324 = vld [vmem:[%s18 + $0x18] sm:$0x3f]
        %v4325 = vpack.c.bf16 %v4322, %v4321
        %v4326 = vpack.c.bf16 %v4324, %v4323
        %v4327 = vpack.c.bf16 %v4290, %v4289
        %v4328 = vpack.c.bf16 %v4292, %v4291
        %v4329 = vpack.c.bf16 %v4294, %v4293
        %v4330 = vpack.c.bf16 %v4296, %v4295
        %v4331 = vpack.c.bf16 %v4298, %v4297
        %v4332 = vpack.c.bf16 %v4300, %v4299
        %v4333 = vpack.c.bf16 %v4302, %v4301
        %v4334 = vpack.c.bf16 %v4304, %v4303
        %v4335 = vpack.c.bf16 %v4306, %v4305
        %v4336 = vpack.c.bf16 %v4308, %v4307
        %v4337 = vpack.c.bf16 %v4310, %v4309
        %v4338 = vpack.c.bf16 %v4312, %v4311
        %v4339 = vpack.c.bf16 %v4314, %v4313
        %v4340 = vpack.c.bf16 %v4316, %v4315
        %v4341 = vpack.c.bf16 %v4318, %v4317
        %v4342 = vpack.c.bf16 %v4320, %v4319
        %v4343 = vld [vmem:[%s19] sm:$0xff]
        %v4344 = vld [vmem:[%s19 + $0x8] sm:$0xff]
        %v4345 = vpack.c.bf16 %v4344, %v4343
        %vm4346 = vcmask 130048
        %v4348 = vsel %vm4346, %v4327, 0
        %v4351 = vsel %vm4346, %v4328, 0
        %v4354 = vsel %vm4346, %v4329, 0
        %v4357 = vsel %vm4346, %v4330, 0
        %v4360 = vsel %vm4346, %v4331, 0
        %v4363 = vsel %vm4346, %v4332, 0
        %v4366 = vsel %vm4346, %v4333, 0
        %v4369 = vsel %vm4346, %v4334, 0
        %v4372 = vsel %vm4346, %v4335, 0
        %v4375 = vsel %vm4346, %v4336, 0
        %v4378 = vsel %vm4346, %v4337, 0
        %v4381 = vsel %vm4346, %v4338, 0
        %v4384 = vsel %vm4346, %v4339, 0
        %v4387 = vsel %vm4346, %v4340, 0
        %v4390 = vsel %vm4346, %v4341, 0
        %v4393 = vsel %vm4346, %v4342, 0
        %4395 = vmatprep.subr.bf16.mxu0 0
        %4396 = vmatpush1.bf16.msra.mxu0 %v4345
        %4397 = vmatprep.subr.bf16.mxu0 0
        %4398 = vmatpush1.bf16.msra.mxu0 0
        %4399 = vmatprep.subr.bf16.mxu0 0
        %4400 = vmatpush1.bf16.msra.mxu0 0
        %4401 = vmatprep.subr.bf16.mxu0 0
        %4402 = vmatpush1.bf16.msra.mxu0 0
        %4403 = vmatprep.subr.bf16.mxu0 0
        %4404 = vmatpush1.bf16.msra.mxu0 0
        %4405 = vmatprep.subr.bf16.mxu0 0
        %4406 = vmatpush1.bf16.msra.mxu0 0
        %4407 = vmatprep.subr.bf16.mxu0 0
        %4408 = vmatpush1.bf16.msra.mxu0 0
        %4409 = vmatprep.subr.bf16.mxu0 0
        %4410 = vmatpush1.bf16.msra.mxu0 0
        %4411 = vmatprep.subr.bf16.mxu0 0
        %4412 = vmatpush1.bf16.msra.mxu0 0
        %4413 = vmatprep.subr.bf16.mxu0 0
        %4414 = vmatpush1.bf16.msra.mxu0 0
        %4415 = vmatprep.subr.bf16.mxu0 0
        %4416 = vmatpush1.bf16.msra.mxu0 0
        %4417 = vmatprep.subr.bf16.mxu0 0
        %4418 = vmatpush1.bf16.msra.mxu0 0
        %4419 = vmatprep.subr.bf16.mxu0 0
        %4420 = vmatpush1.bf16.msra.mxu0 0
        %4421 = vmatprep.subr.bf16.mxu0 0
        %4422 = vmatpush1.bf16.msra.mxu0 0
        %4423 = vmatprep.subr.bf16.mxu0 0
        %4424 = vmatpush1.bf16.msra.mxu0 0
        %4425 = vmatprep.subr.bf16.mxu0 0
        %4426 = vmatpush1.bf16.msra.mxu0 0
        %4427 = vmatprep.mubr.bf16.mxu0 0
        %4428 = vmatmul.mubr.bf16.gmra.mrb[0].mxu0 %v4348
        %v4429 = vpop.f32.mrb[0].mxu0
        %v4430 = vadd.f32 0.0, %v4429
        %v4431 = vpop.f32.mrb[0].mxu0
        %v4432 = vpop.f32.mrb[0].mxu0
        %v4433 = vadd.f32 0.0, %v4432
        %v4434 = vpop.f32.mrb[0].mxu0
        %4435 = vmatprep.mubr.bf16.mxu0 0
        %4436 = vmatmul.mubr.bf16.gmra.mrb[0].mxu0 %v4351
        %v4437 = vpop.f32.mrb[0].mxu0
        %v4438 = vadd.f32 0.0, %v4437
        %v4439 = vpop.f32.mrb[0].mxu0
        %v4440 = vpop.f32.mrb[0].mxu0
        %v4441 = vadd.f32 0.0, %v4440
        %v4442 = vpop.f32.mrb[0].mxu0
        %4443 = vmatprep.mubr.bf16.mxu0 0
        %4444 = vmatmul.mubr.bf16.gmra.mrb[0].mxu0 %v4354
        %v4445 = vpop.f32.mrb[0].mxu0
        %v4446 = vadd.f32 0.0, %v4445
        %v4447 = vpop.f32.mrb[0].mxu0
        %v4448 = vpop.f32.mrb[0].mxu0
        %v4449 = vadd.f32 0.0, %v4448
        %v4450 = vpop.f32.mrb[0].mxu0
        %4451 = vmatprep.mubr.bf16.mxu0 0
        %4452 = vmatmul.mubr.bf16.gmra.mrb[0].mxu0 %v4357
        %v4453 = vpop.f32.mrb[0].mxu0
        %v4454 = vadd.f32 0.0, %v4453
        %v4455 = vpop.f32.mrb[0].mxu0
        %v4456 = vpop.f32.mrb[0].mxu0
        %v4457 = vadd.f32 0.0, %v4456
        %v4458 = vpop.f32.mrb[0].mxu0
        %4459 = vmatprep.mubr.bf16.mxu0 0
        %4460 = vmatmul.mubr.bf16.gmra.mrb[0].mxu0 %v4360
        %v4461 = vpop.f32.mrb[0].mxu0
        %v4462 = vadd.f32 0.0, %v4461
        %v4463 = vpop.f32.mrb[0].mxu0
        %v4464 = vpop.f32.mrb[0].mxu0
        %v4465 = vadd.f32 0.0, %v4464
        %v4466 = vpop.f32.mrb[0].mxu0
        %4467 = vmatprep.mubr.bf16.mxu0 0
        %4468 = vmatmul.mubr.bf16.gmra.mrb[0].mxu0 %v4363
        %v4469 = vpop.f32.mrb[0].mxu0
        %v4470 = vadd.f32 0.0, %v4469
        %v4471 = vpop.f32.mrb[0].mxu0
        %v4472 = vpop.f32.mrb[0].mxu0
        %v4473 = vadd.f32 0.0, %v4472
        %v4474 = vpop.f32.mrb[0].mxu0
        %4475 = vmatprep.mubr.bf16.mxu0 0
        %4476 = vmatmul.mubr.bf16.gmra.mrb[0].mxu0 %v4366
        %v4477 = vpop.f32.mrb[0].mxu0
        %v4478 = vadd.f32 0.0, %v4477
        %v4479 = vpop.f32.mrb[0].mxu0
        %v4480 = vpop.f32.mrb[0].mxu0
        %v4481 = vadd.f32 0.0, %v4480
        %v4482 = vpop.f32.mrb[0].mxu0
        %4483 = vmatprep.mubr.bf16.mxu0 0
        %4484 = vmatmul.mubr.bf16.gmra.mrb[0].mxu0 %v4369
        %v4485 = vpop.f32.mrb[0].mxu0
        %v4486 = vadd.f32 0.0, %v4485
        %v4487 = vpop.f32.mrb[0].mxu0
        %v4488 = vpop.f32.mrb[0].mxu0
        %v4489 = vadd.f32 0.0, %v4488
        %v4490 = vpop.f32.mrb[0].mxu0
        %4491 = vmatprep.mubr.bf16.mxu0 0
        %4492 = vmatmul.mubr.bf16.gmra.mrb[0].mxu0 %v4372
        %v4493 = vpop.f32.mrb[0].mxu0
        %v4494 = vadd.f32 0.0, %v4493
        %v4495 = vpop.f32.mrb[0].mxu0
        %v4496 = vpop.f32.mrb[0].mxu0
        %v4497 = vadd.f32 0.0, %v4496
        %v4498 = vpop.f32.mrb[0].mxu0
        %4499 = vmatprep.mubr.bf16.mxu0 0
        %4500 = vmatmul.mubr.bf16.gmra.mrb[0].mxu0 %v4375
        %v4501 = vpop.f32.mrb[0].mxu0
        %v4502 = vadd.f32 0.0, %v4501
        %v4503 = vpop.f32.mrb[0].mxu0
        %v4504 = vpop.f32.mrb[0].mxu0
        %v4505 = vadd.f32 0.0, %v4504
        %v4506 = vpop.f32.mrb[0].mxu0
        %4507 = vmatprep.mubr.bf16.mxu0 0
        %4508 = vmatmul.mubr.bf16.gmra.mrb[0].mxu0 %v4378
        %v4509 = vpop.f32.mrb[0].mxu0
        %v4510 = vadd.f32 0.0, %v4509
        %v4511 = vpop.f32.mrb[0].mxu0
        %v4512 = vpop.f32.mrb[0].mxu0
        %v4513 = vadd.f32 0.0, %v4512
        %v4514 = vpop.f32.mrb[0].mxu0
        %4515 = vmatprep.mubr.bf16.mxu0 0
        %4516 = vmatmul.mubr.bf16.gmra.mrb[0].mxu0 %v4381
        %v4517 = vpop.f32.mrb[0].mxu0
        %v4518 = vadd.f32 0.0, %v4517
        %v4519 = vpop.f32.mrb[0].mxu0
        %v4520 = vpop.f32.mrb[0].mxu0
        %v4521 = vadd.f32 0.0, %v4520
        %v4522 = vpop.f32.mrb[0].mxu0
        %4523 = vmatprep.mubr.bf16.mxu0 0
        %4524 = vmatmul.mubr.bf16.gmra.mrb[0].mxu0 %v4384
        %v4525 = vpop.f32.mrb[0].mxu0
        %v4526 = vadd.f32 0.0, %v4525
        %v4527 = vpop.f32.mrb[0].mxu0
        %v4528 = vpop.f32.mrb[0].mxu0
        %v4529 = vadd.f32 0.0, %v4528
        %v4530 = vpop.f32.mrb[0].mxu0
        %4531 = vmatprep.mubr.bf16.mxu0 0
        %4532 = vmatmul.mubr.bf16.gmra.mrb[0].mxu0 %v4387
        %v4533 = vpop.f32.mrb[0].mxu0
        %v4534 = vadd.f32 0.0, %v4533
        %v4535 = vpop.f32.mrb[0].mxu0
        %v4536 = vpop.f32.mrb[0].mxu0
        %v4537 = vadd.f32 0.0, %v4536
        %v4538 = vpop.f32.mrb[0].mxu0
        %4539 = vmatprep.mubr.bf16.mxu0 0
        %4540 = vmatmul.mubr.bf16.gmra.mrb[0].mxu0 %v4390
        %v4541 = vpop.f32.mrb[0].mxu0
        %v4542 = vadd.f32 0.0, %v4541
        %v4543 = vpop.f32.mrb[0].mxu0
        %v4544 = vpop.f32.mrb[0].mxu0
        %v4545 = vadd.f32 0.0, %v4544
        %v4546 = vpop.f32.mrb[0].mxu0
        %4547 = vmatprep.mubr.bf16.mxu0 0
        %4548 = vmatmul.mubr.bf16.gmra.mrb[0].mxu0 %v4393
        %v4549 = vpop.f32.mrb[0].mxu0
        %v4550 = vadd.f32 0.0, %v4549
        %v4551 = vpop.f32.mrb[0].mxu0
        %v4552 = vpop.f32.mrb[0].mxu0
        %v4553 = vadd.f32 0.0, %v4552
        %v4554 = vpop.f32.mrb[0].mxu0
        %4555 = vdwg.mxu0
        %v4557 = vsel %vm2105, %v4326, 0
        %4559 = vmatprep.subr.bf16.mxu0 0
        %4560 = vmatpush1.bf16.msra.mxu0 %v4325
        %4561 = vmatprep.subr.bf16.mxu0 0
        %4562 = vmatpush1.bf16.msra.mxu0 %v4557
        %4563 = vmatprep.subr.bf16.mxu0 0
        %4564 = vmatpush1.bf16.msra.mxu0 0
        %4565 = vmatprep.subr.bf16.mxu0 0
        %4566 = vmatpush1.bf16.msra.mxu0 0
        %4567 = vmatprep.subr.bf16.mxu0 0
        %4568 = vmatpush1.bf16.msra.mxu0 0
        %4569 = vmatprep.subr.bf16.mxu0 0
        %4570 = vmatpush1.bf16.msra.mxu0 0
        %4571 = vmatprep.subr.bf16.mxu0 0
        %4572 = vmatpush1.bf16.msra.mxu0 0
        %4573 = vmatprep.subr.bf16.mxu0 0
        %4574 = vmatpush1.bf16.msra.mxu0 0
        %4575 = vmatprep.subr.bf16.mxu0 0
        %4576 = vmatpush1.bf16.msra.mxu0 0
        %4577 = vmatprep.subr.bf16.mxu0 0
        %4578 = vmatpush1.bf16.msra.mxu0 0
        %4579 = vmatprep.subr.bf16.mxu0 0
        %4580 = vmatpush1.bf16.msra.mxu0 0
        %4581 = vmatprep.subr.bf16.mxu0 0
        %4582 = vmatpush1.bf16.msra.mxu0 0
        %4583 = vmatprep.subr.bf16.mxu0 0
        %4584 = vmatpush1.bf16.msra.mxu0 0
        %4585 = vmatprep.subr.bf16.mxu0 0
        %4586 = vmatpush1.bf16.msra.mxu0 0
        %4587 = vmatprep.subr.bf16.mxu0 0
        %4588 = vmatpush1.bf16.msra.mxu0 0
        %4589 = vmatprep.subr.bf16.mxu0 0
        %4590 = vmatpush1.bf16.msra.mxu0 0
        %4591 = vmatprep.mubr.bf16.mxu0 0
        %4592 = vmatmul.mubr.bf16.gmra.mrb[0].mxu0 %v2073
        %v4593 = vpop.f32.mrb[0].mxu0
        %v4594 = vadd.f32 %v4430, %v4593
        %v4595 = vpop.f32.mrb[0].mxu0
        %v4596 = vpop.f32.mrb[0].mxu0
        %v4597 = vadd.f32 %v4433, %v4596
        %v4598 = vpop.f32.mrb[0].mxu0
        %4599 = vmatprep.mubr.bf16.mxu0 0
        %4600 = vmatmul.mubr.bf16.gmra.mrb[0].mxu0 %v2075
        %v4601 = vpop.f32.mrb[0].mxu0
        %v4602 = vadd.f32 %v4438, %v4601
        %v4603 = vpop.f32.mrb[0].mxu0
        %v4604 = vpop.f32.mrb[0].mxu0
        %v4605 = vadd.f32 %v4441, %v4604
        %v4606 = vpop.f32.mrb[0].mxu0
        %4607 = vmatprep.mubr.bf16.mxu0 0
        %4608 = vmatmul.mubr.bf16.gmra.mrb[0].mxu0 %v2077
        %v4609 = vpop.f32.mrb[0].mxu0
        %v4610 = vadd.f32 %v4446, %v4609
        %v4611 = vpop.f32.mrb[0].mxu0
        %v4612 = vpop.f32.mrb[0].mxu0
        %v4613 = vadd.f32 %v4449, %v4612
        %v4614 = vpop.f32.mrb[0].mxu0
        %4615 = vmatprep.mubr.bf16.mxu0 0
        %4616 = vmatmul.mubr.bf16.gmra.mrb[0].mxu0 %v2079
        %v4617 = vpop.f32.mrb[0].mxu0
        %v4618 = vadd.f32 %v4454, %v4617
        %v4619 = vpop.f32.mrb[0].mxu0
        %v4620 = vpop.f32.mrb[0].mxu0
        %v4621 = vadd.f32 %v4457, %v4620
        %v4622 = vpop.f32.mrb[0].mxu0
        %4623 = vmatprep.mubr.bf16.mxu0 0
        %4624 = vmatmul.mubr.bf16.gmra.mrb[0].mxu0 %v2081
        %v4625 = vpop.f32.mrb[0].mxu0
        %v4626 = vadd.f32 %v4462, %v4625
        %v4627 = vpop.f32.mrb[0].mxu0
        %v4628 = vpop.f32.mrb[0].mxu0
        %v4629 = vadd.f32 %v4465, %v4628
        %v4630 = vpop.f32.mrb[0].mxu0
        %4631 = vmatprep.mubr.bf16.mxu0 0
        %4632 = vmatmul.mubr.bf16.gmra.mrb[0].mxu0 %v2083
        %v4633 = vpop.f32.mrb[0].mxu0
        %v4634 = vadd.f32 %v4470, %v4633
        %v4635 = vpop.f32.mrb[0].mxu0
        %v4636 = vpop.f32.mrb[0].mxu0
        %v4637 = vadd.f32 %v4473, %v4636
        %v4638 = vpop.f32.mrb[0].mxu0
        %4639 = vmatprep.mubr.bf16.mxu0 0
        %4640 = vmatmul.mubr.bf16.gmra.mrb[0].mxu0 %v2085
        %v4641 = vpop.f32.mrb[0].mxu0
        %v4642 = vadd.f32 %v4478, %v4641
        %v4643 = vpop.f32.mrb[0].mxu0
        %v4644 = vpop.f32.mrb[0].mxu0
        %v4645 = vadd.f32 %v4481, %v4644
        %v4646 = vpop.f32.mrb[0].mxu0
        %4647 = vmatprep.mubr.bf16.mxu0 0
        %4648 = vmatmul.mubr.bf16.gmra.mrb[0].mxu0 %v2087
        %v4649 = vpop.f32.mrb[0].mxu0
        %v4650 = vadd.f32 %v4486, %v4649
        %v4651 = vpop.f32.mrb[0].mxu0
        %v4652 = vpop.f32.mrb[0].mxu0
        %v4653 = vadd.f32 %v4489, %v4652
        %v4654 = vpop.f32.mrb[0].mxu0
        %4655 = vmatprep.mubr.bf16.mxu0 0
        %4656 = vmatmul.mubr.bf16.gmra.mrb[0].mxu0 %v2089
        %v4657 = vpop.f32.mrb[0].mxu0
        %v4658 = vadd.f32 %v4494, %v4657
        %v4659 = vpop.f32.mrb[0].mxu0
        %v4660 = vpop.f32.mrb[0].mxu0
        %v4661 = vadd.f32 %v4497, %v4660
        %v4662 = vpop.f32.mrb[0].mxu0
        %4663 = vmatprep.mubr.bf16.mxu0 0
        %4664 = vmatmul.mubr.bf16.gmra.mrb[0].mxu0 %v2091
        %v4665 = vpop.f32.mrb[0].mxu0
        %v4666 = vadd.f32 %v4502, %v4665
        %v4667 = vpop.f32.mrb[0].mxu0
        %v4668 = vpop.f32.mrb[0].mxu0
        %v4669 = vadd.f32 %v4505, %v4668
        %v4670 = vpop.f32.mrb[0].mxu0
        %4671 = vmatprep.mubr.bf16.mxu0 0
        %4672 = vmatmul.mubr.bf16.gmra.mrb[0].mxu0 %v2093
        %v4673 = vpop.f32.mrb[0].mxu0
        %v4674 = vadd.f32 %v4510, %v4673
        %v4675 = vpop.f32.mrb[0].mxu0
        %v4676 = vpop.f32.mrb[0].mxu0
        %v4677 = vadd.f32 %v4513, %v4676
        %v4678 = vpop.f32.mrb[0].mxu0
        %4679 = vmatprep.mubr.bf16.mxu0 0
        %4680 = vmatmul.mubr.bf16.gmra.mrb[0].mxu0 %v2095
        %v4681 = vpop.f32.mrb[0].mxu0
        %v4682 = vadd.f32 %v4518, %v4681
        %v4683 = vpop.f32.mrb[0].mxu0
        %v4684 = vpop.f32.mrb[0].mxu0
        %v4685 = vadd.f32 %v4521, %v4684
        %v4686 = vpop.f32.mrb[0].mxu0
        %4687 = vmatprep.mubr.bf16.mxu0 0
        %4688 = vmatmul.mubr.bf16.gmra.mrb[0].mxu0 %v2097
        %v4689 = vpop.f32.mrb[0].mxu0
        %v4690 = vadd.f32 %v4526, %v4689
        %v4691 = vpop.f32.mrb[0].mxu0
        %v4692 = vpop.f32.mrb[0].mxu0
        %v4693 = vadd.f32 %v4529, %v4692
        %v4694 = vpop.f32.mrb[0].mxu0
        %4695 = vmatprep.mubr.bf16.mxu0 0
        %4696 = vmatmul.mubr.bf16.gmra.mrb[0].mxu0 %v2099
        %v4697 = vpop.f32.mrb[0].mxu0
        %v4698 = vadd.f32 %v4534, %v4697
        %v4699 = vpop.f32.mrb[0].mxu0
        %v4700 = vpop.f32.mrb[0].mxu0
        %v4701 = vadd.f32 %v4537, %v4700
        %v4702 = vpop.f32.mrb[0].mxu0
        %4703 = vmatprep.mubr.bf16.mxu0 0
        %4704 = vmatmul.mubr.bf16.gmra.mrb[0].mxu0 %v2101
        %v4705 = vpop.f32.mrb[0].mxu0
        %v4706 = vadd.f32 %v4542, %v4705
        %v4707 = vpop.f32.mrb[0].mxu0
        %v4708 = vpop.f32.mrb[0].mxu0
        %v4709 = vadd.f32 %v4545, %v4708
        %v4710 = vpop.f32.mrb[0].mxu0
        %4711 = vmatprep.mubr.bf16.mxu0 0
        %4712 = vmatmul.mubr.bf16.gmra.mrb[0].mxu0 %v2103
        %v4713 = vpop.f32.mrb[0].mxu0
        %v4714 = vadd.f32 %v4550, %v4713
        %v4715 = vpop.f32.mrb[0].mxu0
        %v4716 = vpop.f32.mrb[0].mxu0
        %v4717 = vadd.f32 %v4553, %v4716
        %v4718 = vpop.f32.mrb[0].mxu0
        %4719 = vdwg.mxu0
        %v4720 = vld [vmem:[%s20] sm:$0x1]
        %v4722 = vlaneseq
        %v4723 = vshrl.u32 %v4722, 7
        %v4724 = vsub.s32 0, %v4723
        %v4725 = vrot.slane %v4720, %v4724
        %v4727 = vadd.f32 %v4594, %v4725
        %v4728 = vadd.f32 %v4597, %v4725
        %v4729 = vadd.f32 %v4602, %v4725
        %v4730 = vadd.f32 %v4605, %v4725
        %v4731 = vadd.f32 %v4610, %v4725
        %v4732 = vadd.f32 %v4613, %v4725
        %v4733 = vadd.f32 %v4618, %v4725
        %v4734 = vadd.f32 %v4621, %v4725
        %v4735 = vadd.f32 %v4626, %v4725
        %v4736 = vadd.f32 %v4629, %v4725
        %v4737 = vadd.f32 %v4634, %v4725
        %v4738 = vadd.f32 %v4637, %v4725
        %v4739 = vadd.f32 %v4642, %v4725
        %v4740 = vadd.f32 %v4645, %v4725
        %v4741 = vadd.f32 %v4650, %v4725
        %v4742 = vadd.f32 %v4653, %v4725
        %v4743 = vadd.f32 %v4658, %v4725
        %v4744 = vadd.f32 %v4661, %v4725
        %v4745 = vadd.f32 %v4666, %v4725
        %v4746 = vadd.f32 %v4669, %v4725
        %v4747 = vadd.f32 %v4674, %v4725
        %v4748 = vadd.f32 %v4677, %v4725
        %v4749 = vadd.f32 %v4682, %v4725
        %v4750 = vadd.f32 %v4685, %v4725
        %v4751 = vadd.f32 %v4690, %v4725
        %v4752 = vadd.f32 %v4693, %v4725
        %v4753 = vadd.f32 %v4698, %v4725
        %v4754 = vadd.f32 %v4701, %v4725
        %v4755 = vadd.f32 %v4706, %v4725
        %v4756 = vadd.f32 %v4709, %v4725
        %v4757 = vadd.f32 %v4714, %v4725
        %v4758 = vadd.f32 %v4717, %v4725
        %v4759 = vtanh.pop %v4727
        %v4760 = vtanh.pop %v4728
        %v4761 = vtanh.pop %v4729
        %v4762 = vtanh.pop %v4730
        %v4763 = vtanh.pop %v4731
        %v4764 = vtanh.pop %v4732
        %v4765 = vtanh.pop %v4733
        %v4766 = vtanh.pop %v4734
        %v4767 = vtanh.pop %v4735
        %v4768 = vtanh.pop %v4736
        %v4769 = vtanh.pop %v4737
        %v4770 = vtanh.pop %v4738
        %v4771 = vtanh.pop %v4739
        %v4772 = vtanh.pop %v4740
        %v4773 = vtanh.pop %v4741
        %v4774 = vtanh.pop %v4742
        %v4775 = vtanh.pop %v4743
        %v4776 = vtanh.pop %v4744
        %v4777 = vtanh.pop %v4745
        %v4778 = vtanh.pop %v4746
        %v4779 = vtanh.pop %v4747
        %v4780 = vtanh.pop %v4748
        %v4781 = vtanh.pop %v4749
        %v4782 = vtanh.pop %v4750
        %v4783 = vtanh.pop %v4751
        %v4784 = vtanh.pop %v4752
        %v4785 = vtanh.pop %v4753
        %v4786 = vtanh.pop %v4754
        %v4787 = vtanh.pop %v4755
        %v4788 = vtanh.pop %v4756
        %v4789 = vtanh.pop %v4757
        %v4790 = vtanh.pop %v4758
        %v4791 = vtanh.pop %v740
        %v4792 = vtanh.pop %v741
        %v4793 = vtanh.pop %v742
        %v4794 = vtanh.pop %v743
        %v4795 = vtanh.pop %v744
        %v4796 = vtanh.pop %v745
        %v4797 = vtanh.pop %v746
        %v4798 = vtanh.pop %v747
        %v4799 = vtanh.pop %v748
        %v4800 = vtanh.pop %v749
        %v4801 = vtanh.pop %v750
        %v4802 = vtanh.pop %v751
        %v4803 = vtanh.pop %v752
        %v4804 = vtanh.pop %v753
        %v4805 = vtanh.pop %v754
        %v4806 = vtanh.pop %v755
        %v4807 = vtanh.pop %v756
        %v4808 = vtanh.pop %v757
        %v4809 = vtanh.pop %v758
        %v4810 = vtanh.pop %v759
        %v4811 = vtanh.pop %v760
        %v4812 = vtanh.pop %v761
        %v4813 = vtanh.pop %v762
        %v4814 = vtanh.pop %v763
        %v4815 = vtanh.pop %v764
        %v4816 = vtanh.pop %v765
        %v4817 = vtanh.pop %v766
        %v4818 = vtanh.pop %v767
        %v4819 = vtanh.pop %v768
        %v4820 = vtanh.pop %v769
        %v4821 = vtanh.pop %v770
        %v4822 = vtanh.pop %v771
        %v4823 = vpack.c.bf16 %v4792, %v4791
        %v4824 = vpack.c.bf16 %v4794, %v4793
        %v4825 = vpack.c.bf16 %v4796, %v4795
        %v4826 = vpack.c.bf16 %v4798, %v4797
        %v4827 = vpack.c.bf16 %v4800, %v4799
        %v4828 = vpack.c.bf16 %v4802, %v4801
        %v4829 = vpack.c.bf16 %v4804, %v4803
        %v4830 = vpack.c.bf16 %v4806, %v4805
        %v4831 = vpack.c.bf16 %v4808, %v4807
        %v4832 = vpack.c.bf16 %v4810, %v4809
        %v4833 = vpack.c.bf16 %v4812, %v4811
        %v4834 = vpack.c.bf16 %v4814, %v4813
        %v4835 = vpack.c.bf16 %v4816, %v4815
        %v4836 = vpack.c.bf16 %v4818, %v4817
        %v4837 = vpack.c.bf16 %v4820, %v4819
        %v4838 = vpack.c.bf16 %v4822, %v4821
        %v4839 = vld [vmem:[%s21] sm:$0xff]
        %v4840 = vld [vmem:[%s21 + $0x8] sm:$0xff]
        %v4841 = vld [vmem:[%s21 + $0x10] sm:$0xff]
        %v4842 = vld [vmem:[%s21 + $0x18] sm:$0x3f]
        %v4843 = vpack.c.bf16 %v4840, %v4839
        %v4844 = vpack.c.bf16 %v4842, %v4841
        %v4845 = vtanh.pop %v4759
        %v4846 = vtanh.pop %v4760
        %v4847 = vtanh.pop %v4761
        %v4848 = vtanh.pop %v4762
        %v4849 = vtanh.pop %v4763
        %v4850 = vtanh.pop %v4764
        %v4851 = vtanh.pop %v4765
        %v4852 = vtanh.pop %v4766
        %v4853 = vtanh.pop %v4767
        %v4854 = vtanh.pop %v4768
        %v4855 = vtanh.pop %v4769
        %v4856 = vtanh.pop %v4770
        %v4857 = vtanh.pop %v4771
        %v4858 = vtanh.pop %v4772
        %v4859 = vtanh.pop %v4773
        %v4860 = vtanh.pop %v4774
        %v4861 = vtanh.pop %v4775
        %v4862 = vtanh.pop %v4776
        %v4863 = vtanh.pop %v4777
        %v4864 = vtanh.pop %v4778
        %v4865 = vtanh.pop %v4779
        %v4866 = vtanh.pop %v4780
        %v4867 = vtanh.pop %v4781
        %v4868 = vtanh.pop %v4782
        %v4869 = vtanh.pop %v4783
        %v4870 = vtanh.pop %v4784
        %v4871 = vtanh.pop %v4785
        %v4872 = vtanh.pop %v4786
        %v4873 = vtanh.pop %v4787
        %v4874 = vtanh.pop %v4788
        %v4875 = vtanh.pop %v4789
        %v4876 = vtanh.pop %v4790
        %v4877 = vpack.c.bf16 %v4846, %v4845
        %v4878 = vpack.c.bf16 %v4848, %v4847
        %v4879 = vpack.c.bf16 %v4850, %v4849
        %v4880 = vpack.c.bf16 %v4852, %v4851
        %v4881 = vpack.c.bf16 %v4854, %v4853
        %v4882 = vpack.c.bf16 %v4856, %v4855
        %v4883 = vpack.c.bf16 %v4858, %v4857
        %v4884 = vpack.c.bf16 %v4860, %v4859
        %v4885 = vpack.c.bf16 %v4862, %v4861
        %v4886 = vpack.c.bf16 %v4864, %v4863
        %v4887 = vpack.c.bf16 %v4866, %v4865
        %v4888 = vpack.c.bf16 %v4868, %v4867
        %v4889 = vpack.c.bf16 %v4870, %v4869
        %v4890 = vpack.c.bf16 %v4872, %v4871
        %v4891 = vpack.c.bf16 %v4874, %v4873
        %v4892 = vpack.c.bf16 %v4876, %v4875
        %v4893 = vld [vmem:[%s22] sm:$0xff]
        %v4894 = vpack.c.bf16 %v4893, %v4893
        %vm4895 = vcmask 64512
        %v4897 = vsel %vm4895, %v4877, 0
        %v4900 = vsel %vm4895, %v4878, 0
        %v4903 = vsel %vm4895, %v4879, 0
        %v4906 = vsel %vm4895, %v4880, 0
        %v4909 = vsel %vm4895, %v4881, 0
        %v4912 = vsel %vm4895, %v4882, 0
        %v4915 = vsel %vm4895, %v4883, 0
        %v4918 = vsel %vm4895, %v4884, 0
        %v4921 = vsel %vm4895, %v4885, 0
        %v4924 = vsel %vm4895, %v4886, 0
        %v4927 = vsel %vm4895, %v4887, 0
        %v4930 = vsel %vm4895, %v4888, 0
        %v4933 = vsel %vm4895, %v4889, 0
        %v4936 = vsel %vm4895, %v4890, 0
        %v4939 = vsel %vm4895, %v4891, 0
        %v4942 = vsel %vm4895, %v4892, 0
        %v4945 = vsel %vm891, %v4894, 0
        %4947 = vmatprep.subr.bf16.mxu0 0
        %4948 = vmatpush1.bf16.msra.mxu0 %v4945
        %4949 = vmatprep.subr.bf16.mxu0 0
        %4950 = vmatpush1.bf16.msra.mxu0 0
        %4951 = vmatprep.subr.bf16.mxu0 0
        %4952 = vmatpush1.bf16.msra.mxu0 0
        %4953 = vmatprep.subr.bf16.mxu0 0
        %4954 = vmatpush1.bf16.msra.mxu0 0
        %4955 = vmatprep.subr.bf16.mxu0 0
        %4956 = vmatpush1.bf16.msra.mxu0 0
        %4957 = vmatprep.subr.bf16.mxu0 0
        %4958 = vmatpush1.bf16.msra.mxu0 0
        %4959 = vmatprep.subr.bf16.mxu0 0
        %4960 = vmatpush1.bf16.msra.mxu0 0
        %4961 = vmatprep.subr.bf16.mxu0 0
        %4962 = vmatpush1.bf16.msra.mxu0 0
        %4963 = vmatprep.subr.bf16.mxu0 0
        %4964 = vmatpush1.bf16.msra.mxu0 0
        %4965 = vmatprep.subr.bf16.mxu0 0
        %4966 = vmatpush1.bf16.msra.mxu0 0
        %4967 = vmatprep.subr.bf16.mxu0 0
        %4968 = vmatpush1.bf16.msra.mxu0 0
        %4969 = vmatprep.subr.bf16.mxu0 0
        %4970 = vmatpush1.bf16.msra.mxu0 0
        %4971 = vmatprep.subr.bf16.mxu0 0
        %4972 = vmatpush1.bf16.msra.mxu0 0
        %4973 = vmatprep.subr.bf16.mxu0 0
        %4974 = vmatpush1.bf16.msra.mxu0 0
        %4975 = vmatprep.subr.bf16.mxu0 0
        %4976 = vmatpush1.bf16.msra.mxu0 0
        %4977 = vmatprep.subr.bf16.mxu0 0
        %4978 = vmatpush1.bf16.msra.mxu0 0
        %4979 = vmatprep.mubr.bf16.mxu0 0
        %4980 = vmatmul.mubr.bf16.gmra.mrb[0].mxu0 %v4897
        %v4981 = vpop.f32.mrb[0].mxu0
        %v4982 = vadd.f32 0.0, %v4981
        %v4983 = vpop.f32.mrb[0].mxu0
        %v4984 = vpop.f32.mrb[0].mxu0
        %v4985 = vadd.f32 0.0, %v4984
        %v4986 = vpop.f32.mrb[0].mxu0
        %4987 = vmatprep.mubr.bf16.mxu0 0
        %4988 = vmatmul.mubr.bf16.gmra.mrb[0].mxu0 %v4900
        %v4989 = vpop.f32.mrb[0].mxu0
        %v4990 = vadd.f32 0.0, %v4989
        %v4991 = vpop.f32.mrb[0].mxu0
        %v4992 = vpop.f32.mrb[0].mxu0
        %v4993 = vadd.f32 0.0, %v4992
        %v4994 = vpop.f32.mrb[0].mxu0
        %4995 = vmatprep.mubr.bf16.mxu0 0
        %4996 = vmatmul.mubr.bf16.gmra.mrb[0].mxu0 %v4903
        %v4997 = vpop.f32.mrb[0].mxu0
        %v4998 = vadd.f32 0.0, %v4997
        %v4999 = vpop.f32.mrb[0].mxu0
        %v5000 = vpop.f32.mrb[0].mxu0
        %v5001 = vadd.f32 0.0, %v5000
        %v5002 = vpop.f32.mrb[0].mxu0
        %5003 = vmatprep.mubr.bf16.mxu0 0
        %5004 = vmatmul.mubr.bf16.gmra.mrb[0].mxu0 %v4906
        %v5005 = vpop.f32.mrb[0].mxu0
        %v5006 = vadd.f32 0.0, %v5005
        %v5007 = vpop.f32.mrb[0].mxu0
        %v5008 = vpop.f32.mrb[0].mxu0
        %v5009 = vadd.f32 0.0, %v5008
        %v5010 = vpop.f32.mrb[0].mxu0
        %5011 = vmatprep.mubr.bf16.mxu0 0
        %5012 = vmatmul.mubr.bf16.gmra.mrb[0].mxu0 %v4909
        %v5013 = vpop.f32.mrb[0].mxu0
        %v5014 = vadd.f32 0.0, %v5013
        %v5015 = vpop.f32.mrb[0].mxu0
        %v5016 = vpop.f32.mrb[0].mxu0
        %v5017 = vadd.f32 0.0, %v5016
        %v5018 = vpop.f32.mrb[0].mxu0
        %5019 = vmatprep.mubr.bf16.mxu0 0
        %5020 = vmatmul.mubr.bf16.gmra.mrb[0].mxu0 %v4912
        %v5021 = vpop.f32.mrb[0].mxu0
        %v5022 = vadd.f32 0.0, %v5021
        %v5023 = vpop.f32.mrb[0].mxu0
        %v5024 = vpop.f32.mrb[0].mxu0
        %v5025 = vadd.f32 0.0, %v5024
        %v5026 = vpop.f32.mrb[0].mxu0
        %5027 = vmatprep.mubr.bf16.mxu0 0
        %5028 = vmatmul.mubr.bf16.gmra.mrb[0].mxu0 %v4915
        %v5029 = vpop.f32.mrb[0].mxu0
        %v5030 = vadd.f32 0.0, %v5029
        %v5031 = vpop.f32.mrb[0].mxu0
        %v5032 = vpop.f32.mrb[0].mxu0
        %v5033 = vadd.f32 0.0, %v5032
        %v5034 = vpop.f32.mrb[0].mxu0
        %5035 = vmatprep.mubr.bf16.mxu0 0
        %5036 = vmatmul.mubr.bf16.gmra.mrb[0].mxu0 %v4918
        %v5037 = vpop.f32.mrb[0].mxu0
        %v5038 = vadd.f32 0.0, %v5037
        %v5039 = vpop.f32.mrb[0].mxu0
        %v5040 = vpop.f32.mrb[0].mxu0
        %v5041 = vadd.f32 0.0, %v5040
        %v5042 = vpop.f32.mrb[0].mxu0
        %5043 = vmatprep.mubr.bf16.mxu0 0
        %5044 = vmatmul.mubr.bf16.gmra.mrb[0].mxu0 %v4921
        %v5045 = vpop.f32.mrb[0].mxu0
        %v5046 = vadd.f32 0.0, %v5045
        %v5047 = vpop.f32.mrb[0].mxu0
        %v5048 = vpop.f32.mrb[0].mxu0
        %v5049 = vadd.f32 0.0, %v5048
        %v5050 = vpop.f32.mrb[0].mxu0
        %5051 = vmatprep.mubr.bf16.mxu0 0
        %5052 = vmatmul.mubr.bf16.gmra.mrb[0].mxu0 %v4924
        %v5053 = vpop.f32.mrb[0].mxu0
        %v5054 = vadd.f32 0.0, %v5053
        %v5055 = vpop.f32.mrb[0].mxu0
        %v5056 = vpop.f32.mrb[0].mxu0
        %v5057 = vadd.f32 0.0, %v5056
        %v5058 = vpop.f32.mrb[0].mxu0
        %5059 = vmatprep.mubr.bf16.mxu0 0
        %5060 = vmatmul.mubr.bf16.gmra.mrb[0].mxu0 %v4927
        %v5061 = vpop.f32.mrb[0].mxu0
        %v5062 = vadd.f32 0.0, %v5061
        %v5063 = vpop.f32.mrb[0].mxu0
        %v5064 = vpop.f32.mrb[0].mxu0
        %v5065 = vadd.f32 0.0, %v5064
        %v5066 = vpop.f32.mrb[0].mxu0
        %5067 = vmatprep.mubr.bf16.mxu0 0
        %5068 = vmatmul.mubr.bf16.gmra.mrb[0].mxu0 %v4930
        %v5069 = vpop.f32.mrb[0].mxu0
        %v5070 = vadd.f32 0.0, %v5069
        %v5071 = vpop.f32.mrb[0].mxu0
        %v5072 = vpop.f32.mrb[0].mxu0
        %v5073 = vadd.f32 0.0, %v5072
        %v5074 = vpop.f32.mrb[0].mxu0
        %5075 = vmatprep.mubr.bf16.mxu0 0
        %5076 = vmatmul.mubr.bf16.gmra.mrb[0].mxu0 %v4933
        %v5077 = vpop.f32.mrb[0].mxu0
        %v5078 = vadd.f32 0.0, %v5077
        %v5079 = vpop.f32.mrb[0].mxu0
        %v5080 = vpop.f32.mrb[0].mxu0
        %v5081 = vadd.f32 0.0, %v5080
        %v5082 = vpop.f32.mrb[0].mxu0
        %5083 = vmatprep.mubr.bf16.mxu0 0
        %5084 = vmatmul.mubr.bf16.gmra.mrb[0].mxu0 %v4936
        %v5085 = vpop.f32.mrb[0].mxu0
        %v5086 = vadd.f32 0.0, %v5085
        %v5087 = vpop.f32.mrb[0].mxu0
        %v5088 = vpop.f32.mrb[0].mxu0
        %v5089 = vadd.f32 0.0, %v5088
        %v5090 = vpop.f32.mrb[0].mxu0
        %5091 = vmatprep.mubr.bf16.mxu0 0
        %5092 = vmatmul.mubr.bf16.gmra.mrb[0].mxu0 %v4939
        %v5093 = vpop.f32.mrb[0].mxu0
        %v5094 = vadd.f32 0.0, %v5093
        %v5095 = vpop.f32.mrb[0].mxu0
        %v5096 = vpop.f32.mrb[0].mxu0
        %v5097 = vadd.f32 0.0, %v5096
        %v5098 = vpop.f32.mrb[0].mxu0
        %5099 = vmatprep.mubr.bf16.mxu0 0
        %5100 = vmatmul.mubr.bf16.gmra.mrb[0].mxu0 %v4942
        %v5101 = vpop.f32.mrb[0].mxu0
        %v5102 = vadd.f32 0.0, %v5101
        %v5103 = vpop.f32.mrb[0].mxu0
        %v5104 = vpop.f32.mrb[0].mxu0
        %v5105 = vadd.f32 0.0, %v5104
        %v5106 = vpop.f32.mrb[0].mxu0
        %5107 = vdwg.mxu0
        %v5109 = vsel %vm2072, %v4823, 0
        %v5112 = vsel %vm2072, %v4824, 0
        %v5115 = vsel %vm2072, %v4825, 0
        %v5118 = vsel %vm2072, %v4826, 0
        %v5121 = vsel %vm2072, %v4827, 0
        %v5124 = vsel %vm2072, %v4828, 0
        %v5127 = vsel %vm2072, %v4829, 0
        %v5130 = vsel %vm2072, %v4830, 0
        %v5133 = vsel %vm2072, %v4831, 0
        %v5136 = vsel %vm2072, %v4832, 0
        %v5139 = vsel %vm2072, %v4833, 0
        %v5142 = vsel %vm2072, %v4834, 0
        %v5145 = vsel %vm2072, %v4835, 0
        %v5148 = vsel %vm2072, %v4836, 0
        %v5151 = vsel %vm2072, %v4837, 0
        %v5154 = vsel %vm2072, %v4838, 0
        %v5157 = vsel %vm2105, %v4844, 0
        %5159 = vmatprep.subr.bf16.mxu0 0
        %5160 = vmatpush1.bf16.msra.mxu0 %v4843
        %5161 = vmatprep.subr.bf16.mxu0 0
        %5162 = vmatpush1.bf16.msra.mxu0 %v5157
        %5163 = vmatprep.subr.bf16.mxu0 0
        %5164 = vmatpush1.bf16.msra.mxu0 0
        %5165 = vmatprep.subr.bf16.mxu0 0
        %5166 = vmatpush1.bf16.msra.mxu0 0
        %5167 = vmatprep.subr.bf16.mxu0 0
        %5168 = vmatpush1.bf16.msra.mxu0 0
        %5169 = vmatprep.subr.bf16.mxu0 0
        %5170 = vmatpush1.bf16.msra.mxu0 0
        %5171 = vmatprep.subr.bf16.mxu0 0
        %5172 = vmatpush1.bf16.msra.mxu0 0
        %5173 = vmatprep.subr.bf16.mxu0 0
        %5174 = vmatpush1.bf16.msra.mxu0 0
        %5175 = vmatprep.subr.bf16.mxu0 0
        %5176 = vmatpush1.bf16.msra.mxu0 0
        %5177 = vmatprep.subr.bf16.mxu0 0
        %5178 = vmatpush1.bf16.msra.mxu0 0
        %5179 = vmatprep.subr.bf16.mxu0 0
        %5180 = vmatpush1.bf16.msra.mxu0 0
        %5181 = vmatprep.subr.bf16.mxu0 0
        %5182 = vmatpush1.bf16.msra.mxu0 0
        %5183 = vmatprep.subr.bf16.mxu0 0
        %5184 = vmatpush1.bf16.msra.mxu0 0
        %5185 = vmatprep.subr.bf16.mxu0 0
        %5186 = vmatpush1.bf16.msra.mxu0 0
        %5187 = vmatprep.subr.bf16.mxu0 0
        %5188 = vmatpush1.bf16.msra.mxu0 0
        %5189 = vmatprep.subr.bf16.mxu0 0
        %5190 = vmatpush1.bf16.msra.mxu0 0
        %5191 = vmatprep.mubr.bf16.mxu0 0
        %5192 = vmatmul.mubr.bf16.gmra.mrb[0].mxu0 %v5109
        %v5193 = vpop.f32.mrb[0].mxu0
        %v5194 = vadd.f32 %v4982, %v5193
        %v5195 = vpop.f32.mrb[0].mxu0
        %v5196 = vpop.f32.mrb[0].mxu0
        %v5197 = vadd.f32 %v4985, %v5196
        %v5198 = vpop.f32.mrb[0].mxu0
        %5199 = vmatprep.mubr.bf16.mxu0 0
        %5200 = vmatmul.mubr.bf16.gmra.mrb[0].mxu0 %v5112
        %v5201 = vpop.f32.mrb[0].mxu0
        %v5202 = vadd.f32 %v4990, %v5201
        %v5203 = vpop.f32.mrb[0].mxu0
        %v5204 = vpop.f32.mrb[0].mxu0
        %v5205 = vadd.f32 %v4993, %v5204
        %v5206 = vpop.f32.mrb[0].mxu0
        %5207 = vmatprep.mubr.bf16.mxu0 0
        %5208 = vmatmul.mubr.bf16.gmra.mrb[0].mxu0 %v5115
        %v5209 = vpop.f32.mrb[0].mxu0
        %v5210 = vadd.f32 %v4998, %v5209
        %v5211 = vpop.f32.mrb[0].mxu0
        %v5212 = vpop.f32.mrb[0].mxu0
        %v5213 = vadd.f32 %v5001, %v5212
        %v5214 = vpop.f32.mrb[0].mxu0
        %5215 = vmatprep.mubr.bf16.mxu0 0
        %5216 = vmatmul.mubr.bf16.gmra.mrb[0].mxu0 %v5118
        %v5217 = vpop.f32.mrb[0].mxu0
        %v5218 = vadd.f32 %v5006, %v5217
        %v5219 = vpop.f32.mrb[0].mxu0
        %v5220 = vpop.f32.mrb[0].mxu0
        %v5221 = vadd.f32 %v5009, %v5220
        %v5222 = vpop.f32.mrb[0].mxu0
        %5223 = vmatprep.mubr.bf16.mxu0 0
        %5224 = vmatmul.mubr.bf16.gmra.mrb[0].mxu0 %v5121
        %v5225 = vpop.f32.mrb[0].mxu0
        %v5226 = vadd.f32 %v5014, %v5225
        %v5227 = vpop.f32.mrb[0].mxu0
        %v5228 = vpop.f32.mrb[0].mxu0
        %v5229 = vadd.f32 %v5017, %v5228
        %v5230 = vpop.f32.mrb[0].mxu0
        %5231 = vmatprep.mubr.bf16.mxu0 0
        %5232 = vmatmul.mubr.bf16.gmra.mrb[0].mxu0 %v5124
        %v5233 = vpop.f32.mrb[0].mxu0
        %v5234 = vadd.f32 %v5022, %v5233
        %v5235 = vpop.f32.mrb[0].mxu0
        %v5236 = vpop.f32.mrb[0].mxu0
        %v5237 = vadd.f32 %v5025, %v5236
        %v5238 = vpop.f32.mrb[0].mxu0
        %5239 = vmatprep.mubr.bf16.mxu0 0
        %5240 = vmatmul.mubr.bf16.gmra.mrb[0].mxu0 %v5127
        %v5241 = vpop.f32.mrb[0].mxu0
        %v5242 = vadd.f32 %v5030, %v5241
        %v5243 = vpop.f32.mrb[0].mxu0
        %v5244 = vpop.f32.mrb[0].mxu0
        %v5245 = vadd.f32 %v5033, %v5244
        %v5246 = vpop.f32.mrb[0].mxu0
        %5247 = vmatprep.mubr.bf16.mxu0 0
        %5248 = vmatmul.mubr.bf16.gmra.mrb[0].mxu0 %v5130
        %v5249 = vpop.f32.mrb[0].mxu0
        %v5250 = vadd.f32 %v5038, %v5249
        %v5251 = vpop.f32.mrb[0].mxu0
        %v5252 = vpop.f32.mrb[0].mxu0
        %v5253 = vadd.f32 %v5041, %v5252
        %v5254 = vpop.f32.mrb[0].mxu0
        %5255 = vmatprep.mubr.bf16.mxu0 0
        %5256 = vmatmul.mubr.bf16.gmra.mrb[0].mxu0 %v5133
        %v5257 = vpop.f32.mrb[0].mxu0
        %v5258 = vadd.f32 %v5046, %v5257
        %v5259 = vpop.f32.mrb[0].mxu0
        %v5260 = vpop.f32.mrb[0].mxu0
        %v5261 = vadd.f32 %v5049, %v5260
        %v5262 = vpop.f32.mrb[0].mxu0
        %5263 = vmatprep.mubr.bf16.mxu0 0
        %5264 = vmatmul.mubr.bf16.gmra.mrb[0].mxu0 %v5136
        %v5265 = vpop.f32.mrb[0].mxu0
        %v5266 = vadd.f32 %v5054, %v5265
        %v5267 = vpop.f32.mrb[0].mxu0
        %v5268 = vpop.f32.mrb[0].mxu0
        %v5269 = vadd.f32 %v5057, %v5268
        %v5270 = vpop.f32.mrb[0].mxu0
        %5271 = vmatprep.mubr.bf16.mxu0 0
        %5272 = vmatmul.mubr.bf16.gmra.mrb[0].mxu0 %v5139
        %v5273 = vpop.f32.mrb[0].mxu0
        %v5274 = vadd.f32 %v5062, %v5273
        %v5275 = vpop.f32.mrb[0].mxu0
        %v5276 = vpop.f32.mrb[0].mxu0
        %v5277 = vadd.f32 %v5065, %v5276
        %v5278 = vpop.f32.mrb[0].mxu0
        %5279 = vmatprep.mubr.bf16.mxu0 0
        %5280 = vmatmul.mubr.bf16.gmra.mrb[0].mxu0 %v5142
        %v5281 = vpop.f32.mrb[0].mxu0
        %v5282 = vadd.f32 %v5070, %v5281
        %v5283 = vpop.f32.mrb[0].mxu0
        %v5284 = vpop.f32.mrb[0].mxu0
        %v5285 = vadd.f32 %v5073, %v5284
        %v5286 = vpop.f32.mrb[0].mxu0
        %5287 = vmatprep.mubr.bf16.mxu0 0
        %5288 = vmatmul.mubr.bf16.gmra.mrb[0].mxu0 %v5145
        %v5289 = vpop.f32.mrb[0].mxu0
        %v5290 = vadd.f32 %v5078, %v5289
        %v5291 = vpop.f32.mrb[0].mxu0
        %v5292 = vpop.f32.mrb[0].mxu0
        %v5293 = vadd.f32 %v5081, %v5292
        %v5294 = vpop.f32.mrb[0].mxu0
        %5295 = vmatprep.mubr.bf16.mxu0 0
        %5296 = vmatmul.mubr.bf16.gmra.mrb[0].mxu0 %v5148
        %v5297 = vpop.f32.mrb[0].mxu0
        %v5298 = vadd.f32 %v5086, %v5297
        %v5299 = vpop.f32.mrb[0].mxu0
        %v5300 = vpop.f32.mrb[0].mxu0
        %v5301 = vadd.f32 %v5089, %v5300
        %v5302 = vpop.f32.mrb[0].mxu0
        %5303 = vmatprep.mubr.bf16.mxu0 0
        %5304 = vmatmul.mubr.bf16.gmra.mrb[0].mxu0 %v5151
        %v5305 = vpop.f32.mrb[0].mxu0
        %v5306 = vadd.f32 %v5094, %v5305
        %v5307 = vpop.f32.mrb[0].mxu0
        %v5308 = vpop.f32.mrb[0].mxu0
        %v5309 = vadd.f32 %v5097, %v5308
        %v5310 = vpop.f32.mrb[0].mxu0
        %5311 = vmatprep.mubr.bf16.mxu0 0
        %5312 = vmatmul.mubr.bf16.gmra.mrb[0].mxu0 %v5154
        %v5313 = vpop.f32.mrb[0].mxu0
        %v5314 = vadd.f32 %v5102, %v5313
        %v5315 = vpop.f32.mrb[0].mxu0
        %v5316 = vpop.f32.mrb[0].mxu0
        %v5317 = vadd.f32 %v5105, %v5316
        %v5318 = vpop.f32.mrb[0].mxu0
        %5319 = vdwg.mxu0
        %v5320 = vld [vmem:[%s23] sm:$0x1]
        %v5322 = vlaneseq
        %v5323 = vshrl.u32 %v5322, 7
        %v5324 = vsub.s32 0, %v5323
        %v5325 = vrot.slane %v5320, %v5324
        %v5327 = vadd.f32 %v5194, %v5325
        %v5328 = vadd.f32 %v5197, %v5325
        %v5329 = vadd.f32 %v5202, %v5325
        %v5330 = vadd.f32 %v5205, %v5325
        %v5331 = vadd.f32 %v5210, %v5325
        %v5332 = vadd.f32 %v5213, %v5325
        %v5333 = vadd.f32 %v5218, %v5325
        %v5334 = vadd.f32 %v5221, %v5325
        %v5335 = vadd.f32 %v5226, %v5325
        %v5336 = vadd.f32 %v5229, %v5325
        %v5337 = vadd.f32 %v5234, %v5325
        %v5338 = vadd.f32 %v5237, %v5325
        %v5339 = vadd.f32 %v5242, %v5325
        %v5340 = vadd.f32 %v5245, %v5325
        %v5341 = vadd.f32 %v5250, %v5325
        %v5342 = vadd.f32 %v5253, %v5325
        %v5343 = vadd.f32 %v5258, %v5325
        %v5344 = vadd.f32 %v5261, %v5325
        %v5345 = vadd.f32 %v5266, %v5325
        %v5346 = vadd.f32 %v5269, %v5325
        %v5347 = vadd.f32 %v5274, %v5325
        %v5348 = vadd.f32 %v5277, %v5325
        %v5349 = vadd.f32 %v5282, %v5325
        %v5350 = vadd.f32 %v5285, %v5325
        %v5351 = vadd.f32 %v5290, %v5325
        %v5352 = vadd.f32 %v5293, %v5325
        %v5353 = vadd.f32 %v5298, %v5325
        %v5354 = vadd.f32 %v5301, %v5325
        %v5355 = vadd.f32 %v5306, %v5325
        %v5356 = vadd.f32 %v5309, %v5325
        %v5357 = vadd.f32 %v5314, %v5325
        %v5358 = vadd.f32 %v5317, %v5325
        %5359 = vst [vmem:[%s731] sm:$0xff] %v5327
        %5360 = vst [vmem:[%s731 + $0x8] sm:$0xff] %v5328
        %5361 = vst [vmem:[%s731 + $0x10] sm:$0xff] %v5329
        %5362 = vst [vmem:[%s731 + $0x18] sm:$0xff] %v5330
        %5363 = vst [vmem:[%s731 + $0x20] sm:$0xff] %v5331
        %5364 = vst [vmem:[%s731 + $0x28] sm:$0xff] %v5332
        %5365 = vst [vmem:[%s731 + $0x30] sm:$0xff] %v5333
        %5366 = vst [vmem:[%s731 + $0x38] sm:$0xff] %v5334
        %5367 = vst [vmem:[%s731 + $0x40] sm:$0xff] %v5335
        %5368 = vst [vmem:[%s731 + $0x48] sm:$0xff] %v5336
        %5369 = vst [vmem:[%s731 + $0x50] sm:$0xff] %v5337
        %5370 = vst [vmem:[%s731 + $0x58] sm:$0xff] %v5338
        %5371 = vst [vmem:[%s731 + $0x60] sm:$0xff] %v5339
        %5372 = vst [vmem:[%s731 + $0x68] sm:$0xff] %v5340
        %5373 = vst [vmem:[%s731 + $0x70] sm:$0xff] %v5341
        %5374 = vst [vmem:[%s731 + $0x78] sm:$0xff] %v5342
        %5375 = vst [vmem:[%s731 + $0x80] sm:$0xff] %v5343
        %5376 = vst [vmem:[%s731 + $0x88] sm:$0xff] %v5344
        %5377 = vst [vmem:[%s731 + $0x90] sm:$0xff] %v5345
        %5378 = vst [vmem:[%s731 + $0x98] sm:$0xff] %v5346
        %5379 = vst [vmem:[%s731 + $0xa0] sm:$0xff] %v5347
        %5380 = vst [vmem:[%s731 + $0xa8] sm:$0xff] %v5348
        %5381 = vst [vmem:[%s731 + $0xb0] sm:$0xff] %v5349
        %5382 = vst [vmem:[%s731 + $0xb8] sm:$0xff] %v5350
        %5383 = vst [vmem:[%s731 + $0xc0] sm:$0xff] %v5351
        %5384 = vst [vmem:[%s731 + $0xc8] sm:$0xff] %v5352
        %5385 = vst [vmem:[%s731 + $0xd0] sm:$0xff] %v5353
        %5386 = vst [vmem:[%s731 + $0xd8] sm:$0xff] %v5354
        %5387 = vst [vmem:[%s731 + $0xe0] sm:$0xff] %v5355
        %5388 = vst [vmem:[%s731 + $0xe8] sm:$0xff] %v5356
        %5389 = vst [vmem:[%s731 + $0xf0] sm:$0xff] %v5357
        %5390 = vst [vmem:[%s731 + $0xf8] sm:$0xff] %v5358
        %s5391 = sand.u32 %s555, 1
        %s5392 = scalar_lea.sflag [#allocation3], %s5391
        %s5393 = sand.u32 %s555, 1
        %s5394 = smul.addr %s5393, 256
        %s5395 = scalar_lea.vmem [#allocation2], %s5394
        // Predicated region
        $region117: #{tpu_custom_call.1} parent=115 // pred_check
          %p5396 = pneg %p565
        $region118: #{tpu_custom_call.1} parent=115 // pred_check_branch
          %5398 = sbr.rel (%p5396) target = $region120
        $region119: #{tpu_custom_call.1} parent=115 // pred_region
          %s5399 = smul.u32 32, %s38
          %s5401 = ssub.s32 4096, 4096
          %5402 = vsyncadd %s5392, %s5401
          %s5403 = smul.addr %s5399, 128
          %s5404 = scalar_lea.hbm %s24, %s5403
          %s5405 = sshll.u32 %s5395, 4
          %s5406 = int_to_ptr.vmem [resolvable:$true] %s5405
          %5411 = dma.vmem_to_hbm [thread:$0]  %s5406, 4096, %s5404, %s5392, 128, 128, 8
        $region120: #{tpu_custom_call.1} parent=115 // pred_fallthru
          _
      $region116: #{tpu_custom_call.1} parent=5 // pred_fallthru
        _
      %p5412 = scmp.le.s32.totalorder 2, %s33
      // Predicated region
      $region121: #{tpu_custom_call.1} parent=5 // pred_check
        %p5413 = pneg %p5412
      $region122: #{tpu_custom_call.1} parent=5 // pred_check_branch
        %5415 = sbr.rel (%p5413) target = $region124
      $region123: #{tpu_custom_call.1} parent=5 // pred_region
        %s5416 = ssub.s32 %s33, 2
        // Predicated region
        $region125: #{tpu_custom_call.1} parent=123 // pred_check
          %p5417 = pneg %p571
        $region126: #{tpu_custom_call.1} parent=123 // pred_check_branch
          %5419 = sbr.rel (%p5417) target = $region128
        $region127: #{tpu_custom_call.1} parent=123 // pred_region
          %s5420 = sand.u32 %s556, 1
          %s5421 = scalar_lea.sflag [#allocation3], %s5420
          %s5422 = sand.u32 %s556, 1
          %s5423 = smul.addr %s5422, 256
          %s5424 = scalar_lea.vmem [#allocation2], %s5423
          %5425 = dma.done %s5421, 4096
        $region128: #{tpu_custom_call.1} parent=123 // pred_fallthru
          _
      $region124: #{tpu_custom_call.1} parent=5 // pred_fallthru
        _
    $region6: #{tpu_custom_call.1} parent=1 // loop_footer
      %s37 = sadd.s32 1, %s33
    $region7: #{tpu_custom_call.1} parent=1 // loop_footer_branch
      %32 = sbr.rel target = $region3
    $region8: #{tpu_custom_call.1} parent=1 // loop_exit
      _
    %5426 = vsyncpa [#allocation3], 1
    %s5427 = scalar_lea.sflag [#allocation3], 1
    %5428 = vsyncpa %s5427, 1

</llo_original>
